<compile_context>
chip_gen: v7x
topology: tpu7x:2x2x1
jax: 0.10.0
libtpu: 0.0.40
codegen_flags: <defaults>
</compile_context>

<pallas_src>
import functools

import jax
import jax.numpy as jnp
from jax import lax
from jax.experimental import pallas as pl
from jax.experimental.pallas import tpu as pltpu

_MASK_VALUE = -1e30  # finite "-inf": masked entries never produce NaN


def _layernorm(x, w, b, eps=1e-5):
    mu = jnp.mean(x, axis=-1, keepdims=True)
    var = jnp.mean((x - mu) ** 2, axis=-1, keepdims=True)
    return (x - mu) * lax.rsqrt(var + eps) * w + b


def _round_up(x, m):
    return ((x + m - 1) // m) * m


def _seq_tiling(T, target):
    """8-aligned sequence tile <= ~target; returns (tile, padded_T)."""
    n = -(-T // target)                 # number of tiles
    ts = _round_up(-(-T // n), 8)       # balanced, 8-aligned tile
    return ts, ts * n


def _size_bytes(*arrays):
    return sum(int(a.size) * a.dtype.itemsize for a in arrays)


def _vmem_capacity_bytes():
    try:
        return int(pltpu.get_tpu_info().vmem_capacity_bytes)
    except Exception:
        return 64 * 1024 * 1024         # v7x-safe fallback


def _vmem_limit(est_bytes):
    cap = _vmem_capacity_bytes()
    # 2x headroom for compiler temporaries/relayouts, clamped to this part's VMEM.
    return int(min(max(2 * est_bytes, 32 * 1024 * 1024), int(cap * 0.9)))


def _const_spec(arr):
    """Whole-array BlockSpec with grid-invariant index map (weights/biases)."""
    zeros = (0,) * arr.ndim
    return pl.BlockSpec(arr.shape, lambda *_: zeros)


# --------------------------------------------------------------------------
# Kernel 1: LN1 + fused QKV projection, writes q/k/v head-major (B, H, T, hd).
# 1/sqrt(head_dim) is pre-folded into the q columns of wqkv/bqkv.
# --------------------------------------------------------------------------
def qkv_kernel(x_ref, ln1w_ref, ln1b_ref, wqkv_ref, bqkv_ref,
               q_ref, k_ref, v_ref, *, n_head):
    x = x_ref[0].astype(jnp.float32)                          # (TM, C)
    tm, C = x.shape
    hd = C // n_head
    h = _layernorm(x, ln1w_ref[...], ln1b_ref[...])
    qkv = jnp.dot(h.astype(jnp.bfloat16), wqkv_ref[...],
                  preferred_element_type=jnp.float32) + bqkv_ref[...]   # (TM, 3C)

    def heads(a):   # (TM, C) -> (H, TM, hd); relayout overlaps the MXU matmul
        return jnp.transpose(a.reshape(tm, n_head, hd), (1, 0, 2))

    q_ref[0] = heads(qkv[:, 0 * C:1 * C]).astype(q_ref.dtype)
    k_ref[0] = heads(qkv[:, 1 * C:2 * C]).astype(k_ref.dtype)
    v_ref[0] = heads(qkv[:, 2 * C:3 * C]).astype(v_ref.dtype)


def _qkv_projection(x_p, ln1_w, ln1_b, wqkv_b, bqkv_s, n_head, TM):
    B, Tp, C = x_p.shape
    hd = C // n_head

    tile_bytes = (TM * C * 4            # x tile (f32)
                  + 3 * TM * C * 2      # q/k/v output tiles (bf16)
                  + 2 * TM * 3 * C * 4)  # f32 temporaries (h, qkv)
    weight_bytes = _size_bytes(ln1_w, ln1_b, wqkv_b, bqkv_s)
    limit = _vmem_limit(2 * tile_bytes + 2 * weight_bytes)

    x_spec = pl.BlockSpec((1, TM, C), lambda b, t: (b, t, 0))
    head_spec = pl.BlockSpec((1, n_head, TM, hd), lambda b, t: (b, 0, t, 0))
    out_sds = jax.ShapeDtypeStruct((B, n_head, Tp, hd), jnp.bfloat16)

    return pl.pallas_call(
        functools.partial(qkv_kernel, n_head=n_head),
        out_shape=(out_sds, out_sds, out_sds),
        grid=(B, Tp // TM),
        in_specs=[x_spec, _const_spec(ln1_w), _const_spec(ln1_b),
                  _const_spec(wqkv_b), _const_spec(bqkv_s)],
        out_specs=(head_spec, head_spec, head_spec),
        compiler_params=pltpu.CompilerParams(
            dimension_semantics=("parallel", "parallel"),
            vmem_limit_bytes=limit),
    )(x_p, ln1_w, ln1_b, wqkv_b, bqkv_s)


# --------------------------------------------------------------------------
# Kernel 2: flash attention (online softmax over the causal lower triangle
# only) + c_proj + residual + LN2 + MLP + residual, fused per query tile.
# --------------------------------------------------------------------------
def attn_mlp_kernel(qi_ref, ki_ref,
                    x_ref, q_ref, k_ref, v_ref,
                    wproj_ref, bproj_ref, ln2w_ref, ln2b_ref,
                    wfc_ref, bfc_ref, wfc2_ref, bfc2_ref,
                    o_ref,
                    m_scr, l_scr, acc_scr):
    s_idx = pl.program_id(1)
    qi = qi_ref[s_idx]
    ki = ki_ref[s_idx]
    _, n_head, ts, hd = q_ref.shape

    @pl.when(ki == 0)
    def _init():
        m_scr[...] = jnp.full_like(m_scr, _MASK_VALUE)
        l_scr[...] = jnp.zeros_like(l_scr)
        acc_scr[...] = jnp.zeros_like(acc_scr)

    q = q_ref[0]            # (H, TS, hd) bf16, pre-scaled via wqkv
    k = k_ref[0]
    v = v_ref[0]

    def scores():
        return lax.dot_general(q, k, (((2,), (2,)), ((0,), (0,))),
                               preferred_element_type=jnp.float32)   # (H, TS, TS)

    def online_softmax_update(s):
        m_prev = m_scr[...]
        m_next = jnp.maximum(m_prev, jnp.max(s, axis=-1, keepdims=True))
        alpha = jnp.exp(m_prev - m_next)
        p = jnp.exp(s - m_next)
        l_scr[...] = alpha * l_scr[...] + jnp.sum(p, axis=-1, keepdims=True)
        acc_scr[...] = alpha * acc_scr[...] + lax.dot_general(
            p.astype(v.dtype), v, (((2,), (1,)), ((0,), (0,))),
            preferred_element_type=jnp.float32)                      # (H, TS, hd)
        m_scr[...] = m_next

    # Off-diagonal lower-triangle tiles are fully unmasked: no iota/compare/select.
    @pl.when(ki < qi)
    def _off_diag():
        online_softmax_update(scores())

    # Diagonal tile: causal mask (local indices suffice since qi == ki); it is
    # also the last KV step for this query row -> finalize here.
    @pl.when(ki == qi)
    def _diag_and_finalize():
        s = scores()
        row = lax.broadcasted_iota(jnp.int32, (ts, ts), 0)
        col = lax.broadcasted_iota(jnp.int32, (ts, ts), 1)
        s = jnp.where((row >= col)[None, :, :], s, _MASK_VALUE)
        online_softmax_update(s)

        inv_l = pl.reciprocal(l_scr[...], approx=True)                  # (H, TS, 1)
        attn = acc_scr[...] * inv_l                                     # (H, TS, hd)
        # (H, TS, hd) -> (TS, C): XLU transpose overlaps the MXU-heavy finalize;
        # enables a single full-depth c_proj matmul.
        attn = jnp.transpose(attn, (1, 0, 2)).reshape(ts, n_head * hd)
        y = jnp.dot(attn.astype(jnp.bfloat16), wproj_ref[...],
                    preferred_element_type=jnp.float32) + bproj_ref[...]  # (TS, C)

        x1 = x_ref[0].astype(jnp.float32) + y                            # residual 1
        h = _layernorm(x1, ln2w_ref[...], ln2b_ref[...])
        h = jnp.dot(h.astype(jnp.bfloat16), wfc_ref[...],
                    preferred_element_type=jnp.float32) + bfc_ref[...]
        h = jax.nn.gelu(h, approximate=True)                             # GELU(tanh)
        h = jnp.dot(h.astype(jnp.bfloat16), wfc2_ref[...],
                    preferred_element_type=jnp.float32) + bfc2_ref[...]
        o_ref[0] = (x1 + h).astype(o_ref.dtype)                          # residual 2


def _attn_mlp(x_p, q4, k4, v4, wproj_b, bproj, ln2_w, ln2_b,
              wfc_b, bfc, wfc2_b, bfc2, n_head, TS):
    B, Tp, C = x_p.shape
    hd = C // n_head
    NT = Tp // TS

    # Triangularized grid: only the NT*(NT+1)/2 causal (qi, ki) pairs are
    # visited (KV innermost), driven by scalar-prefetched index arrays.
    qi_list, ki_list = [], []
    for qq in range(NT):
        for kk in range(qq + 1):
            qi_list.append(qq)
            ki_list.append(kk)
    qi_arr = jnp.asarray(qi_list, dtype=jnp.int32)
    ki_arr = jnp.asarray(ki_list, dtype=jnp.int32)
    n_steps = len(qi_list)

    tile_bytes = (2 * TS * C * 4                 # x tile + output tile (f32)
                  + 3 * n_head * TS * hd * 2     # q/k/v tiles (bf16)
                  + 3 * n_head * TS * TS * 4     # score/prob temporaries
                  + TS * C * 4                   # (TS, C) attention temporary
                  + 2 * TS * 4 * C * 4)          # MLP hidden temporaries
    weight_bytes = _size_bytes(wproj_b, bproj, ln2_w, ln2_b,
                               wfc_b, bfc, wfc2_b, bfc2)
    scratch_bytes = (2 * n_head * TS + n_head * TS * hd) * 4
    limit = _vmem_limit(2 * tile_bytes + 2 * weight_bytes + scratch_bytes)

    x_spec = pl.BlockSpec((1, TS, C), lambda b, s, qi, ki: (b, qi[s], 0))
    o_spec = pl.BlockSpec((1, TS, C), lambda b, s, qi, ki: (b, qi[s], 0))
    q_spec = pl.BlockSpec((1, n_head, TS, hd), lambda b, s, qi, ki: (b, 0, qi[s], 0))
    kv_spec = pl.BlockSpec((1, n_head, TS, hd), lambda b, s, qi, ki: (b, 0, ki[s], 0))
    w_specs = [_const_spec(a) for a in (wproj_b, bproj, ln2_w, ln2_b,
                                        wfc_b, bfc, wfc2_b, bfc2)]

    return pl.pallas_call(
        attn_mlp_kernel,
        out_shape=jax.ShapeDtypeStruct((B, Tp, C), x_p.dtype),
        grid_spec=pltpu.PrefetchScalarGridSpec(
            num_scalar_prefetch=2,
            grid=(B, n_steps),
            in_specs=[x_spec, q_spec, kv_spec, kv_spec] + w_specs,
            out_specs=o_spec,
            scratch_shapes=[
                pltpu.VMEM((n_head, TS, 1), jnp.float32),   # running max
                pltpu.VMEM((n_head, TS, 1), jnp.float32),   # running denom
                pltpu.VMEM((n_head, TS, hd), jnp.float32),  # output accumulator
            ]),
        compiler_params=pltpu.CompilerParams(
            dimension_semantics=("parallel", "arbitrary"),
            vmem_limit_bytes=limit),
    )(qi_arr, ki_arr, x_p, q4, k4, v4, wproj_b, bproj,
      ln2_w, ln2_b, wfc_b, bfc, wfc2_b, bfc2)


# --------------------------------------------------------------------------
# Full block forward.
# --------------------------------------------------------------------------
@functools.partial(jax.jit, static_argnums=(2,))
def block_forward(x, params, n_head):
    (ln1_w, ln1_b, wqkv, bqkv, wproj, bproj,
     ln2_w, ln2_b, wfc, bfc, wfc2, bfc2) = params
    B, T, C = x.shape
    hd = C // n_head

    # Fold 1/sqrt(hd) into the q columns of wqkv/bqkv during the bf16 cast.
    scale = 1.0 / (hd ** 0.5)
    col_scale = jnp.concatenate([jnp.full((C,), scale, jnp.float32),
                                 jnp.ones((2 * C,), jnp.float32)])
    wqkv_b = (wqkv * col_scale[None, :]).astype(jnp.bfloat16)
    bqkv_s = (bqkv * col_scale[None, :]).astype(jnp.float32)
    wproj_b = wproj.astype(jnp.bfloat16)
    wfc_b = wfc.astype(jnp.bfloat16)
    wfc2_b = wfc2.astype(jnp.bfloat16)

    # Sequence tiling: pad T to a multiple of an 8-aligned tile.  Padded query
    # rows are discarded; padded key rows are never attended by real queries
    # (causal mask), so padding is numerically inert for the kept rows.
    TS, Tp = _seq_tiling(T, 256)                                   # attention tile
    TM = 2 * TS if (Tp % (2 * TS) == 0 and 2 * TS <= 512) else TS  # kernel-1 tile
    x_p = x if Tp == T else jnp.pad(x, ((0, 0), (0, Tp - T), (0, 0)))

    q4, k4, v4 = _qkv_projection(x_p, ln1_w, ln1_b, wqkv_b, bqkv_s, n_head, TM)

    out = _attn_mlp(x_p, q4, k4, v4, wproj_b, bproj, ln2_w, ln2_b,
                    wfc_b, bfc, wfc2_b, bfc2, n_head, TS)
    return out if Tp == T else out[:, :T, :]


# ---------------- pure-JAX f32 reference (for verification) ----------------
def block_reference(x, params, n_head):
    (ln1_w, ln1_b, wqkv, bqkv, wproj, bproj,
     ln2_w, ln2_b, wfc, bfc, wfc2, bfc2) = params
    B, T, C = x.shape
    hd = C // n_head

    h = _layernorm(x, ln1_w, ln1_b)
    qkv = h @ wqkv + bqkv
    q, k, v = jnp.split(qkv, 3, axis=-1)
    q = q.reshape(B, T, n_head, hd).transpose(0, 2, 1, 3)
    k = k.reshape(B, T, n_head, hd).transpose(0, 2, 1, 3)
    v = v.reshape(B, T, n_head, hd).transpose(0, 2, 1, 3)
    s = jnp.einsum('bhtd,bhsd->bhts', q, k) / (hd ** 0.5)
    mask = jnp.tril(jnp.ones((T, T), dtype=bool))
    s = jnp.where(mask, s, -jnp.inf)
    p = jax.nn.softmax(s, axis=-1)
    y = jnp.einsum('bhts,bhsd->bhtd', p, v)
    y = y.transpose(0, 2, 1, 3).reshape(B, T, C)
    y = y @ wproj + bproj
    x = x + y

    h = _layernorm(x, ln2_w, ln2_b)
    h = h @ wfc + bfc
    h = jax.nn.gelu(h, approximate=True)
    h = h @ wfc2 + bfc2
    return x + h


def make_params(key, n_embd):
    C = n_embd
    keys = jax.random.split(key, 12)
    s = 0.02
    # PyTorch nn.Linear stores weight as (out, in); we pre-transpose to (in, out).
    wqkv = (jax.random.normal(keys[0], (3 * C, C), jnp.float32) * s).T
    bqkv = (jax.random.normal(keys[1], (3 * C,), jnp.float32) * s).reshape(1, 3 * C)
    wproj = (jax.random.normal(keys[2], (C, C), jnp.float32) * s).T
    bproj = (jax.random.normal(keys[3], (C,), jnp.float32) * s).reshape(1, C)
    wfc = (jax.random.normal(keys[4], (4 * C, C), jnp.float32) * s).T
    bfc = (jax.random.normal(keys[5], (4 * C,), jnp.float32) * s).reshape(1, 4 * C)
    wfc2 = (jax.random.normal(keys[6], (C, 4 * C), jnp.float32) * s).T
    bfc2 = (jax.random.normal(keys[7], (C,), jnp.float32) * s).reshape(1, C)
    # LayerNorm init: weight=1, bias=0 (nn.LayerNorm default)
    ln1_w = jnp.ones((1, C), jnp.float32)
    ln1_b = jnp.zeros((1, C), jnp.float32)
    ln2_w = jnp.ones((1, C), jnp.float32)
    ln2_b = jnp.zeros((1, C), jnp.float32)
    return (ln1_w, ln1_b, wqkv, bqkv, wproj, bproj,
            ln2_w, ln2_b, wfc, bfc, wfc2, bfc2)


if __name__ == "__main__":
    B, T, C, n_head = 2, 8, 32, 4     # small shapes consistent with the module

    key = jax.random.PRNGKey(0)
    kx, kp = jax.random.split(key)
    x = jax.random.normal(kx, (B, T, C), jnp.float32)
    params = make_params(kp, C)

    out = jax.block_until_ready(block_forward(x, params, n_head))

    ref = block_reference(x, params, n_head)
    assert out.shape == (B, T, C)
    err = jnp.max(jnp.abs(out - ref))
    # bf16 matmul inputs (f32 accumulation) => relaxed tolerance vs f32 reference
    assert jnp.allclose(out, ref, atol=1e-2, rtol=1e-2), f"max abs err {err}"

    print("KERNEL_OK")
</pallas_src>

<mosaic_0001>
module attributes {stable_mosaic.version = 11 : i64} {
  func.func @qkv_kernel(%arg0: i32, %arg1: i32, %arg2: memref<1x8x32xf32, #tpu.memory_space<vmem>>, %arg3: memref<1x32xf32, #tpu.memory_space<vmem>>, %arg4: memref<1x32xf32, #tpu.memory_space<vmem>>, %arg5: memref<32x96xbf16, #tpu.memory_space<vmem>>, %arg6: memref<1x96xf32, #tpu.memory_space<vmem>>, %arg7: memref<1x4x8x8xbf16, #tpu.memory_space<vmem>>, %arg8: memref<1x4x8x8xbf16, #tpu.memory_space<vmem>>, %arg9: memref<1x4x8x8xbf16, #tpu.memory_space<vmem>>) attributes {dimension_semantics = [#tpu.dimension_semantics<parallel>, #tpu.dimension_semantics<parallel>], iteration_bounds = array<i64: 2, 1>, scalar_prefetch = 0 : i64, scratch_operands = 0 : i64, tpu.core_type = #tpu.core_type<tc>, window_params = [{transform_indices = @transform_0, window_bounds = array<i64: 1, 8, 32>}, {pipeline_mode = #tpu.pipeline_mode<synchronous>, transform_indices = @transform_1, window_bounds = array<i64: 1, 32>}, {pipeline_mode = #tpu.pipeline_mode<synchronous>, transform_indices = @transform_2, window_bounds = array<i64: 1, 32>}, {pipeline_mode = #tpu.pipeline_mode<synchronous>, transform_indices = @transform_3, window_bounds = array<i64: 32, 96>}, {pipeline_mode = #tpu.pipeline_mode<synchronous>, transform_indices = @transform_4, window_bounds = array<i64: 1, 96>}, {transform_indices = @transform_5, window_bounds = array<i64: 1, 4, 8, 8>}, {transform_indices = @transform_6, window_bounds = array<i64: 1, 4, 8, 8>}, {transform_indices = @transform_7, window_bounds = array<i64: 1, 4, 8, 8>}]} {
    %c0 = arith.constant 0 : index
    %c0_0 = arith.constant 0 : index
    %c0_1 = arith.constant 0 : index
    %0 = vector.load %arg2[%c0, %c0_0, %c0_1] : memref<1x8x32xf32, #tpu.memory_space<vmem>>, vector<1x8x32xf32>
    %1 = vector.shape_cast %0 : vector<1x8x32xf32> to vector<8x32xf32>
    %c0_2 = arith.constant 0 : index
    %c0_3 = arith.constant 0 : index
    %2 = vector.load %arg3[%c0_2, %c0_3] : memref<1x32xf32, #tpu.memory_space<vmem>>, vector<1x32xf32>
    %c0_4 = arith.constant 0 : index
    %c0_5 = arith.constant 0 : index
    %3 = vector.load %arg4[%c0_4, %c0_5] : memref<1x32xf32, #tpu.memory_space<vmem>>, vector<1x32xf32>
    %cst = arith.constant dense<0.000000e+00> : vector<8xf32>
    %4 = vector.multi_reduction <add>, %1, %cst [1] : vector<8x32xf32> to vector<8xf32>
    %5 = vector.shape_cast %4 : vector<8xf32> to vector<8x1xf32>
    %cst_6 = arith.constant 3.200000e+01 : f32
    %6 = vector.broadcast %cst_6 : f32 to vector<8x1xf32>
    %7 = arith.divf %5, %6 : vector<8x1xf32>
    %8 = vector.broadcast %7 : vector<8x1xf32> to vector<8x32xf32>
    %9 = arith.subf %1, %8 : vector<8x32xf32>
    %10 = arith.mulf %9, %9 : vector<8x32xf32>
    %cst_7 = arith.constant dense<0.000000e+00> : vector<8xf32>
    %11 = vector.multi_reduction <add>, %10, %cst_7 [1] : vector<8x32xf32> to vector<8xf32>
    %12 = vector.shape_cast %11 : vector<8xf32> to vector<8x1xf32>
    %cst_8 = arith.constant 3.200000e+01 : f32
    %13 = vector.broadcast %cst_8 : f32 to vector<8x1xf32>
    %14 = arith.divf %12, %13 : vector<8x1xf32>
    %15 = vector.broadcast %7 : vector<8x1xf32> to vector<8x32xf32>
    %16 = arith.subf %1, %15 : vector<8x32xf32>
    %cst_9 = arith.constant 9.99999974E-6 : f32
    %17 = vector.broadcast %cst_9 : f32 to vector<8x1xf32>
    %18 = arith.addf %14, %17 : vector<8x1xf32>
    %19 = math.rsqrt %18 : vector<8x1xf32>
    %20 = vector.broadcast %19 : vector<8x1xf32> to vector<8x32xf32>
    %21 = arith.mulf %16, %20 : vector<8x32xf32>
    %22 = vector.broadcast %2 : vector<1x32xf32> to vector<8x32xf32>
    %23 = arith.mulf %21, %22 : vector<8x32xf32>
    %24 = vector.broadcast %3 : vector<1x32xf32> to vector<8x32xf32>
    %25 = arith.addf %23, %24 : vector<8x32xf32>
    %26 = arith.truncf %25 : vector<8x32xf32> to vector<8x32xbf16>
    %c0_10 = arith.constant 0 : index
    %c0_11 = arith.constant 0 : index
    %27 = vector.load %arg5[%c0_10, %c0_11] : memref<32x96xbf16, #tpu.memory_space<vmem>>, vector<32x96xbf16>
    %cst_12 = arith.constant dense<0.000000e+00> : vector<8x96xf32>
    %28 = tpu.matmul %26, %27, %cst_12 {dimension_numbers = #tpu.dot_dimension_numbers<[1], [0], [0], [1], [0, 0, 1, 1], [], []>} : vector<8x32xbf16>, vector<32x96xbf16>, vector<8x96xf32> -> vector<8x96xf32>
    %c0_13 = arith.constant 0 : index
    %c0_14 = arith.constant 0 : index
    %29 = vector.load %arg6[%c0_13, %c0_14] : memref<1x96xf32, #tpu.memory_space<vmem>>, vector<1x96xf32>
    %30 = vector.broadcast %29 : vector<1x96xf32> to vector<8x96xf32>
    %31 = arith.addf %28, %30 : vector<8x96xf32>
    %32 = vector.extract_strided_slice %31 {offsets = [0, 0], sizes = [8, 32], strides = [1, 1]} : vector<8x96xf32> to vector<8x32xf32>
    %33 = vector.shape_cast %32 : vector<8x32xf32> to vector<8x4x8xf32>
    %34 = tpu.transpose %33, [1, 0, 2] : vector<8x4x8xf32> -> vector<4x8x8xf32>
    %35 = arith.truncf %34 : vector<4x8x8xf32> to vector<4x8x8xbf16>
    %c0_15 = arith.constant 0 : index
    %c0_16 = arith.constant 0 : index
    %c0_17 = arith.constant 0 : index
    %c0_18 = arith.constant 0 : index
    %36 = vector.load %arg7[%c0_15, %c0_16, %c0_17, %c0_18] : memref<1x4x8x8xbf16, #tpu.memory_space<vmem>>, vector<1x4x8x8xbf16>
    %37 = vector.shape_cast %36 : vector<1x4x8x8xbf16> to vector<4x8x8xbf16>
    %38 = vector.shape_cast %35 : vector<4x8x8xbf16> to vector<1x4x8x8xbf16>
    tpu.vector_store %arg7[%c0_15, %c0_16, %c0_17, %c0_18], %38 {strides = array<i32>} : memref<1x4x8x8xbf16, #tpu.memory_space<vmem>>, vector<1x4x8x8xbf16>,
    %39 = vector.extract_strided_slice %31 {offsets = [0, 32], sizes = [8, 32], strides = [1, 1]} : vector<8x96xf32> to vector<8x32xf32>
    %40 = vector.shape_cast %39 : vector<8x32xf32> to vector<8x4x8xf32>
    %41 = tpu.transpose %40, [1, 0, 2] : vector<8x4x8xf32> -> vector<4x8x8xf32>
    %42 = arith.truncf %41 : vector<4x8x8xf32> to vector<4x8x8xbf16>
    %c0_19 = arith.constant 0 : index
    %c0_20 = arith.constant 0 : index
    %c0_21 = arith.constant 0 : index
    %c0_22 = arith.constant 0 : index
    %43 = vector.load %arg8[%c0_19, %c0_20, %c0_21, %c0_22] : memref<1x4x8x8xbf16, #tpu.memory_space<vmem>>, vector<1x4x8x8xbf16>
    %44 = vector.shape_cast %43 : vector<1x4x8x8xbf16> to vector<4x8x8xbf16>
    %45 = vector.shape_cast %42 : vector<4x8x8xbf16> to vector<1x4x8x8xbf16>
    tpu.vector_store %arg8[%c0_19, %c0_20, %c0_21, %c0_22], %45 {strides = array<i32>} : memref<1x4x8x8xbf16, #tpu.memory_space<vmem>>, vector<1x4x8x8xbf16>,
    %46 = vector.extract_strided_slice %31 {offsets = [0, 64], sizes = [8, 32], strides = [1, 1]} : vector<8x96xf32> to vector<8x32xf32>
    %47 = vector.shape_cast %46 : vector<8x32xf32> to vector<8x4x8xf32>
    %48 = tpu.transpose %47, [1, 0, 2] : vector<8x4x8xf32> -> vector<4x8x8xf32>
    %49 = arith.truncf %48 : vector<4x8x8xf32> to vector<4x8x8xbf16>
    %c0_23 = arith.constant 0 : index
    %c0_24 = arith.constant 0 : index
    %c0_25 = arith.constant 0 : index
    %c0_26 = arith.constant 0 : index
    %50 = vector.load %arg9[%c0_23, %c0_24, %c0_25, %c0_26] : memref<1x4x8x8xbf16, #tpu.memory_space<vmem>>, vector<1x4x8x8xbf16>
    %51 = vector.shape_cast %50 : vector<1x4x8x8xbf16> to vector<4x8x8xbf16>
    %52 = vector.shape_cast %49 : vector<4x8x8xbf16> to vector<1x4x8x8xbf16>
    tpu.vector_store %arg9[%c0_23, %c0_24, %c0_25, %c0_26], %52 {strides = array<i32>} : memref<1x4x8x8xbf16, #tpu.memory_space<vmem>>, vector<1x4x8x8xbf16>,
    return
  }
  func.func @transform_0(%arg0: i32, %arg1: i32) -> (i32, i32, i32) {
    %c0_i32 = arith.constant 0 : i32
    %c0_i32_0 = arith.constant 0 : i32
    return %arg0, %arg1, %c0_i32 : i32, i32, i32
  }
  func.func @transform_1(%arg0: i32, %arg1: i32) -> (i32, i32) {
    %c0_i32 = arith.constant 0 : i32
    %c0_i32_0 = arith.constant 0 : i32
    %c0_i32_1 = arith.constant 0 : i32
    return %c0_i32, %c0_i32_0 : i32, i32
  }
  func.func @transform_2(%arg0: i32, %arg1: i32) -> (i32, i32) {
    %c0_i32 = arith.constant 0 : i32
    %c0_i32_0 = arith.constant 0 : i32
    %c0_i32_1 = arith.constant 0 : i32
    return %c0_i32, %c0_i32_0 : i32, i32
  }
  func.func @transform_3(%arg0: i32, %arg1: i32) -> (i32, i32) {
    %c0_i32 = arith.constant 0 : i32
    %c0_i32_0 = arith.constant 0 : i32
    %c0_i32_1 = arith.constant 0 : i32
    return %c0_i32, %c0_i32_0 : i32, i32
  }
  func.func @transform_4(%arg0: i32, %arg1: i32) -> (i32, i32) {
    %c0_i32 = arith.constant 0 : i32
    %c0_i32_0 = arith.constant 0 : i32
    %c0_i32_1 = arith.constant 0 : i32
    return %c0_i32, %c0_i32_0 : i32, i32
  }
  func.func @transform_5(%arg0: i32, %arg1: i32) -> (i32, i32, i32, i32) {
    %c0_i32 = arith.constant 0 : i32
    %c0_i32_0 = arith.constant 0 : i32
    %c0_i32_1 = arith.constant 0 : i32
    return %arg0, %c0_i32, %arg1, %c0_i32_0 : i32, i32, i32, i32
  }
  func.func @transform_6(%arg0: i32, %arg1: i32) -> (i32, i32, i32, i32) {
    %c0_i32 = arith.constant 0 : i32
    %c0_i32_0 = arith.constant 0 : i32
    %c0_i32_1 = arith.constant 0 : i32
    return %arg0, %c0_i32, %arg1, %c0_i32_0 : i32, i32, i32, i32
  }
  func.func @transform_7(%arg0: i32, %arg1: i32) -> (i32, i32, i32, i32) {
    %c0_i32 = arith.constant 0 : i32
    %c0_i32_0 = arith.constant 0 : i32
    %c0_i32_1 = arith.constant 0 : i32
    return %arg0, %c0_i32, %arg1, %c0_i32_0 : i32, i32, i32, i32
  }
}

module attributes {stable_mosaic.version = 11 : i64} {
  func.func @attn_mlp_kernel(%arg0: i32, %arg1: i32, %arg2: memref<1xi32, #tpu.memory_space<smem>>, %arg3: memref<1xi32, #tpu.memory_space<smem>>, %arg4: memref<1x8x32xf32, #tpu.memory_space<vmem>>, %arg5: memref<1x4x8x8xbf16, #tpu.memory_space<vmem>>, %arg6: memref<1x4x8x8xbf16, #tpu.memory_space<vmem>>, %arg7: memref<1x4x8x8xbf16, #tpu.memory_space<vmem>>, %arg8: memref<32x32xbf16, #tpu.memory_space<vmem>>, %arg9: memref<1x32xf32, #tpu.memory_space<vmem>>, %arg10: memref<1x32xf32, #tpu.memory_space<vmem>>, %arg11: memref<1x32xf32, #tpu.memory_space<vmem>>, %arg12: memref<32x128xbf16, #tpu.memory_space<vmem>>, %arg13: memref<1x128xf32, #tpu.memory_space<vmem>>, %arg14: memref<128x32xbf16, #tpu.memory_space<vmem>>, %arg15: memref<1x32xf32, #tpu.memory_space<vmem>>, %arg16: memref<1x8x32xf32, #tpu.memory_space<vmem>>, %arg17: memref<4x8x1xf32, #tpu.memory_space<vmem>>, %arg18: memref<4x8x1xf32, #tpu.memory_space<vmem>>, %arg19: memref<4x8x8xf32, #tpu.memory_space<vmem>>) attributes {dimension_semantics = [#tpu.dimension_semantics<parallel>, #tpu.dimension_semantics<arbitrary>], iteration_bounds = array<i64: 2, 1>, scalar_prefetch = 2 : i64, scratch_operands = 3 : i64, tpu.core_type = #tpu.core_type<tc>, window_params = [{transform_indices = @transform_0, window_bounds = array<i64: 1, 8, 32>}, {transform_indices = @transform_1, window_bounds = array<i64: 1, 4, 8, 8>}, {transform_indices = @transform_2, window_bounds = array<i64: 1, 4, 8, 8>}, {transform_indices = @transform_3, window_bounds = array<i64: 1, 4, 8, 8>}, {pipeline_mode = #tpu.pipeline_mode<synchronous>, transform_indices = @transform_4, window_bounds = array<i64: 32, 32>}, {pipeline_mode = #tpu.pipeline_mode<synchronous>, transform_indices = @transform_5, window_bounds = array<i64: 1, 32>}, {pipeline_mode = #tpu.pipeline_mode<synchronous>, transform_indices = @transform_6, window_bounds = array<i64: 1, 32>}, {pipeline_mode = #tpu.pipeline_mode<synchronous>, transform_indices = @transform_7, window_bounds = array<i64: 1, 32>}, {pipeline_mode = #tpu.pipeline_mode<synchronous>, transform_indices = @transform_8, window_bounds = array<i64: 32, 128>}, {pipeline_mode = #tpu.pipeline_mode<synchronous>, transform_indices = @transform_9, window_bounds = array<i64: 1, 128>}, {pipeline_mode = #tpu.pipeline_mode<synchronous>, transform_indices = @transform_10, window_bounds = array<i64: 128, 32>}, {pipeline_mode = #tpu.pipeline_mode<synchronous>, transform_indices = @transform_11, window_bounds = array<i64: 1, 32>}, {transform_indices = @transform_12, window_bounds = array<i64: 1, 8, 32>}]} {
    %0 = arith.index_cast %arg1 : i32 to index
    %1 = memref.load %arg2[%0] : memref<1xi32, #tpu.memory_space<smem>>
    %2 = arith.index_cast %arg1 : i32 to index
    %3 = memref.load %arg3[%2] : memref<1xi32, #tpu.memory_space<smem>>
    %c0_i32 = arith.constant 0 : i32
    %4 = arith.cmpi eq, %3, %c0_i32 : i32
    %5 = arith.extui %4 : i1 to i32
    %c0_i32_0 = arith.constant 0 : i32
    %6 = arith.cmpi ne, %5, %c0_i32_0 : i32
    scf.if %6 {
      %cst = arith.constant -1.000000e+30 : f32
      %19 = vector.broadcast %cst : f32 to vector<4x8x1xf32>
      %c0_14 = arith.constant 0 : index
      %c0_15 = arith.constant 0 : index
      %c0_16 = arith.constant 0 : index
      %20 = vector.load %arg17[%c0_14, %c0_15, %c0_16] : memref<4x8x1xf32, #tpu.memory_space<vmem>>, vector<4x8x1xf32>
      tpu.vector_store %arg17[%c0_14, %c0_15, %c0_16], %19 {strides = array<i32>} : memref<4x8x1xf32, #tpu.memory_space<vmem>>, vector<4x8x1xf32>,
      %cst_17 = arith.constant 0.000000e+00 : f32
      %21 = vector.broadcast %cst_17 : f32 to vector<4x8x1xf32>
      %c0_18 = arith.constant 0 : index
      %c0_19 = arith.constant 0 : index
      %c0_20 = arith.constant 0 : index
      %22 = vector.load %arg18[%c0_18, %c0_19, %c0_20] : memref<4x8x1xf32, #tpu.memory_space<vmem>>, vector<4x8x1xf32>
      tpu.vector_store %arg18[%c0_18, %c0_19, %c0_20], %21 {strides = array<i32>} : memref<4x8x1xf32, #tpu.memory_space<vmem>>, vector<4x8x1xf32>,
      %cst_21 = arith.constant 0.000000e+00 : f32
      %23 = vector.broadcast %cst_21 : f32 to vector<4x8x8xf32>
      %c0_22 = arith.constant 0 : index
      %c0_23 = arith.constant 0 : index
      %c0_24 = arith.constant 0 : index
      %24 = vector.load %arg19[%c0_22, %c0_23, %c0_24] : memref<4x8x8xf32, #tpu.memory_space<vmem>>, vector<4x8x8xf32>
      tpu.vector_store %arg19[%c0_22, %c0_23, %c0_24], %23 {strides = array<i32>} : memref<4x8x8xf32, #tpu.memory_space<vmem>>, vector<4x8x8xf32>,
    } else {
    }
    %c0 = arith.constant 0 : index
    %c0_1 = arith.constant 0 : index
    %c0_2 = arith.constant 0 : index
    %c0_3 = arith.constant 0 : index
    %7 = vector.load %arg5[%c0, %c0_1, %c0_2, %c0_3] : memref<1x4x8x8xbf16, #tpu.memory_space<vmem>>, vector<1x4x8x8xbf16>
    %8 = vector.shape_cast %7 : vector<1x4x8x8xbf16> to vector<4x8x8xbf16>
    %c0_4 = arith.constant 0 : index
    %c0_5 = arith.constant 0 : index
    %c0_6 = arith.constant 0 : index
    %c0_7 = arith.constant 0 : index
    %9 = vector.load %arg6[%c0_4, %c0_5, %c0_6, %c0_7] : memref<1x4x8x8xbf16, #tpu.memory_space<vmem>>, vector<1x4x8x8xbf16>
    %10 = vector.shape_cast %9 : vector<1x4x8x8xbf16> to vector<4x8x8xbf16>
    %c0_8 = arith.constant 0 : index
    %c0_9 = arith.constant 0 : index
    %c0_10 = arith.constant 0 : index
    %c0_11 = arith.constant 0 : index
    %11 = vector.load %arg7[%c0_8, %c0_9, %c0_10, %c0_11] : memref<1x4x8x8xbf16, #tpu.memory_space<vmem>>, vector<1x4x8x8xbf16>
    %12 = vector.shape_cast %11 : vector<1x4x8x8xbf16> to vector<4x8x8xbf16>
    %13 = arith.cmpi slt, %3, %1 : i32
    %14 = arith.extui %13 : i1 to i32
    %c0_i32_12 = arith.constant 0 : i32
    %15 = arith.cmpi ne, %14, %c0_i32_12 : i32
    scf.if %15 {
      %cst = arith.constant dense<0.000000e+00> : vector<4x8x8xf32>
      %19 = tpu.matmul %8, %10, %cst {dimension_numbers = #tpu.dot_dimension_numbers<[2], [2], [1], [1], [0, 0, 0, 1, 1, 1], [0], [0]>} : vector<4x8x8xbf16>, vector<4x8x8xbf16>, vector<4x8x8xf32> -> vector<4x8x8xf32>
      %c0_14 = arith.constant 0 : index
      %c0_15 = arith.constant 0 : index
      %c0_16 = arith.constant 0 : index
      %20 = vector.load %arg17[%c0_14, %c0_15, %c0_16] : memref<4x8x1xf32, #tpu.memory_space<vmem>>, vector<4x8x1xf32>
      %cst_17 = arith.constant dense<0xFF800000> : vector<4x8xf32>
      %21 = vector.multi_reduction <maximumf>, %19, %cst_17 [2] : vector<4x8x8xf32> to vector<4x8xf32>
      %22 = vector.shape_cast %21 : vector<4x8xf32> to vector<4x8x1xf32>
      %23 = arith.maximumf %20, %22 : vector<4x8x1xf32>
      %24 = arith.subf %20, %23 : vector<4x8x1xf32>
      %25 = math.exp %24 : vector<4x8x1xf32>
      %26 = vector.broadcast %23 : vector<4x8x1xf32> to vector<4x8x8xf32>
      %27 = arith.subf %19, %26 : vector<4x8x8xf32>
      %28 = math.exp %27 : vector<4x8x8xf32>
      %c0_18 = arith.constant 0 : index
      %c0_19 = arith.constant 0 : index
      %c0_20 = arith.constant 0 : index
      %29 = vector.load %arg18[%c0_18, %c0_19, %c0_20] : memref<4x8x1xf32, #tpu.memory_space<vmem>>, vector<4x8x1xf32>
      %30 = arith.mulf %25, %29 : vector<4x8x1xf32>
      %cst_21 = arith.constant dense<0.000000e+00> : vector<4x8xf32>
      %31 = vector.multi_reduction <add>, %28, %cst_21 [2] : vector<4x8x8xf32> to vector<4x8xf32>
      %32 = vector.shape_cast %31 : vector<4x8xf32> to vector<4x8x1xf32>
      %33 = arith.addf %30, %32 : vector<4x8x1xf32>
      %c0_22 = arith.constant 0 : index
      %c0_23 = arith.constant 0 : index
      %c0_24 = arith.constant 0 : index
      %34 = vector.load %arg18[%c0_22, %c0_23, %c0_24] : memref<4x8x1xf32, #tpu.memory_space<vmem>>, vector<4x8x1xf32>
      tpu.vector_store %arg18[%c0_22, %c0_23, %c0_24], %33 {strides = array<i32>} : memref<4x8x1xf32, #tpu.memory_space<vmem>>, vector<4x8x1xf32>,
      %c0_25 = arith.constant 0 : index
      %c0_26 = arith.constant 0 : index
      %c0_27 = arith.constant 0 : index
      %35 = vector.load %arg19[%c0_25, %c0_26, %c0_27] : memref<4x8x8xf32, #tpu.memory_space<vmem>>, vector<4x8x8xf32>
      %36 = vector.broadcast %25 : vector<4x8x1xf32> to vector<4x8x8xf32>
      %37 = arith.mulf %36, %35 : vector<4x8x8xf32>
      %38 = arith.truncf %28 : vector<4x8x8xf32> to vector<4x8x8xbf16>
      %cst_28 = arith.constant dense<0.000000e+00> : vector<4x8x8xf32>
      %39 = tpu.matmul %38, %12, %cst_28 {dimension_numbers = #tpu.dot_dimension_numbers<[2], [1], [1], [2], [0, 0, 0, 1, 1, 2], [0], [0]>} : vector<4x8x8xbf16>, vector<4x8x8xbf16>, vector<4x8x8xf32> -> vector<4x8x8xf32>
      %40 = arith.addf %37, %39 : vector<4x8x8xf32>
      %c0_29 = arith.constant 0 : index
      %c0_30 = arith.constant 0 : index
      %c0_31 = arith.constant 0 : index
      %41 = vector.load %arg19[%c0_29, %c0_30, %c0_31] : memref<4x8x8xf32, #tpu.memory_space<vmem>>, vector<4x8x8xf32>
      tpu.vector_store %arg19[%c0_29, %c0_30, %c0_31], %40 {strides = array<i32>} : memref<4x8x8xf32, #tpu.memory_space<vmem>>, vector<4x8x8xf32>,
      %c0_32 = arith.constant 0 : index
      %c0_33 = arith.constant 0 : index
      %c0_34 = arith.constant 0 : index
      %42 = vector.load %arg17[%c0_32, %c0_33, %c0_34] : memref<4x8x1xf32, #tpu.memory_space<vmem>>, vector<4x8x1xf32>
      tpu.vector_store %arg17[%c0_32, %c0_33, %c0_34], %23 {strides = array<i32>} : memref<4x8x1xf32, #tpu.memory_space<vmem>>, vector<4x8x1xf32>,
    } else {
    }
    %16 = arith.cmpi eq, %3, %1 : i32
    %17 = arith.extui %16 : i1 to i32
    %c0_i32_13 = arith.constant 0 : i32
    %18 = arith.cmpi ne, %17, %c0_i32_13 : i32
    scf.if %18 {
      %cst = arith.constant dense<0.000000e+00> : vector<4x8x8xf32>
      %19 = tpu.matmul %8, %10, %cst {dimension_numbers = #tpu.dot_dimension_numbers<[2], [2], [1], [1], [0, 0, 0, 1, 1, 1], [0], [0]>} : vector<4x8x8xbf16>, vector<4x8x8xbf16>, vector<4x8x8xf32> -> vector<4x8x8xf32>
      %20 = tpu.iota {dimensions = array<i32: 0>} : vector<8x8xi32>
      %21 = tpu.iota {dimensions = array<i32: 1>} : vector<8x8xi32>
      %22 = arith.cmpi sge, %20, %21 : vector<8x8xi32>
      %23 = vector.shape_cast %22 : vector<8x8xi1> to vector<1x8x8xi1>
      %cst_14 = arith.constant -1.000000e+30 : f32
      %24 = vector.shape_cast %23 : vector<1x8x8xi1> to vector<1x8x8xi1>
      %25 = vector.broadcast %24 : vector<1x8x8xi1> to vector<4x8x8xi1>
      %26 = vector.broadcast %cst_14 : f32 to vector<4x8x8xf32>
      %27 = arith.select %25, %19, %26 : vector<4x8x8xi1>, vector<4x8x8xf32>
      %c0_15 = arith.constant 0 : index
      %c0_16 = arith.constant 0 : index
      %c0_17 = arith.constant 0 : index
      %28 = vector.load %arg17[%c0_15, %c0_16, %c0_17] : memref<4x8x1xf32, #tpu.memory_space<vmem>>, vector<4x8x1xf32>
      %cst_18 = arith.constant dense<0xFF800000> : vector<4x8xf32>
      %29 = vector.multi_reduction <maximumf>, %27, %cst_18 [2] : vector<4x8x8xf32> to vector<4x8xf32>
      %30 = vector.shape_cast %29 : vector<4x8xf32> to vector<4x8x1xf32>
      %31 = arith.maximumf %28, %30 : vector<4x8x1xf32>
      %32 = arith.subf %28, %31 : vector<4x8x1xf32>
      %33 = math.exp %32 : vector<4x8x1xf32>
      %34 = vector.broadcast %31 : vector<4x8x1xf32> to vector<4x8x8xf32>
      %35 = arith.subf %27, %34 : vector<4x8x8xf32>
      %36 = math.exp %35 : vector<4x8x8xf32>
      %c0_19 = arith.constant 0 : index
      %c0_20 = arith.constant 0 : index
      %c0_21 = arith.constant 0 : index
      %37 = vector.load %arg18[%c0_19, %c0_20, %c0_21] : memref<4x8x1xf32, #tpu.memory_space<vmem>>, vector<4x8x1xf32>
      %38 = arith.mulf %33, %37 : vector<4x8x1xf32>
      %cst_22 = arith.constant dense<0.000000e+00> : vector<4x8xf32>
      %39 = vector.multi_reduction <add>, %36, %cst_22 [2] : vector<4x8x8xf32> to vector<4x8xf32>
      %40 = vector.shape_cast %39 : vector<4x8xf32> to vector<4x8x1xf32>
      %41 = arith.addf %38, %40 : vector<4x8x1xf32>
      %c0_23 = arith.constant 0 : index
      %c0_24 = arith.constant 0 : index
      %c0_25 = arith.constant 0 : index
      %42 = vector.load %arg18[%c0_23, %c0_24, %c0_25] : memref<4x8x1xf32, #tpu.memory_space<vmem>>, vector<4x8x1xf32>
      tpu.vector_store %arg18[%c0_23, %c0_24, %c0_25], %41 {strides = array<i32>} : memref<4x8x1xf32, #tpu.memory_space<vmem>>, vector<4x8x1xf32>,
      %c0_26 = arith.constant 0 : index
      %c0_27 = arith.constant 0 : index
      %c0_28 = arith.constant 0 : index
      %43 = vector.load %arg19[%c0_26, %c0_27, %c0_28] : memref<4x8x8xf32, #tpu.memory_space<vmem>>, vector<4x8x8xf32>
      %44 = vector.broadcast %33 : vector<4x8x1xf32> to vector<4x8x8xf32>
      %45 = arith.mulf %44, %43 : vector<4x8x8xf32>
      %46 = arith.truncf %36 : vector<4x8x8xf32> to vector<4x8x8xbf16>
      %cst_29 = arith.constant dense<0.000000e+00> : vector<4x8x8xf32>
      %47 = tpu.matmul %46, %12, %cst_29 {dimension_numbers = #tpu.dot_dimension_numbers<[2], [1], [1], [2], [0, 0, 0, 1, 1, 2], [0], [0]>} : vector<4x8x8xbf16>, vector<4x8x8xbf16>, vector<4x8x8xf32> -> vector<4x8x8xf32>
      %48 = arith.addf %45, %47 : vector<4x8x8xf32>
      %c0_30 = arith.constant 0 : index
      %c0_31 = arith.constant 0 : index
      %c0_32 = arith.constant 0 : index
      %49 = vector.load %arg19[%c0_30, %c0_31, %c0_32] : memref<4x8x8xf32, #tpu.memory_space<vmem>>, vector<4x8x8xf32>
      tpu.vector_store %arg19[%c0_30, %c0_31, %c0_32], %48 {strides = array<i32>} : memref<4x8x8xf32, #tpu.memory_space<vmem>>, vector<4x8x8xf32>,
      %c0_33 = arith.constant 0 : index
      %c0_34 = arith.constant 0 : index
      %c0_35 = arith.constant 0 : index
      %50 = vector.load %arg17[%c0_33, %c0_34, %c0_35] : memref<4x8x1xf32, #tpu.memory_space<vmem>>, vector<4x8x1xf32>
      tpu.vector_store %arg17[%c0_33, %c0_34, %c0_35], %31 {strides = array<i32>} : memref<4x8x1xf32, #tpu.memory_space<vmem>>, vector<4x8x1xf32>,
      %c0_36 = arith.constant 0 : index
      %c0_37 = arith.constant 0 : index
      %c0_38 = arith.constant 0 : index
      %51 = vector.load %arg18[%c0_36, %c0_37, %c0_38] : memref<4x8x1xf32, #tpu.memory_space<vmem>>, vector<4x8x1xf32>
      %52 = tpu.reciprocal %51 {approx = true} : vector<4x8x1xf32> -> vector<4x8x1xf32>
      %c0_39 = arith.constant 0 : index
      %c0_40 = arith.constant 0 : index
      %c0_41 = arith.constant 0 : index
      %53 = vector.load %arg19[%c0_39, %c0_40, %c0_41] : memref<4x8x8xf32, #tpu.memory_space<vmem>>, vector<4x8x8xf32>
      %54 = vector.broadcast %52 : vector<4x8x1xf32> to vector<4x8x8xf32>
      %55 = arith.mulf %53, %54 : vector<4x8x8xf32>
      %56 = tpu.transpose %55, [1, 0, 2] : vector<4x8x8xf32> -> vector<8x4x8xf32>
      %57 = vector.shape_cast %56 : vector<8x4x8xf32> to vector<8x32xf32>
      %58 = arith.truncf %57 : vector<8x32xf32> to vector<8x32xbf16>
      %c0_42 = arith.constant 0 : index
      %c0_43 = arith.constant 0 : index
      %59 = vector.load %arg8[%c0_42, %c0_43] : memref<32x32xbf16, #tpu.memory_space<vmem>>, vector<32x32xbf16>
      %cst_44 = arith.constant dense<0.000000e+00> : vector<8x32xf32>
      %60 = tpu.matmul %58, %59, %cst_44 {dimension_numbers = #tpu.dot_dimension_numbers<[1], [0], [0], [1], [0, 0, 1, 1], [], []>} : vector<8x32xbf16>, vector<32x32xbf16>, vector<8x32xf32> -> vector<8x32xf32>
      %c0_45 = arith.constant 0 : index
      %c0_46 = arith.constant 0 : index
      %61 = vector.load %arg9[%c0_45, %c0_46] : memref<1x32xf32, #tpu.memory_space<vmem>>, vector<1x32xf32>
      %62 = vector.broadcast %61 : vector<1x32xf32> to vector<8x32xf32>
      %63 = arith.addf %60, %62 : vector<8x32xf32>
      %c0_47 = arith.constant 0 : index
      %c0_48 = arith.constant 0 : index
      %c0_49 = arith.constant 0 : index
      %64 = vector.load %arg4[%c0_47, %c0_48, %c0_49] : memref<1x8x32xf32, #tpu.memory_space<vmem>>, vector<1x8x32xf32>
      %65 = vector.shape_cast %64 : vector<1x8x32xf32> to vector<8x32xf32>
      %66 = arith.addf %65, %63 : vector<8x32xf32>
      %c0_50 = arith.constant 0 : index
      %c0_51 = arith.constant 0 : index
      %67 = vector.load %arg10[%c0_50, %c0_51] : memref<1x32xf32, #tpu.memory_space<vmem>>, vector<1x32xf32>
      %c0_52 = arith.constant 0 : index
      %c0_53 = arith.constant 0 : index
      %68 = vector.load %arg11[%c0_52, %c0_53] : memref<1x32xf32, #tpu.memory_space<vmem>>, vector<1x32xf32>
      %cst_54 = arith.constant dense<0.000000e+00> : vector<8xf32>
      %69 = vector.multi_reduction <add>, %66, %cst_54 [1] : vector<8x32xf32> to vector<8xf32>
      %70 = vector.shape_cast %69 : vector<8xf32> to vector<8x1xf32>
      %cst_55 = arith.constant 3.200000e+01 : f32
      %71 = vector.broadcast %cst_55 : f32 to vector<8x1xf32>
      %72 = arith.divf %70, %71 : vector<8x1xf32>
      %73 = vector.broadcast %72 : vector<8x1xf32> to vector<8x32xf32>
      %74 = arith.subf %66, %73 : vector<8x32xf32>
      %75 = arith.mulf %74, %74 : vector<8x32xf32>
      %cst_56 = arith.constant dense<0.000000e+00> : vector<8xf32>
      %76 = vector.multi_reduction <add>, %75, %cst_56 [1] : vector<8x32xf32> to vector<8xf32>
      %77 = vector.shape_cast %76 : vector<8xf32> to vector<8x1xf32>
      %cst_57 = arith.constant 3.200000e+01 : f32
      %78 = vector.broadcast %cst_57 : f32 to vector<8x1xf32>
      %79 = arith.divf %77, %78 : vector<8x1xf32>
      %80 = vector.broadcast %72 : vector<8x1xf32> to vector<8x32xf32>
      %81 = arith.subf %66, %80 : vector<8x32xf32>
      %cst_58 = arith.constant 9.99999974E-6 : f32
      %82 = vector.broadcast %cst_58 : f32 to vector<8x1xf32>
      %83 = arith.addf %79, %82 : vector<8x1xf32>
      %84 = math.rsqrt %83 : vector<8x1xf32>
      %85 = vector.broadcast %84 : vector<8x1xf32> to vector<8x32xf32>
      %86 = arith.mulf %81, %85 : vector<8x32xf32>
      %87 = vector.broadcast %67 : vector<1x32xf32> to vector<8x32xf32>
      %88 = arith.mulf %86, %87 : vector<8x32xf32>
      %89 = vector.broadcast %68 : vector<1x32xf32> to vector<8x32xf32>
      %90 = arith.addf %88, %89 : vector<8x32xf32>
      %91 = arith.truncf %90 : vector<8x32xf32> to vector<8x32xbf16>
      %c0_59 = arith.constant 0 : index
      %c0_60 = arith.constant 0 : index
      %92 = vector.load %arg12[%c0_59, %c0_60] : memref<32x128xbf16, #tpu.memory_space<vmem>>, vector<32x128xbf16>
      %cst_61 = arith.constant dense<0.000000e+00> : vector<8x128xf32>
      %93 = tpu.matmul %91, %92, %cst_61 {dimension_numbers = #tpu.dot_dimension_numbers<[1], [0], [0], [1], [0, 0, 1, 1], [], []>} : vector<8x32xbf16>, vector<32x128xbf16>, vector<8x128xf32> -> vector<8x128xf32>
      %c0_62 = arith.constant 0 : index
      %c0_63 = arith.constant 0 : index
      %94 = vector.load %arg13[%c0_62, %c0_63] : memref<1x128xf32, #tpu.memory_space<vmem>>, vector<1x128xf32>
      %95 = vector.broadcast %94 : vector<1x128xf32> to vector<8x128xf32>
      %96 = arith.addf %93, %95 : vector<8x128xf32>
      %97 = arith.mulf %96, %96 : vector<8x128xf32>
      %98 = arith.mulf %96, %97 : vector<8x128xf32>
      %cst_64 = arith.constant 4.471500e-02 : f32
      %99 = vector.broadcast %cst_64 : f32 to vector<8x128xf32>
      %100 = arith.mulf %99, %98 : vector<8x128xf32>
      %101 = arith.addf %96, %100 : vector<8x128xf32>
      %cst_65 = arith.constant 0.797884583 : f32
      %102 = vector.broadcast %cst_65 : f32 to vector<8x128xf32>
      %103 = arith.mulf %102, %101 : vector<8x128xf32>
      %104 = math.tanh %103 : vector<8x128xf32>
      %cst_66 = arith.constant 1.000000e+00 : f32
      %105 = vector.broadcast %cst_66 : f32 to vector<8x128xf32>
      %106 = arith.addf %105, %104 : vector<8x128xf32>
      %cst_67 = arith.constant 5.000000e-01 : f32
      %107 = vector.broadcast %cst_67 : f32 to vector<8x128xf32>
      %108 = arith.mulf %107, %106 : vector<8x128xf32>
      %109 = arith.mulf %96, %108 : vector<8x128xf32>
      %110 = arith.truncf %109 : vector<8x128xf32> to vector<8x128xbf16>
      %c0_68 = arith.constant 0 : index
      %c0_69 = arith.constant 0 : index
      %111 = vector.load %arg14[%c0_68, %c0_69] : memref<128x32xbf16, #tpu.memory_space<vmem>>, vector<128x32xbf16>
      %cst_70 = arith.constant dense<0.000000e+00> : vector<8x32xf32>
      %112 = tpu.matmul %110, %111, %cst_70 {dimension_numbers = #tpu.dot_dimension_numbers<[1], [0], [0], [1], [0, 0, 1, 1], [], []>} : vector<8x128xbf16>, vector<128x32xbf16>, vector<8x32xf32> -> vector<8x32xf32>
      %c0_71 = arith.constant 0 : index
      %c0_72 = arith.constant 0 : index
      %113 = vector.load %arg15[%c0_71, %c0_72] : memref<1x32xf32, #tpu.memory_space<vmem>>, vector<1x32xf32>
      %114 = vector.broadcast %113 : vector<1x32xf32> to vector<8x32xf32>
      %115 = arith.addf %112, %114 : vector<8x32xf32>
      %116 = arith.addf %66, %115 : vector<8x32xf32>
      %c0_73 = arith.constant 0 : index
      %c0_74 = arith.constant 0 : index
      %c0_75 = arith.constant 0 : index
      %117 = vector.load %arg16[%c0_73, %c0_74, %c0_75] : memref<1x8x32xf32, #tpu.memory_space<vmem>>, vector<1x8x32xf32>
      %118 = vector.shape_cast %117 : vector<1x8x32xf32> to vector<8x32xf32>
      %119 = vector.shape_cast %116 : vector<8x32xf32> to vector<1x8x32xf32>
      tpu.vector_store %arg16[%c0_73, %c0_74, %c0_75], %119 {strides = array<i32>} : memref<1x8x32xf32, #tpu.memory_space<vmem>>, vector<1x8x32xf32>,
    } else {
    }
    return
  }
  func.func @transform_0(%arg0: i32, %arg1: i32, %arg2: memref<1xi32, #tpu.memory_space<smem>>, %arg3: memref<1xi32, #tpu.memory_space<smem>>) -> (i32, i32, i32) {
    %0 = arith.index_cast %arg1 : i32 to index
    %1 = memref.load %arg2[%0] : memref<1xi32, #tpu.memory_space<smem>>
    %c0_i32 = arith.constant 0 : i32
    %c0_i32_0 = arith.constant 0 : i32
    return %arg0, %1, %c0_i32 : i32, i32, i32
  }
  func.func @transform_1(%arg0: i32, %arg1: i32, %arg2: memref<1xi32, #tpu.memory_space<smem>>, %arg3: memref<1xi32, #tpu.memory_space<smem>>) -> (i32, i32, i32, i32) {
    %0 = arith.index_cast %arg1 : i32 to index
    %1 = memref.load %arg2[%0] : memref<1xi32, #tpu.memory_space<smem>>
    %c0_i32 = arith.constant 0 : i32
    %c0_i32_0 = arith.constant 0 : i32
    %c0_i32_1 = arith.constant 0 : i32
    return %arg0, %c0_i32, %1, %c0_i32_0 : i32, i32, i32, i32
  }
  func.func @transform_2(%arg0: i32, %arg1: i32, %arg2: memref<1xi32, #tpu.memory_space<smem>>, %arg3: memref<1xi32, #tpu.memory_space<smem>>) -> (i32, i32, i32, i32) {
    %0 = arith.index_cast %arg1 : i32 to index
    %1 = memref.load %arg3[%0] : memref<1xi32, #tpu.memory_space<smem>>
    %c0_i32 = arith.constant 0 : i32
    %c0_i32_0 = arith.constant 0 : i32
    %c0_i32_1 = arith.constant 0 : i32
    return %arg0, %c0_i32, %1, %c0_i32_0 : i32, i32, i32, i32
  }
  func.func @transform_3(%arg0: i32, %arg1: i32, %arg2: memref<1xi32, #tpu.memory_space<smem>>, %arg3: memref<1xi32, #tpu.memory_space<smem>>) -> (i32, i32, i32, i32) {
    %0 = arith.index_cast %arg1 : i32 to index
    %1 = memref.load %arg3[%0] : memref<1xi32, #tpu.memory_space<smem>>
    %c0_i32 = arith.constant 0 : i32
    %c0_i32_0 = arith.constant 0 : i32
    %c0_i32_1 = arith.constant 0 : i32
    return %arg0, %c0_i32, %1, %c0_i32_0 : i32, i32, i32, i32
  }
  func.func @transform_4(%arg0: i32, %arg1: i32, %arg2: memref<1xi32, #tpu.memory_space<smem>>, %arg3: memref<1xi32, #tpu.memory_space<smem>>) -> (i32, i32) {
    %c0_i32 = arith.constant 0 : i32
    %c0_i32_0 = arith.constant 0 : i32
    %c0_i32_1 = arith.constant 0 : i32
    return %c0_i32, %c0_i32_0 : i32, i32
  }
  func.func @transform_5(%arg0: i32, %arg1: i32, %arg2: memref<1xi32, #tpu.memory_space<smem>>, %arg3: memref<1xi32, #tpu.memory_space<smem>>) -> (i32, i32) {
    %c0_i32 = arith.constant 0 : i32
    %c0_i32_0 = arith.constant 0 : i32
    %c0_i32_1 = arith.constant 0 : i32
    return %c0_i32, %c0_i32_0 : i32, i32
  }
  func.func @transform_6(%arg0: i32, %arg1: i32, %arg2: memref<1xi32, #tpu.memory_space<smem>>, %arg3: memref<1xi32, #tpu.memory_space<smem>>) -> (i32, i32) {
    %c0_i32 = arith.constant 0 : i32
    %c0_i32_0 = arith.constant 0 : i32
    %c0_i32_1 = arith.constant 0 : i32
    return %c0_i32, %c0_i32_0 : i32, i32
  }
  func.func @transform_7(%arg0: i32, %arg1: i32, %arg2: memref<1xi32, #tpu.memory_space<smem>>, %arg3: memref<1xi32, #tpu.memory_space<smem>>) -> (i32, i32) {
    %c0_i32 = arith.constant 0 : i32
    %c0_i32_0 = arith.constant 0 : i32
    %c0_i32_1 = arith.constant 0 : i32
    return %c0_i32, %c0_i32_0 : i32, i32
  }
  func.func @transform_8(%arg0: i32, %arg1: i32, %arg2: memref<1xi32, #tpu.memory_space<smem>>, %arg3: memref<1xi32, #tpu.memory_space<smem>>) -> (i32, i32) {
    %c0_i32 = arith.constant 0 : i32
    %c0_i32_0 = arith.constant 0 : i32
    %c0_i32_1 = arith.constant 0 : i32
    return %c0_i32, %c0_i32_0 : i32, i32
  }
  func.func @transform_9(%arg0: i32, %arg1: i32, %arg2: memref<1xi32, #tpu.memory_space<smem>>, %arg3: memref<1xi32, #tpu.memory_space<smem>>) -> (i32, i32) {
    %c0_i32 = arith.constant 0 : i32
    %c0_i32_0 = arith.constant 0 : i32
    %c0_i32_1 = arith.constant 0 : i32
    return %c0_i32, %c0_i32_0 : i32, i32
  }
  func.func @transform_10(%arg0: i32, %arg1: i32, %arg2: memref<1xi32, #tpu.memory_space<smem>>, %arg3: memref<1xi32, #tpu.memory_space<smem>>) -> (i32, i32) {
    %c0_i32 = arith.constant 0 : i32
    %c0_i32_0 = arith.constant 0 : i32
    %c0_i32_1 = arith.constant 0 : i32
    return %c0_i32, %c0_i32_0 : i32, i32
  }
  func.func @transform_11(%arg0: i32, %arg1: i32, %arg2: memref<1xi32, #tpu.memory_space<smem>>, %arg3: memref<1xi32, #tpu.memory_space<smem>>) -> (i32, i32) {
    %c0_i32 = arith.constant 0 : i32
    %c0_i32_0 = arith.constant 0 : i32
    %c0_i32_1 = arith.constant 0 : i32
    return %c0_i32, %c0_i32_0 : i32, i32
  }
  func.func @transform_12(%arg0: i32, %arg1: i32, %arg2: memref<1xi32, #tpu.memory_space<smem>>, %arg3: memref<1xi32, #tpu.memory_space<smem>>) -> (i32, i32, i32) {
    %0 = arith.index_cast %arg1 : i32 to index
    %1 = memref.load %arg2[%0] : memref<1xi32, #tpu.memory_space<smem>>
    %c0_i32 = arith.constant 0 : i32
    %c0_i32_0 = arith.constant 0 : i32
    return %arg0, %1, %c0_i32 : i32, i32, i32
  }
}

</mosaic_0001>

<llo_original>
// kernel: mul.9
$region0: #{mul.9}
  #allocation0 [shape = 's32[1]{0}', space=sflag, size = 0x4, scoped, tag = 'scoped memory for mul.9']
  %s0 = inlined_call_operand.vmem [shape: f32[1,96], index: 0, kind: input, shape index: {}]
  %s1 = inlined_call_operand.vmem [shape: f32[1,96], index: 1, kind: input, shape index: {}]
  %s2 = inlined_call_operand.vmem [shape: f32[1,96], index: 2, kind: output, shape index: {}]
  %v3 = vld [vmem:[%s0] sm:$0x1]
  %v4 = vld [vmem:[%s1] sm:$0x1]
  %5 = xla_tuple %v3, %v4
  %6 = xla_tuple %5
  %v7 = vmul.f32 %v3, %v4
  %8 = xla_tuple %v7
  %9 = vst [vmem:[%s2] sm:$0x1] %v7

// kernel: block_forward.2
$region0: #{block_forward.2}
  #allocation0 [shape = 'u32[]', space=smem, size = 0x4, offset = 0x4, fixed_abs, tag = 'smem constant byte address 0x4 - core index']
  #allocation1 [shape = 'u32[144,128]{1,0:T(1,128)}', space=vmem, size = 0x12000, scoped, tag = 'internal scratch']
  %s0 = inlined_call_operand.vmem [shape: f32[2,8,32], index: 0, kind: input, shape index: {}]
  %s1 = inlined_call_operand.vmem [shape: f32[1,32], index: 1, kind: input, shape index: {}]
  %s2 = inlined_call_operand.vmem [shape: f32[1,32], index: 2, kind: input, shape index: {}]
  %s3 = inlined_call_operand.vmem [shape: bf16[32,96], index: 3, kind: input, shape index: {}]
  %s4 = inlined_call_operand.vmem [shape: f32[1,96], index: 4, kind: input, shape index: {}]
  %s5 = inlined_call_operand.vmem [shape: bf16[2,4,8,8], index: 5, kind: output, shape index: {0}]
  %s6 = inlined_call_operand.vmem [shape: bf16[2,4,8,8], index: 6, kind: output, shape index: {1}]
  %s7 = inlined_call_operand.vmem [shape: bf16[2,4,8,8], index: 7, kind: output, shape index: {2}]
  %8 = xla_tuple %s5, %s6, %s7
  %s9 = sld [smem:[#allocation0]]
  $region69: #{block_forward.2} parent=0
    _
  %s11 = ssub.s32 1, %s9
  %s12 = scalar_select 0, %s11, %s9
  loop: start=0, step=1, limit=4
  $region2: #{block_forward.2} parent=0 // loop_pre_header
    _
  $region3: #{block_forward.2} parent=0 // loop_header
    %s14 = sphi 0, %s18
    %p15 = scmp.ge.s32.totalorder %s14, 4
    %s21 = sphi 0, %s33
    %s22 = sphi 0, %s29
    %s23 = sphi 0, %s21
    %s24 = sphi 0, %s22
    %s25 = sphi 0, %s23
    %s26 = sphi 0, %s24
    %s38 = sphi 0, %s40
    %s41 = sphi 0, %s38
    %s42 = sphi 0, %s41
    %s58 = sphi 0, %s42
    %s62 = sphi 0, %s62
    %s64 = sphi 0, %s62
    %s65 = sphi 0, %s64
    %s79 = sphi 0, %s65
    %s83 = sphi 0, %s83
    %s85 = sphi 0, %s83
    %s86 = sphi 0, %s85
    %s100 = sphi 0, %s86
    %s104 = sphi 0, %s104
    %s106 = sphi 0, %s104
    %s107 = sphi 0, %s106
    %s121 = sphi 0, %s107
    %s125 = sphi 0, %s125
    %s127 = sphi 0, %s125
    %s128 = sphi 0, %s127
    %s142 = sphi 0, %s128
    %s150 = sphi 0, %s152
    %s153 = sphi 0, %s150
    %s154 = sphi 0, %s153
    %s170 = sphi 0, %s154
    %s178 = sphi 0, %s180
    %s181 = sphi 0, %s178
    %s182 = sphi 0, %s181
    %s198 = sphi 0, %s182
    %s206 = sphi 0, %s208
    %s209 = sphi 0, %s206
    %s210 = sphi 0, %s209
    %s226 = sphi 0, %s210
  $region4: #{block_forward.2} parent=0 // loop_header_branch
    %17 = sbr.rel (%p15) target = $region8
  $region5: #{block_forward.2} parent=0 // loop_body
    %s19 = ssub.s32 %s14, 1
    %s20 = ssub.s32 %s14, 2
    %s27 = sadd.s32 1, %s22
    %p28 = scmp.ge.s32.totalorder %s27, 1
    %s29 = scalar_select %p28, 0, %s27
    %s30 = sadd.s32 1, %s21
    %s31 = scalar_select %p28, %s30, %s21
    %p32 = scmp.ge.s32.totalorder %s31, 2
    %s33 = scalar_select %p32, 0, %s31
    %s34 = ssub.s32 %s21, %s33
    %s35 = ssub.s32 %s22, %s29
    %s36 = sor.u32 %s34, %s35
    %p37 = scmp.eq.s32.totalorder %s36, 0
    %s39 = sadd.s32 %s38, 1
    %s40 = scalar_select %p37, %s38, %s39
    %p43 = pneg %p37
    %p44 = scmp.eq.s32.totalorder %s14, 1
    %p45 = por %p43, %p44
    %p46 = scmp.ne.s32.totalorder %s38, %s41
    %p47 = scmp.eq.s32.totalorder %s14, 0
    %p48 = por %p46, %p47
    %p49 = scmp.ne.s32.totalorder %s38, %s41
    %p50 = scmp.eq.s32.totalorder %s19, 1
    %p51 = por %p49, %p50
    %p52 = scmp.ne.s32.totalorder %s41, %s42
    %p53 = scmp.eq.s32.totalorder %s19, 0
    %p54 = por %p52, %p53
    %p55 = scmp.ne.s32.totalorder %s41, %s42
    %p56 = scmp.eq.s32.totalorder %s20, 1
    %p57 = por %p55, %p56
    %p59 = scmp.ne.s32.totalorder %s42, %s58
    %p60 = scmp.eq.s32.totalorder %s20, 0
    %p61 = por %p59, %p60
    %s63 = sadd.s32 %s62, 1
    %p66 = scmp.eq.s32.totalorder %s14, 1
    %p67 = scmp.ne.s32.totalorder %s62, %s64
    %p68 = scmp.eq.s32.totalorder %s14, 0
    %p69 = por %p67, %p68
    %p70 = scmp.ne.s32.totalorder %s62, %s64
    %p71 = scmp.eq.s32.totalorder %s19, 1
    %p72 = por %p70, %p71
    %p73 = scmp.ne.s32.totalorder %s64, %s65
    %p74 = scmp.eq.s32.totalorder %s19, 0
    %p75 = por %p73, %p74
    %p76 = scmp.ne.s32.totalorder %s64, %s65
    %p77 = scmp.eq.s32.totalorder %s20, 1
    %p78 = por %p76, %p77
    %p80 = scmp.ne.s32.totalorder %s65, %s79
    %p81 = scmp.eq.s32.totalorder %s20, 0
    %p82 = por %p80, %p81
    %s84 = sadd.s32 %s83, 1
    %p87 = scmp.eq.s32.totalorder %s14, 1
    %p88 = scmp.ne.s32.totalorder %s83, %s85
    %p89 = scmp.eq.s32.totalorder %s14, 0
    %p90 = por %p88, %p89
    %p91 = scmp.ne.s32.totalorder %s83, %s85
    %p92 = scmp.eq.s32.totalorder %s19, 1
    %p93 = por %p91, %p92
    %p94 = scmp.ne.s32.totalorder %s85, %s86
    %p95 = scmp.eq.s32.totalorder %s19, 0
    %p96 = por %p94, %p95
    %p97 = scmp.ne.s32.totalorder %s85, %s86
    %p98 = scmp.eq.s32.totalorder %s20, 1
    %p99 = por %p97, %p98
    %p101 = scmp.ne.s32.totalorder %s86, %s100
    %p102 = scmp.eq.s32.totalorder %s20, 0
    %p103 = por %p101, %p102
    %s105 = sadd.s32 %s104, 1
    %p108 = scmp.eq.s32.totalorder %s14, 1
    %p109 = scmp.ne.s32.totalorder %s104, %s106
    %p110 = scmp.eq.s32.totalorder %s14, 0
    %p111 = por %p109, %p110
    %p112 = scmp.ne.s32.totalorder %s104, %s106
    %p113 = scmp.eq.s32.totalorder %s19, 1
    %p114 = por %p112, %p113
    %p115 = scmp.ne.s32.totalorder %s106, %s107
    %p116 = scmp.eq.s32.totalorder %s19, 0
    %p117 = por %p115, %p116
    %p118 = scmp.ne.s32.totalorder %s106, %s107
    %p119 = scmp.eq.s32.totalorder %s20, 1
    %p120 = por %p118, %p119
    %p122 = scmp.ne.s32.totalorder %s107, %s121
    %p123 = scmp.eq.s32.totalorder %s20, 0
    %p124 = por %p122, %p123
    %s126 = sadd.s32 %s125, 1
    %p129 = scmp.eq.s32.totalorder %s14, 1
    %p130 = scmp.ne.s32.totalorder %s125, %s127
    %p131 = scmp.eq.s32.totalorder %s14, 0
    %p132 = por %p130, %p131
    %p133 = scmp.ne.s32.totalorder %s125, %s127
    %p134 = scmp.eq.s32.totalorder %s19, 1
    %p135 = por %p133, %p134
    %p136 = scmp.ne.s32.totalorder %s127, %s128
    %p137 = scmp.eq.s32.totalorder %s19, 0
    %p138 = por %p136, %p137
    %p139 = scmp.ne.s32.totalorder %s127, %s128
    %p140 = scmp.eq.s32.totalorder %s20, 1
    %p141 = por %p139, %p140
    %p143 = scmp.ne.s32.totalorder %s128, %s142
    %p144 = scmp.eq.s32.totalorder %s20, 0
    %p145 = por %p143, %p144
    %s146 = ssub.s32 %s21, %s33
    %s147 = ssub.s32 %s22, %s29
    %s148 = sor.u32 %s146, %s147
    %p149 = scmp.eq.s32.totalorder %s148, 0
    %s151 = sadd.s32 %s150, 1
    %s152 = scalar_select %p149, %s150, %s151
    %p155 = pneg %p149
    %p156 = scmp.eq.s32.totalorder %s14, 1
    %p157 = por %p155, %p156
    %p158 = scmp.ne.s32.totalorder %s150, %s153
    %p159 = scmp.eq.s32.totalorder %s14, 0
    %p160 = por %p158, %p159
    %p161 = scmp.ne.s32.totalorder %s150, %s153
    %p162 = scmp.eq.s32.totalorder %s19, 1
    %p163 = por %p161, %p162
    %p164 = scmp.ne.s32.totalorder %s153, %s154
    %p165 = scmp.eq.s32.totalorder %s19, 0
    %p166 = por %p164, %p165
    %p167 = scmp.ne.s32.totalorder %s153, %s154
    %p168 = scmp.eq.s32.totalorder %s20, 1
    %p169 = por %p167, %p168
    %p171 = scmp.ne.s32.totalorder %s154, %s170
    %p172 = scmp.eq.s32.totalorder %s20, 0
    %p173 = por %p171, %p172
    %s174 = ssub.s32 %s21, %s33
    %s175 = ssub.s32 %s22, %s29
    %s176 = sor.u32 %s174, %s175
    %p177 = scmp.eq.s32.totalorder %s176, 0
    %s179 = sadd.s32 %s178, 1
    %s180 = scalar_select %p177, %s178, %s179
    %p183 = pneg %p177
    %p184 = scmp.eq.s32.totalorder %s14, 1
    %p185 = por %p183, %p184
    %p186 = scmp.ne.s32.totalorder %s178, %s181
    %p187 = scmp.eq.s32.totalorder %s14, 0
    %p188 = por %p186, %p187
    %p189 = scmp.ne.s32.totalorder %s178, %s181
    %p190 = scmp.eq.s32.totalorder %s19, 1
    %p191 = por %p189, %p190
    %p192 = scmp.ne.s32.totalorder %s181, %s182
    %p193 = scmp.eq.s32.totalorder %s19, 0
    %p194 = por %p192, %p193
    %p195 = scmp.ne.s32.totalorder %s181, %s182
    %p196 = scmp.eq.s32.totalorder %s20, 1
    %p197 = por %p195, %p196
    %p199 = scmp.ne.s32.totalorder %s182, %s198
    %p200 = scmp.eq.s32.totalorder %s20, 0
    %p201 = por %p199, %p200
    %s202 = ssub.s32 %s21, %s33
    %s203 = ssub.s32 %s22, %s29
    %s204 = sor.u32 %s202, %s203
    %p205 = scmp.eq.s32.totalorder %s204, 0
    %s207 = sadd.s32 %s206, 1
    %s208 = scalar_select %p205, %s206, %s207
    %p211 = pneg %p205
    %p212 = scmp.eq.s32.totalorder %s14, 1
    %p213 = por %p211, %p212
    %p214 = scmp.ne.s32.totalorder %s206, %s209
    %p215 = scmp.eq.s32.totalorder %s14, 0
    %p216 = por %p214, %p215
    %p217 = scmp.ne.s32.totalorder %s206, %s209
    %p218 = scmp.eq.s32.totalorder %s19, 1
    %p219 = por %p217, %p218
    %p220 = scmp.ne.s32.totalorder %s209, %s210
    %p221 = scmp.eq.s32.totalorder %s19, 0
    %p222 = por %p220, %p221
    %p223 = scmp.ne.s32.totalorder %s209, %s210
    %p224 = scmp.eq.s32.totalorder %s20, 1
    %p225 = por %p223, %p224
    %p227 = scmp.ne.s32.totalorder %s210, %s226
    %p228 = scmp.eq.s32.totalorder %s20, 0
    %p229 = por %p227, %p228
    %p230 = scmp.le.s32.totalorder 1, %s14
    %p231 = scmp.lt.s32.totalorder %s14, 3
    %p232 = pnand %p230, %p231
    %p233 = pneg %p232
    // Predicated region
    $region9: #{block_forward.2} parent=5 // pred_check
      _
    $region10: #{block_forward.2} parent=5 // pred_check_branch
      %235 = sbr.rel (%p232) target = $region12
    $region11: #{block_forward.2} parent=5 // pred_region
      %s236 = ssub.s32 %s14, 1
      // Predicated region
      $region13: #{block_forward.2} parent=11 // pred_check
        %p237 = pneg %p75
      $region14: #{block_forward.2} parent=11 // pred_check_branch
        %239 = sbr.rel (%p237) target = $region16
      $region15: #{block_forward.2} parent=11 // pred_region
        _
      $region16: #{block_forward.2} parent=11 // pred_fallthru
        _
      // Predicated region
      $region17: #{block_forward.2} parent=11 // pred_check
        %p240 = pneg %p96
      $region18: #{block_forward.2} parent=11 // pred_check_branch
        %242 = sbr.rel (%p240) target = $region20
      $region19: #{block_forward.2} parent=11 // pred_region
        _
      $region20: #{block_forward.2} parent=11 // pred_fallthru
        _
      // Predicated region
      $region21: #{block_forward.2} parent=11 // pred_check
        %p243 = pneg %p117
      $region22: #{block_forward.2} parent=11 // pred_check_branch
        %245 = sbr.rel (%p243) target = $region24
      $region23: #{block_forward.2} parent=11 // pred_region
        _
      $region24: #{block_forward.2} parent=11 // pred_fallthru
        _
      // Predicated region
      $region25: #{block_forward.2} parent=11 // pred_check
        %p246 = pneg %p138
      $region26: #{block_forward.2} parent=11 // pred_check_branch
        %248 = sbr.rel (%p246) target = $region28
      $region27: #{block_forward.2} parent=11 // pred_region
        _
      $region28: #{block_forward.2} parent=11 // pred_fallthru
        _
    $region12: #{block_forward.2} parent=5 // pred_fallthru
      _
    %p249 = scmp.lt.s32.totalorder %s14, 2
    // Predicated region
    $region29: #{block_forward.2} parent=5 // pred_check
      %p250 = pneg %p249
    $region30: #{block_forward.2} parent=5 // pred_check_branch
      %252 = sbr.rel (%p250) target = $region32
    $region31: #{block_forward.2} parent=5 // pred_region
      // Predicated region
      $region33: #{block_forward.2} parent=31 // pred_check
        %p253 = pneg %p48
      $region34: #{block_forward.2} parent=31 // pred_check_branch
        %255 = sbr.rel (%p253) target = $region36
      $region35: #{block_forward.2} parent=31 // pred_region
        %p256 = scmp.lt.s32.totalorder %s21, 1
        %s257 = scalar_select %p256, %s21, 1
        %p258 = scmp.lt.s32.totalorder %s22, 0
        %s259 = scalar_select %p258, %s22, 0
        %s260 = sadd.s32 %s259, %s257
        %s261 = smul.addr %s260, 8
        %s262 = scalar_lea.vmem %s0, %s261
      $region36: #{block_forward.2} parent=31 // pred_fallthru
        _
    $region32: #{block_forward.2} parent=5 // pred_fallthru
      _
    %p263 = scmp.le.s32.totalorder 1, %s14
    %p264 = scmp.lt.s32.totalorder %s14, 3
    %p265 = pnand %p263, %p264
    %p266 = pneg %p265
    // Predicated region
    $region37: #{block_forward.2} parent=5 // pred_check
      _
    $region38: #{block_forward.2} parent=5 // pred_check_branch
      %268 = sbr.rel (%p265) target = $region40
    $region39: #{block_forward.2} parent=5 // pred_region
      %s269 = ssub.s32 %s14, 1
      %p270 = scmp.lt.s32.totalorder %s23, 1
      %s271 = scalar_select %p270, %s23, 1
      %p272 = scmp.lt.s32.totalorder %s24, 0
      %s273 = scalar_select %p272, %s24, 0
      %s274 = sadd.s32 %s273, %s271
      %s275 = smul.addr %s274, 8
      %s276 = scalar_lea.vmem %s0, %s275
      %p277 = pneg %p54
      %p278 = pneg %p51
      %p279 = pneg %p75
      %p280 = pneg %p72
      %p281 = pneg %p96
      %p282 = pneg %p93
      %p283 = pneg %p117
      %p284 = pneg %p114
      %p285 = pneg %p138
      %p286 = pneg %p135
      %p287 = pneg %p166
      %p288 = pneg %p163
      %p289 = scmp.lt.s32.totalorder %s23, 1
      %s290 = scalar_select %p289, %s23, 1
      %p291 = scmp.lt.s32.totalorder %s24, 0
      %s292 = scalar_select %p291, %s24, 0
      %s293 = smul.addr %s290, 4
      %s294 = sadd.s32 %s292, %s293
      %s295 = smul.addr %s294, 4
      %s296 = scalar_lea.vmem %s5, %s295
      %p297 = pneg %p194
      %p298 = pneg %p191
      %p299 = scmp.lt.s32.totalorder %s23, 1
      %s300 = scalar_select %p299, %s23, 1
      %p301 = scmp.lt.s32.totalorder %s24, 0
      %s302 = scalar_select %p301, %s24, 0
      %s303 = smul.addr %s300, 4
      %s304 = sadd.s32 %s302, %s303
      %s305 = smul.addr %s304, 4
      %s306 = scalar_lea.vmem %s6, %s305
      %p307 = pneg %p222
      %p308 = pneg %p219
      %p309 = scmp.lt.s32.totalorder %s23, 1
      %s310 = scalar_select %p309, %s23, 1
      %p311 = scmp.lt.s32.totalorder %s24, 0
      %s312 = scalar_select %p311, %s24, 0
      %s313 = smul.addr %s310, 4
      %s314 = sadd.s32 %s312, %s313
      %s315 = smul.addr %s314, 4
      %s316 = scalar_lea.vmem %s7, %s315
      %p317 = scmp.lt.s32.totalorder %s23, 1
      %s318 = scalar_select %p317, %s23, 1
      %p319 = scmp.lt.s32.totalorder %s24, 0
      %s320 = scalar_select %p319, %s24, 0
      %s321 = sadd.s32 %s320, %s318
      %s322 = smul.addr %s321, 8
      %s323 = scalar_lea.vmem %s0, %s322
      %p324 = scmp.lt.s32.totalorder %s23, 1
      %s325 = scalar_select %p324, %s23, 1
      %p326 = scmp.lt.s32.totalorder %s24, 0
      %s327 = scalar_select %p326, %s24, 0
      %s328 = smul.addr %s325, 4
      %s329 = sadd.s32 %s327, %s328
      %s330 = smul.addr %s329, 4
      %s331 = scalar_lea.vmem %s5, %s330
      %p332 = scmp.lt.s32.totalorder %s23, 1
      %s333 = scalar_select %p332, %s23, 1
      %p334 = scmp.lt.s32.totalorder %s24, 0
      %s335 = scalar_select %p334, %s24, 0
      %s336 = smul.addr %s333, 4
      %s337 = sadd.s32 %s335, %s336
      %s338 = smul.addr %s337, 4
      %s339 = scalar_lea.vmem %s6, %s338
      %p340 = scmp.lt.s32.totalorder %s23, 1
      %s341 = scalar_select %p340, %s23, 1
      %p342 = scmp.lt.s32.totalorder %s24, 0
      %s343 = scalar_select %p342, %s24, 0
      %s344 = smul.addr %s341, 4
      %s345 = sadd.s32 %s343, %s344
      %s346 = smul.addr %s345, 4
      %s347 = scalar_lea.vmem %s7, %s346
      %v349 = vld [vmem:[%s323] sm:$0xff]
      %v350 = vld [vmem:[%s1] sm:$0x1]
      %v351 = vld [vmem:[%s2] sm:$0x1]
      %vm352 = vcmask 261120
      %v353 = vsel %vm352, %v349, 0.0
      %354 = vadd.xlane.f32.xlu0 %v353
      %v355 = vpop.xlane.xlu0 %354
      %v356 = vrcp.pop 32.0
      %v357 = vmul.f32 %v355, %v356
      %v358 = vsub.f32 %v349, %v357
      %v359 = vmul.f32 %v358, %v358
      %v360 = vsel %vm352, %v359, 0.0
      %361 = vadd.xlane.f32.xlu0 %v360
      %v362 = vpop.xlane.xlu0 %361
      %v363 = vmul.f32 %v362, %v356
      %v364 = vadd.f32 %v363, 1e-05
      %v365 = vrsqrt.pop %v364
      %v366 = vmul.f32 %v358, %v365
      %v368 = vlaneseq
      %v369 = vshrl.u32 %v368, 7
      %v370 = vsub.s32 0, %v369
      %v371 = vrot.slane %v350, %v370
      %v373 = vmul.f32 %v366, %v371
      %v375 = vlaneseq
      %v376 = vshrl.u32 %v375, 7
      %v377 = vsub.s32 0, %v376
      %v378 = vrot.slane %v351, %v377
      %v380 = vadd.f32 %v373, %v378
      %v381 = vpack.c.bf16 %v380, %v380
      %v382 = vld [vmem:[%s3] sm:$0xf]
      %v383 = vld [vmem:[%s3 + $0x4] sm:$0xf]
      %v384 = vld [vmem:[%s3 + $0x8] sm:$0xf]
      %v385 = vld [vmem:[%s3 + $0xc] sm:$0xf]
      %v386 = vld [vmem:[%s4] sm:$0x1]
      %v388 = vlaneseq
      %v389 = vshrl.u32 %v388, 7
      %v390 = vsub.s32 0, %v389
      %v391 = vrot.slane %v386, %v390
      %v397 = vunpack.c.l.b16 %v382
      %v398 = vunpack.c.l.b16 %v383
      %v399 = vunpack.c.l.b16 %v384
      %v400 = vunpack.c.l.b16 %v385
      %v401 = vpack.c.b16 %v398, %v397
      %v402 = vpack.c.b16 %v400, %v399
      %v406 = vsel %vm352, %v381, 0
      %408 = vmatprep.subr.bf16.mxu0 0
      %409 = vmatpush1.bf16.msra.mxu0 %v401
      %410 = vmatprep.subr.bf16.mxu0 0
      %411 = vmatpush1.bf16.msra.mxu0 %v402
      %412 = vmatprep.subr.bf16.mxu0 0
      %413 = vmatpush1.bf16.msra.mxu0 0
      %414 = vmatprep.subr.bf16.mxu0 0
      %415 = vmatpush1.bf16.msra.mxu0 0
      %416 = vmatprep.subr.bf16.mxu0 0
      %417 = vmatpush1.bf16.msra.mxu0 0
      %418 = vmatprep.subr.bf16.mxu0 0
      %419 = vmatpush1.bf16.msra.mxu0 0
      %420 = vmatprep.subr.bf16.mxu0 0
      %421 = vmatpush1.bf16.msra.mxu0 0
      %422 = vmatprep.subr.bf16.mxu0 0
      %423 = vmatpush1.bf16.msra.mxu0 0
      %424 = vmatprep.subr.bf16.mxu0 0
      %425 = vmatpush1.bf16.msra.mxu0 0
      %426 = vmatprep.subr.bf16.mxu0 0
      %427 = vmatpush1.bf16.msra.mxu0 0
      %428 = vmatprep.subr.bf16.mxu0 0
      %429 = vmatpush1.bf16.msra.mxu0 0
      %430 = vmatprep.subr.bf16.mxu0 0
      %431 = vmatpush1.bf16.msra.mxu0 0
      %432 = vmatprep.subr.bf16.mxu0 0
      %433 = vmatpush1.bf16.msra.mxu0 0
      %434 = vmatprep.subr.bf16.mxu0 0
      %435 = vmatpush1.bf16.msra.mxu0 0
      %436 = vmatprep.subr.bf16.mxu0 0
      %437 = vmatpush1.bf16.msra.mxu0 0
      %438 = vmatprep.subr.bf16.mxu0 0
      %439 = vmatpush1.bf16.msra.mxu0 0
      %440 = vmatprep.mubr.bf16.mxu0 0
      %441 = vmatmul.mubr.bf16.gmra.mrb[0].mxu0 %v406
      %v442 = vpop.f32.mrb[0].mxu0
      %v443 = vadd.f32 %v391, %v442
      %v444 = vpop.f32.mrb[0].mxu0
      %v445 = vpop.f32.mrb[0].mxu0
      %v446 = vpop.f32.mrb[0].mxu0
      %447 = vdwg.mxu0
      %449 = vrot.lane.b32.xlu0 %v443, 120
      %v450 = vpop.permute.xlu0 %449
      %452 = vrot.lane.b32.xlu0 %v443, 112
      %v453 = vpop.permute.xlu0 %452
      %455 = vrot.lane.b32.xlu0 %v443, 104
      %v456 = vpop.permute.xlu0 %455
      %v458 = vcombine.low %v443, %v453
      %v459 = vcombine.high %v443, %v453
      %v461 = vunpack.c.l.s4 1983009808
      %v462 = vunpack.c.0.s8 %v461
      %v463 = vlaneseq
      %v464 = vshrl.u32 %v463, 7
      %v465 = vsub.s32 %v462, %v464
      %v466 = vrot.slane %v458, %v465
      %v468 = vunpack.c.l.s4 1983009808
      %v469 = vunpack.c.0.s8 %v468
      %v470 = vlaneseq
      %v471 = vshrl.u32 %v470, 7
      %v472 = vsub.s32 %v469, %v471
      %v473 = vrot.slane %v459, %v472
      %v474 = vcombine.low %v450, %v456
      %v475 = vcombine.high %v450, %v456
      %v477 = vunpack.c.l.s4 1983009808
      %v478 = vunpack.c.0.s8 %v477
      %v479 = vlaneseq
      %v480 = vshrl.u32 %v479, 7
      %v481 = vsub.s32 %v478, %v480
      %v482 = vrot.slane %v474, %v481
      %v484 = vunpack.c.l.s4 1983009808
      %v485 = vunpack.c.0.s8 %v484
      %v486 = vlaneseq
      %v487 = vshrl.u32 %v486, 7
      %v488 = vsub.s32 %v485, %v487
      %v489 = vrot.slane %v475, %v488
      %v490 = vcombine.low %v466, %v482
      %v491 = vcombine.high %v466, %v482
      %v493 = vunpack.c.l.s4 1934713408
      %v494 = vunpack.c.0.s8 %v493
      %v495 = vlaneseq
      %v496 = vshrl.u32 %v495, 7
      %v497 = vsub.s32 %v494, %v496
      %v498 = vrot.slane %v490, %v497
      %v500 = vunpack.c.l.s4 1934713408
      %v501 = vunpack.c.0.s8 %v500
      %v502 = vlaneseq
      %v503 = vshrl.u32 %v502, 7
      %v504 = vsub.s32 %v501, %v503
      %v505 = vrot.slane %v491, %v504
      %v506 = vcombine.low %v473, %v489
      %v507 = vcombine.high %v473, %v489
      %v509 = vunpack.c.l.s4 1934713408
      %v510 = vunpack.c.0.s8 %v509
      %v511 = vlaneseq
      %v512 = vshrl.u32 %v511, 7
      %v513 = vsub.s32 %v510, %v512
      %v514 = vrot.slane %v506, %v513
      %v516 = vunpack.c.l.s4 1934713408
      %v517 = vunpack.c.0.s8 %v516
      %v518 = vlaneseq
      %v519 = vshrl.u32 %v518, 7
      %v520 = vsub.s32 %v517, %v519
      %v521 = vrot.slane %v507, %v520
      %v522 = vcombine.high %v498, 0.0
      %v523 = vcombine.high %v505, 0.0
      %v524 = vcombine.high %v514, 0.0
      %v525 = vcombine.high %v521, 0.0
      %v526 = vcombine.low %v498, %v505
      %v528 = vunpack.c.l.s4 1983009808
      %v529 = vunpack.c.0.s8 %v528
      %v530 = vlaneseq
      %v531 = vshrl.u32 %v530, 7
      %v532 = vsub.s32 %v529, %v531
      %v533 = vrot.slane %v526, %v532
      %v534 = vcombine.low %v522, %v523
      %v536 = vunpack.c.l.s4 1983009808
      %v537 = vunpack.c.0.s8 %v536
      %v538 = vlaneseq
      %v539 = vshrl.u32 %v538, 7
      %v540 = vsub.s32 %v537, %v539
      %v541 = vrot.slane %v534, %v540
      %v542 = vcombine.low %v514, %v521
      %v544 = vunpack.c.l.s4 1983009808
      %v545 = vunpack.c.0.s8 %v544
      %v546 = vlaneseq
      %v547 = vshrl.u32 %v546, 7
      %v548 = vsub.s32 %v545, %v547
      %v549 = vrot.slane %v542, %v548
      %v550 = vcombine.low %v524, %v525
      %v552 = vunpack.c.l.s4 1983009808
      %v553 = vunpack.c.0.s8 %v552
      %v554 = vlaneseq
      %v555 = vshrl.u32 %v554, 7
      %v556 = vsub.s32 %v553, %v555
      %v557 = vrot.slane %v550, %v556
      %v558 = vcombine.low %v533, %v541
      %v559 = vcombine.high %v533, %v541
      %v561 = vunpack.c.l.s4 1934713408
      %v562 = vunpack.c.0.s8 %v561
      %v563 = vlaneseq
      %v564 = vshrl.u32 %v563, 7
      %v565 = vsub.s32 %v562, %v564
      %v566 = vrot.slane %v558, %v565
      %v568 = vunpack.c.l.s4 1934713408
      %v569 = vunpack.c.0.s8 %v568
      %v570 = vlaneseq
      %v571 = vshrl.u32 %v570, 7
      %v572 = vsub.s32 %v569, %v571
      %v573 = vrot.slane %v559, %v572
      %v574 = vcombine.low %v549, %v557
      %v575 = vcombine.high %v549, %v557
      %v577 = vunpack.c.l.s4 1934713408
      %v578 = vunpack.c.0.s8 %v577
      %v579 = vlaneseq
      %v580 = vshrl.u32 %v579, 7
      %v581 = vsub.s32 %v578, %v580
      %v582 = vrot.slane %v574, %v581
      %v584 = vunpack.c.l.s4 1934713408
      %v585 = vunpack.c.0.s8 %v584
      %v586 = vlaneseq
      %v587 = vshrl.u32 %v586, 7
      %v588 = vsub.s32 %v585, %v587
      %v589 = vrot.slane %v575, %v588
      %v590 = vcombine.low %v566, %v582
      %v591 = vcombine.high %v566, %v582
      %v592 = vcombine.low %v573, %v589
      %v593 = vcombine.high %v573, %v589
      %v594 = vpack.c.bf16 %v590, %v590
      %v595 = vpack.c.bf16 %v591, %v591
      %v596 = vpack.c.bf16 %v592, %v592
      %v597 = vpack.c.bf16 %v593, %v593
      %vm598 = vcmask 60416
      %599 = vst.msk [vmem:[%s331] sm:$0xf] %vm598, %v594
      %600 = vst.msk [vmem:[%s331 + $0x4] sm:$0xf] %vm598, %v595
      %601 = vst.msk [vmem:[%s331 + $0x8] sm:$0xf] %vm598, %v596
      %602 = vst.msk [vmem:[%s331 + $0xc] sm:$0xf] %vm598, %v597
      %603 = vrot.lane.b32.xlu0 %v443, 96
      %v604 = vpop.permute.xlu0 %603
      %605 = vrot.lane.b32.xlu0 %v450, 96
      %v606 = vpop.permute.xlu0 %605
      %607 = vrot.lane.b32.xlu0 %v453, 96
      %v608 = vpop.permute.xlu0 %607
      %609 = vrot.lane.b32.xlu0 %v456, 96
      %v610 = vpop.permute.xlu0 %609
      %v615 = vcombine.low %v604, %v608
      %v616 = vcombine.high %v604, %v608
      %v618 = vunpack.c.l.s4 1983009808
      %v619 = vunpack.c.0.s8 %v618
      %v620 = vlaneseq
      %v621 = vshrl.u32 %v620, 7
      %v622 = vsub.s32 %v619, %v621
      %v623 = vrot.slane %v615, %v622
      %v625 = vunpack.c.l.s4 1983009808
      %v626 = vunpack.c.0.s8 %v625
      %v627 = vlaneseq
      %v628 = vshrl.u32 %v627, 7
      %v629 = vsub.s32 %v626, %v628
      %v630 = vrot.slane %v616, %v629
      %v631 = vcombine.low %v606, %v610
      %v632 = vcombine.high %v606, %v610
      %v634 = vunpack.c.l.s4 1983009808
      %v635 = vunpack.c.0.s8 %v634
      %v636 = vlaneseq
      %v637 = vshrl.u32 %v636, 7
      %v638 = vsub.s32 %v635, %v637
      %v639 = vrot.slane %v631, %v638
      %v641 = vunpack.c.l.s4 1983009808
      %v642 = vunpack.c.0.s8 %v641
      %v643 = vlaneseq
      %v644 = vshrl.u32 %v643, 7
      %v645 = vsub.s32 %v642, %v644
      %v646 = vrot.slane %v632, %v645
      %v647 = vcombine.low %v623, %v639
      %v648 = vcombine.high %v623, %v639
      %v650 = vunpack.c.l.s4 1934713408
      %v651 = vunpack.c.0.s8 %v650
      %v652 = vlaneseq
      %v653 = vshrl.u32 %v652, 7
      %v654 = vsub.s32 %v651, %v653
      %v655 = vrot.slane %v647, %v654
      %v657 = vunpack.c.l.s4 1934713408
      %v658 = vunpack.c.0.s8 %v657
      %v659 = vlaneseq
      %v660 = vshrl.u32 %v659, 7
      %v661 = vsub.s32 %v658, %v660
      %v662 = vrot.slane %v648, %v661
      %v663 = vcombine.low %v630, %v646
      %v664 = vcombine.high %v630, %v646
      %v666 = vunpack.c.l.s4 1934713408
      %v667 = vunpack.c.0.s8 %v666
      %v668 = vlaneseq
      %v669 = vshrl.u32 %v668, 7
      %v670 = vsub.s32 %v667, %v669
      %v671 = vrot.slane %v663, %v670
      %v673 = vunpack.c.l.s4 1934713408
      %v674 = vunpack.c.0.s8 %v673
      %v675 = vlaneseq
      %v676 = vshrl.u32 %v675, 7
      %v677 = vsub.s32 %v674, %v676
      %v678 = vrot.slane %v664, %v677
      %v679 = vcombine.high %v655, 0.0
      %v680 = vcombine.high %v662, 0.0
      %v681 = vcombine.high %v671, 0.0
      %v682 = vcombine.high %v678, 0.0
      %v683 = vcombine.low %v655, %v662
      %v685 = vunpack.c.l.s4 1983009808
      %v686 = vunpack.c.0.s8 %v685
      %v687 = vlaneseq
      %v688 = vshrl.u32 %v687, 7
      %v689 = vsub.s32 %v686, %v688
      %v690 = vrot.slane %v683, %v689
      %v691 = vcombine.low %v679, %v680
      %v693 = vunpack.c.l.s4 1983009808
      %v694 = vunpack.c.0.s8 %v693
      %v695 = vlaneseq
      %v696 = vshrl.u32 %v695, 7
      %v697 = vsub.s32 %v694, %v696
      %v698 = vrot.slane %v691, %v697
      %v699 = vcombine.low %v671, %v678
      %v701 = vunpack.c.l.s4 1983009808
      %v702 = vunpack.c.0.s8 %v701
      %v703 = vlaneseq
      %v704 = vshrl.u32 %v703, 7
      %v705 = vsub.s32 %v702, %v704
      %v706 = vrot.slane %v699, %v705
      %v707 = vcombine.low %v681, %v682
      %v709 = vunpack.c.l.s4 1983009808
      %v710 = vunpack.c.0.s8 %v709
      %v711 = vlaneseq
      %v712 = vshrl.u32 %v711, 7
      %v713 = vsub.s32 %v710, %v712
      %v714 = vrot.slane %v707, %v713
      %v715 = vcombine.low %v690, %v698
      %v716 = vcombine.high %v690, %v698
      %v718 = vunpack.c.l.s4 1934713408
      %v719 = vunpack.c.0.s8 %v718
      %v720 = vlaneseq
      %v721 = vshrl.u32 %v720, 7
      %v722 = vsub.s32 %v719, %v721
      %v723 = vrot.slane %v715, %v722
      %v725 = vunpack.c.l.s4 1934713408
      %v726 = vunpack.c.0.s8 %v725
      %v727 = vlaneseq
      %v728 = vshrl.u32 %v727, 7
      %v729 = vsub.s32 %v726, %v728
      %v730 = vrot.slane %v716, %v729
      %v731 = vcombine.low %v706, %v714
      %v732 = vcombine.high %v706, %v714
      %v734 = vunpack.c.l.s4 1934713408
      %v735 = vunpack.c.0.s8 %v734
      %v736 = vlaneseq
      %v737 = vshrl.u32 %v736, 7
      %v738 = vsub.s32 %v735, %v737
      %v739 = vrot.slane %v731, %v738
      %v741 = vunpack.c.l.s4 1934713408
      %v742 = vunpack.c.0.s8 %v741
      %v743 = vlaneseq
      %v744 = vshrl.u32 %v743, 7
      %v745 = vsub.s32 %v742, %v744
      %v746 = vrot.slane %v732, %v745
      %v747 = vcombine.low %v723, %v739
      %v748 = vcombine.high %v723, %v739
      %v749 = vcombine.low %v730, %v746
      %v750 = vcombine.high %v730, %v746
      %v751 = vpack.c.bf16 %v747, %v747
      %v752 = vpack.c.bf16 %v748, %v748
      %v753 = vpack.c.bf16 %v749, %v749
      %v754 = vpack.c.bf16 %v750, %v750
      %755 = vst.msk [vmem:[%s339] sm:$0xf] %vm598, %v751
      %756 = vst.msk [vmem:[%s339 + $0x4] sm:$0xf] %vm598, %v752
      %757 = vst.msk [vmem:[%s339 + $0x8] sm:$0xf] %vm598, %v753
      %758 = vst.msk [vmem:[%s339 + $0xc] sm:$0xf] %vm598, %v754
      %759 = vrot.lane.b32.xlu0 %v443, 64
      %v760 = vpop.permute.xlu0 %759
      %761 = vrot.lane.b32.xlu0 %v450, 64
      %v762 = vpop.permute.xlu0 %761
      %763 = vrot.lane.b32.xlu0 %v453, 64
      %v764 = vpop.permute.xlu0 %763
      %765 = vrot.lane.b32.xlu0 %v456, 64
      %v766 = vpop.permute.xlu0 %765
      %v771 = vcombine.low %v760, %v764
      %v772 = vcombine.high %v760, %v764
      %v774 = vunpack.c.l.s4 1983009808
      %v775 = vunpack.c.0.s8 %v774
      %v776 = vlaneseq
      %v777 = vshrl.u32 %v776, 7
      %v778 = vsub.s32 %v775, %v777
      %v779 = vrot.slane %v771, %v778
      %v781 = vunpack.c.l.s4 1983009808
      %v782 = vunpack.c.0.s8 %v781
      %v783 = vlaneseq
      %v784 = vshrl.u32 %v783, 7
      %v785 = vsub.s32 %v782, %v784
      %v786 = vrot.slane %v772, %v785
      %v787 = vcombine.low %v762, %v766
      %v788 = vcombine.high %v762, %v766
      %v790 = vunpack.c.l.s4 1983009808
      %v791 = vunpack.c.0.s8 %v790
      %v792 = vlaneseq
      %v793 = vshrl.u32 %v792, 7
      %v794 = vsub.s32 %v791, %v793
      %v795 = vrot.slane %v787, %v794
      %v797 = vunpack.c.l.s4 1983009808
      %v798 = vunpack.c.0.s8 %v797
      %v799 = vlaneseq
      %v800 = vshrl.u32 %v799, 7
      %v801 = vsub.s32 %v798, %v800
      %v802 = vrot.slane %v788, %v801
      %v803 = vcombine.low %v779, %v795
      %v804 = vcombine.high %v779, %v795
      %v806 = vunpack.c.l.s4 1934713408
      %v807 = vunpack.c.0.s8 %v806
      %v808 = vlaneseq
      %v809 = vshrl.u32 %v808, 7
      %v810 = vsub.s32 %v807, %v809
      %v811 = vrot.slane %v803, %v810
      %v813 = vunpack.c.l.s4 1934713408
      %v814 = vunpack.c.0.s8 %v813
      %v815 = vlaneseq
      %v816 = vshrl.u32 %v815, 7
      %v817 = vsub.s32 %v814, %v816
      %v818 = vrot.slane %v804, %v817
      %v819 = vcombine.low %v786, %v802
      %v820 = vcombine.high %v786, %v802
      %v822 = vunpack.c.l.s4 1934713408
      %v823 = vunpack.c.0.s8 %v822
      %v824 = vlaneseq
      %v825 = vshrl.u32 %v824, 7
      %v826 = vsub.s32 %v823, %v825
      %v827 = vrot.slane %v819, %v826
      %v829 = vunpack.c.l.s4 1934713408
      %v830 = vunpack.c.0.s8 %v829
      %v831 = vlaneseq
      %v832 = vshrl.u32 %v831, 7
      %v833 = vsub.s32 %v830, %v832
      %v834 = vrot.slane %v820, %v833
      %v835 = vcombine.high %v811, 0.0
      %v836 = vcombine.high %v818, 0.0
      %v837 = vcombine.high %v827, 0.0
      %v838 = vcombine.high %v834, 0.0
      %v839 = vcombine.low %v811, %v818
      %v841 = vunpack.c.l.s4 1983009808
      %v842 = vunpack.c.0.s8 %v841
      %v843 = vlaneseq
      %v844 = vshrl.u32 %v843, 7
      %v845 = vsub.s32 %v842, %v844
      %v846 = vrot.slane %v839, %v845
      %v847 = vcombine.low %v835, %v836
      %v849 = vunpack.c.l.s4 1983009808
      %v850 = vunpack.c.0.s8 %v849
      %v851 = vlaneseq
      %v852 = vshrl.u32 %v851, 7
      %v853 = vsub.s32 %v850, %v852
      %v854 = vrot.slane %v847, %v853
      %v855 = vcombine.low %v827, %v834
      %v857 = vunpack.c.l.s4 1983009808
      %v858 = vunpack.c.0.s8 %v857
      %v859 = vlaneseq
      %v860 = vshrl.u32 %v859, 7
      %v861 = vsub.s32 %v858, %v860
      %v862 = vrot.slane %v855, %v861
      %v863 = vcombine.low %v837, %v838
      %v865 = vunpack.c.l.s4 1983009808
      %v866 = vunpack.c.0.s8 %v865
      %v867 = vlaneseq
      %v868 = vshrl.u32 %v867, 7
      %v869 = vsub.s32 %v866, %v868
      %v870 = vrot.slane %v863, %v869
      %v871 = vcombine.low %v846, %v854
      %v872 = vcombine.high %v846, %v854
      %v874 = vunpack.c.l.s4 1934713408
      %v875 = vunpack.c.0.s8 %v874
      %v876 = vlaneseq
      %v877 = vshrl.u32 %v876, 7
      %v878 = vsub.s32 %v875, %v877
      %v879 = vrot.slane %v871, %v878
      %v881 = vunpack.c.l.s4 1934713408
      %v882 = vunpack.c.0.s8 %v881
      %v883 = vlaneseq
      %v884 = vshrl.u32 %v883, 7
      %v885 = vsub.s32 %v882, %v884
      %v886 = vrot.slane %v872, %v885
      %v887 = vcombine.low %v862, %v870
      %v888 = vcombine.high %v862, %v870
      %v890 = vunpack.c.l.s4 1934713408
      %v891 = vunpack.c.0.s8 %v890
      %v892 = vlaneseq
      %v893 = vshrl.u32 %v892, 7
      %v894 = vsub.s32 %v891, %v893
      %v895 = vrot.slane %v887, %v894
      %v897 = vunpack.c.l.s4 1934713408
      %v898 = vunpack.c.0.s8 %v897
      %v899 = vlaneseq
      %v900 = vshrl.u32 %v899, 7
      %v901 = vsub.s32 %v898, %v900
      %v902 = vrot.slane %v888, %v901
      %v903 = vcombine.low %v879, %v895
      %v904 = vcombine.high %v879, %v895
      %v905 = vcombine.low %v886, %v902
      %v906 = vcombine.high %v886, %v902
      %v907 = vpack.c.bf16 %v903, %v903
      %v908 = vpack.c.bf16 %v904, %v904
      %v909 = vpack.c.bf16 %v905, %v905
      %v910 = vpack.c.bf16 %v906, %v906
      %911 = vst.msk [vmem:[%s347] sm:$0xf] %vm598, %v907
      %912 = vst.msk [vmem:[%s347 + $0x4] sm:$0xf] %vm598, %v908
      %913 = vst.msk [vmem:[%s347 + $0x8] sm:$0xf] %vm598, %v909
      %914 = vst.msk [vmem:[%s347 + $0xc] sm:$0xf] %vm598, %v910
      %p915 = scmp.lt.s32.totalorder %s23, 1
      %s916 = scalar_select %p915, %s23, 1
      %p917 = scmp.lt.s32.totalorder %s24, 0
      %s918 = scalar_select %p917, %s24, 0
      %s919 = smul.addr %s916, 4
      %s920 = sadd.s32 %s918, %s919
      %s921 = smul.addr %s920, 4
      %s922 = scalar_lea.vmem %s5, %s921
      %p923 = scmp.lt.s32.totalorder %s23, 1
      %s924 = scalar_select %p923, %s23, 1
      %p925 = scmp.lt.s32.totalorder %s24, 0
      %s926 = scalar_select %p925, %s24, 0
      %s927 = smul.addr %s924, 4
      %s928 = sadd.s32 %s926, %s927
      %s929 = smul.addr %s928, 4
      %s930 = scalar_lea.vmem %s6, %s929
      %p931 = scmp.lt.s32.totalorder %s23, 1
      %s932 = scalar_select %p931, %s23, 1
      %p933 = scmp.lt.s32.totalorder %s24, 0
      %s934 = scalar_select %p933, %s24, 0
      %s935 = smul.addr %s932, 4
      %s936 = sadd.s32 %s934, %s935
      %s937 = smul.addr %s936, 4
      %s938 = scalar_lea.vmem %s7, %s937
      // Predicated region
      $region41: #{block_forward.2} parent=39 // pred_check
        %p939 = pneg %p163
      $region42: #{block_forward.2} parent=39 // pred_check_branch
        %941 = sbr.rel (%p939) target = $region44
      $region43: #{block_forward.2} parent=39 // pred_region
        _
      $region44: #{block_forward.2} parent=39 // pred_fallthru
        _
      // Predicated region
      $region45: #{block_forward.2} parent=39 // pred_check
        %p942 = pneg %p191
      $region46: #{block_forward.2} parent=39 // pred_check_branch
        %944 = sbr.rel (%p942) target = $region48
      $region47: #{block_forward.2} parent=39 // pred_region
        _
      $region48: #{block_forward.2} parent=39 // pred_fallthru
        _
      // Predicated region
      $region49: #{block_forward.2} parent=39 // pred_check
        %p945 = pneg %p219
      $region50: #{block_forward.2} parent=39 // pred_check_branch
        %947 = sbr.rel (%p945) target = $region52
      $region51: #{block_forward.2} parent=39 // pred_region
        _
      $region52: #{block_forward.2} parent=39 // pred_fallthru
        _
    $region40: #{block_forward.2} parent=5 // pred_fallthru
      _
    %p948 = scmp.le.s32.totalorder 2, %s14
    // Predicated region
    $region53: #{block_forward.2} parent=5 // pred_check
      %p949 = pneg %p948
    $region54: #{block_forward.2} parent=5 // pred_check_branch
      %951 = sbr.rel (%p949) target = $region56
    $region55: #{block_forward.2} parent=5 // pred_region
      %s952 = ssub.s32 %s14, 2
      // Predicated region
      $region57: #{block_forward.2} parent=55 // pred_check
        %p953 = pneg %p169
      $region58: #{block_forward.2} parent=55 // pred_check_branch
        %955 = sbr.rel (%p953) target = $region60
      $region59: #{block_forward.2} parent=55 // pred_region
        %p956 = scmp.lt.s32.totalorder %s25, 1
        %s957 = scalar_select %p956, %s25, 1
        %p958 = scmp.lt.s32.totalorder %s26, 0
        %s959 = scalar_select %p958, %s26, 0
        %s960 = smul.addr %s957, 4
        %s961 = sadd.s32 %s959, %s960
        %s962 = smul.addr %s961, 4
        %s963 = scalar_lea.vmem %s5, %s962
      $region60: #{block_forward.2} parent=55 // pred_fallthru
        _
      // Predicated region
      $region61: #{block_forward.2} parent=55 // pred_check
        %p964 = pneg %p197
      $region62: #{block_forward.2} parent=55 // pred_check_branch
        %966 = sbr.rel (%p964) target = $region64
      $region63: #{block_forward.2} parent=55 // pred_region
        %p967 = scmp.lt.s32.totalorder %s25, 1
        %s968 = scalar_select %p967, %s25, 1
        %p969 = scmp.lt.s32.totalorder %s26, 0
        %s970 = scalar_select %p969, %s26, 0
        %s971 = smul.addr %s968, 4
        %s972 = sadd.s32 %s970, %s971
        %s973 = smul.addr %s972, 4
        %s974 = scalar_lea.vmem %s6, %s973
      $region64: #{block_forward.2} parent=55 // pred_fallthru
        _
      // Predicated region
      $region65: #{block_forward.2} parent=55 // pred_check
        %p975 = pneg %p225
      $region66: #{block_forward.2} parent=55 // pred_check_branch
        %977 = sbr.rel (%p975) target = $region68
      $region67: #{block_forward.2} parent=55 // pred_region
        %p978 = scmp.lt.s32.totalorder %s25, 1
        %s979 = scalar_select %p978, %s25, 1
        %p980 = scmp.lt.s32.totalorder %s26, 0
        %s981 = scalar_select %p980, %s26, 0
        %s982 = smul.addr %s979, 4
        %s983 = sadd.s32 %s981, %s982
        %s984 = smul.addr %s983, 4
        %s985 = scalar_lea.vmem %s7, %s984
      $region68: #{block_forward.2} parent=55 // pred_fallthru
        _
    $region56: #{block_forward.2} parent=5 // pred_fallthru
      _
  $region6: #{block_forward.2} parent=0 // loop_footer
    %s18 = sadd.s32 1, %s14
  $region7: #{block_forward.2} parent=0 // loop_footer_branch
    %13 = sbr.rel target = $region3
  $region8: #{block_forward.2} parent=0 // loop_exit
    _

// kernel: block_forward.3
$region0: #{block_forward.3}
  #allocation0 [shape = 'u32[]', space=smem, size = 0x4, offset = 0x4, fixed_abs, tag = 'smem constant byte address 0x4 - core index']
  #allocation1 [shape = 'u32[144,128]{1,0:T(1,128)}', space=vmem, size = 0x12000, scoped, tag = 'internal scratch']
  #allocation2 [shape = 'f32[4,8,1]{2,1,0:T(8,128)}', space=vmem, size = 0x4000, scoped, tag = 'scratch operand']
  #allocation3 [shape = 'f32[4,8,1]{2,1,0:T(8,128)}', space=vmem, size = 0x4000, scoped, tag = 'scratch operand']
  #allocation4 [shape = 'f32[4,8,8]{2,1,0:T(8,128)}', space=vmem, size = 0x4000, scoped, tag = 'scratch operand']
  #allocation5 [shape = 's32[1]{0}', space=sflag, size = 0x4, scoped, tag = 'scoped memory for block_forward.3']
  #allocation6 [shape = 's32[1]{0:T(128)S(6)}', space=smem, size = 0x200, scoped, tag = 'prefetched SMEM operand 0']
  #allocation7 [shape = 's32[1]{0:T(128)S(6)}', space=smem, size = 0x200, scoped, tag = 'prefetched SMEM operand 1']
  %s0 = inlined_call_operand.<no memory space> [shape: s32[1], index: 0, kind: input, shape index: {}, may-alias: {0,1}]
  %s1 = inlined_call_operand.<no memory space> [shape: s32[1], index: 1, kind: input, shape index: {}, may-alias: {0,1}]
  %s2 = inlined_call_operand.vmem [shape: f32[2,8,32], index: 2, kind: input, shape index: {}]
  %s3 = inlined_call_operand.vmem [shape: bf16[2,4,8,8], index: 3, kind: input, shape index: {}]
  %s4 = inlined_call_operand.vmem [shape: bf16[2,4,8,8], index: 4, kind: input, shape index: {}]
  %s5 = inlined_call_operand.vmem [shape: bf16[2,4,8,8], index: 5, kind: input, shape index: {}]
  %s6 = inlined_call_operand.vmem [shape: bf16[32,32], index: 6, kind: input, shape index: {}]
  %s7 = inlined_call_operand.vmem [shape: f32[1,32], index: 7, kind: input, shape index: {}]
  %s8 = inlined_call_operand.vmem [shape: f32[1,32], index: 8, kind: input, shape index: {}]
  %s9 = inlined_call_operand.vmem [shape: f32[1,32], index: 9, kind: input, shape index: {}]
  %s10 = inlined_call_operand.vmem [shape: bf16[32,128], index: 10, kind: input, shape index: {}]
  %s11 = inlined_call_operand.vmem [shape: f32[1,128], index: 11, kind: input, shape index: {}]
  %s12 = inlined_call_operand.vmem [shape: bf16[128,32], index: 12, kind: input, shape index: {}]
  %s13 = inlined_call_operand.vmem [shape: f32[1,32], index: 13, kind: input, shape index: {}]
  %s14 = inlined_call_operand.hbm [shape: f32[2,8,32], index: 14, kind: output, shape index: {}]
  %s15 = sld [smem:[#allocation0]]
  $region93: #{block_forward.3} parent=0
    _
  %s17 = ssub.s32 1, %s15
  %s18 = scalar_select 0, %s17, %s15
  %19 = sst [smem:[#allocation6]] %s0
  %20 = sst [smem:[#allocation7]] %s1
  $region1: #{block_forward.3} parent=0
    #allocation8 [shape = 'u8[8192]{0}', space=vmem, size = 0x2000, scoped, tag = 'output window, operand 0']
    #allocation9 [shape = 's32[2]{0}', space=sflag, size = 0x8, scoped, tag = 'scoped memory for block_forward.3']
    %21 = vsyncpa [#allocation9], 0
    %s22 = scalar_lea.sflag [#allocation9], 1
    %23 = vsyncpa %s22, 0
    loop: start=0, step=1, limit=4
    $region2: #{block_forward.3} parent=1 // loop_pre_header
      _
    $region3: #{block_forward.3} parent=1 // loop_header
      %s25 = sphi 0, %s29
      %p26 = scmp.ge.s32.totalorder %s25, 4
      %s32 = sphi 0, %s44
      %s33 = sphi 0, %s40
      %s34 = sphi 0, %s32
      %s35 = sphi 0, %s33
      %s36 = sphi 0, %s34
      %s37 = sphi 0, %s35
      %s51 = sphi 0, %s53
      %s54 = sphi 0, %s51
      %s55 = sphi 0, %s54
      %s71 = sphi 0, %s55
      %s81 = sphi 0, %s83
      %s84 = sphi 0, %s81
      %s85 = sphi 0, %s84
      %s101 = sphi 0, %s85
      %s111 = sphi 0, %s113
      %s114 = sphi 0, %s111
      %s115 = sphi 0, %s114
      %s131 = sphi 0, %s115
      %s141 = sphi 0, %s143
      %s144 = sphi 0, %s141
      %s145 = sphi 0, %s144
      %s161 = sphi 0, %s145
      %s165 = sphi 0, %s165
      %s167 = sphi 0, %s165
      %s168 = sphi 0, %s167
      %s182 = sphi 0, %s168
      %s186 = sphi 0, %s186
      %s188 = sphi 0, %s186
      %s189 = sphi 0, %s188
      %s203 = sphi 0, %s189
      %s207 = sphi 0, %s207
      %s209 = sphi 0, %s207
      %s210 = sphi 0, %s209
      %s224 = sphi 0, %s210
      %s228 = sphi 0, %s228
      %s230 = sphi 0, %s228
      %s231 = sphi 0, %s230
      %s245 = sphi 0, %s231
      %s249 = sphi 0, %s249
      %s251 = sphi 0, %s249
      %s252 = sphi 0, %s251
      %s266 = sphi 0, %s252
      %s270 = sphi 0, %s270
      %s272 = sphi 0, %s270
      %s273 = sphi 0, %s272
      %s287 = sphi 0, %s273
      %s291 = sphi 0, %s291
      %s293 = sphi 0, %s291
      %s294 = sphi 0, %s293
      %s308 = sphi 0, %s294
      %s312 = sphi 0, %s312
      %s314 = sphi 0, %s312
      %s315 = sphi 0, %s314
      %s329 = sphi 0, %s315
      %s339 = sphi 0, %s341
      %s342 = sphi 0, %s339
      %s343 = sphi 0, %s342
      %s359 = sphi 0, %s343
    $region4: #{block_forward.3} parent=1 // loop_header_branch
      %28 = sbr.rel (%p26) target = $region8
    $region5: #{block_forward.3} parent=1 // loop_body
      %s30 = ssub.s32 %s25, 1
      %s31 = ssub.s32 %s25, 2
      %s38 = sadd.s32 1, %s33
      %p39 = scmp.ge.s32.totalorder %s38, 1
      %s40 = scalar_select %p39, 0, %s38
      %s41 = sadd.s32 1, %s32
      %s42 = scalar_select %p39, %s41, %s32
      %p43 = scmp.ge.s32.totalorder %s42, 2
      %s44 = scalar_select %p43, 0, %s42
      %s45 = sld [smem:[#allocation6 + %s33]]
      %s46 = sld [smem:[#allocation6 + %s40]]
      %s47 = ssub.s32 %s32, %s44
      %s48 = ssub.s32 %s45, %s46
      %s49 = sor.u32 %s47, %s48
      %p50 = scmp.eq.s32.totalorder %s49, 0
      %s52 = sadd.s32 %s51, 1
      %s53 = scalar_select %p50, %s51, %s52
      %p56 = pneg %p50
      %p57 = scmp.eq.s32.totalorder %s25, 1
      %p58 = por %p56, %p57
      %p59 = scmp.ne.s32.totalorder %s51, %s54
      %p60 = scmp.eq.s32.totalorder %s25, 0
      %p61 = por %p59, %p60
      %p62 = scmp.ne.s32.totalorder %s51, %s54
      %p63 = scmp.eq.s32.totalorder %s30, 1
      %p64 = por %p62, %p63
      %p65 = scmp.ne.s32.totalorder %s54, %s55
      %p66 = scmp.eq.s32.totalorder %s30, 0
      %p67 = por %p65, %p66
      %p68 = scmp.ne.s32.totalorder %s54, %s55
      %p69 = scmp.eq.s32.totalorder %s31, 1
      %p70 = por %p68, %p69
      %p72 = scmp.ne.s32.totalorder %s55, %s71
      %p73 = scmp.eq.s32.totalorder %s31, 0
      %p74 = por %p72, %p73
      %s75 = sld [smem:[#allocation6 + %s33]]
      %s76 = sld [smem:[#allocation6 + %s40]]
      %s77 = ssub.s32 %s32, %s44
      %s78 = ssub.s32 %s75, %s76
      %s79 = sor.u32 %s77, %s78
      %p80 = scmp.eq.s32.totalorder %s79, 0
      %s82 = sadd.s32 %s81, 1
      %s83 = scalar_select %p80, %s81, %s82
      %p86 = pneg %p80
      %p87 = scmp.eq.s32.totalorder %s25, 1
      %p88 = por %p86, %p87
      %p89 = scmp.ne.s32.totalorder %s81, %s84
      %p90 = scmp.eq.s32.totalorder %s25, 0
      %p91 = por %p89, %p90
      %p92 = scmp.ne.s32.totalorder %s81, %s84
      %p93 = scmp.eq.s32.totalorder %s30, 1
      %p94 = por %p92, %p93
      %p95 = scmp.ne.s32.totalorder %s84, %s85
      %p96 = scmp.eq.s32.totalorder %s30, 0
      %p97 = por %p95, %p96
      %p98 = scmp.ne.s32.totalorder %s84, %s85
      %p99 = scmp.eq.s32.totalorder %s31, 1
      %p100 = por %p98, %p99
      %p102 = scmp.ne.s32.totalorder %s85, %s101
      %p103 = scmp.eq.s32.totalorder %s31, 0
      %p104 = por %p102, %p103
      %s105 = sld [smem:[#allocation7 + %s33]]
      %s106 = sld [smem:[#allocation7 + %s40]]
      %s107 = ssub.s32 %s32, %s44
      %s108 = ssub.s32 %s105, %s106
      %s109 = sor.u32 %s107, %s108
      %p110 = scmp.eq.s32.totalorder %s109, 0
      %s112 = sadd.s32 %s111, 1
      %s113 = scalar_select %p110, %s111, %s112
      %p116 = pneg %p110
      %p117 = scmp.eq.s32.totalorder %s25, 1
      %p118 = por %p116, %p117
      %p119 = scmp.ne.s32.totalorder %s111, %s114
      %p120 = scmp.eq.s32.totalorder %s25, 0
      %p121 = por %p119, %p120
      %p122 = scmp.ne.s32.totalorder %s111, %s114
      %p123 = scmp.eq.s32.totalorder %s30, 1
      %p124 = por %p122, %p123
      %p125 = scmp.ne.s32.totalorder %s114, %s115
      %p126 = scmp.eq.s32.totalorder %s30, 0
      %p127 = por %p125, %p126
      %p128 = scmp.ne.s32.totalorder %s114, %s115
      %p129 = scmp.eq.s32.totalorder %s31, 1
      %p130 = por %p128, %p129
      %p132 = scmp.ne.s32.totalorder %s115, %s131
      %p133 = scmp.eq.s32.totalorder %s31, 0
      %p134 = por %p132, %p133
      %s135 = sld [smem:[#allocation7 + %s33]]
      %s136 = sld [smem:[#allocation7 + %s40]]
      %s137 = ssub.s32 %s32, %s44
      %s138 = ssub.s32 %s135, %s136
      %s139 = sor.u32 %s137, %s138
      %p140 = scmp.eq.s32.totalorder %s139, 0
      %s142 = sadd.s32 %s141, 1
      %s143 = scalar_select %p140, %s141, %s142
      %p146 = pneg %p140
      %p147 = scmp.eq.s32.totalorder %s25, 1
      %p148 = por %p146, %p147
      %p149 = scmp.ne.s32.totalorder %s141, %s144
      %p150 = scmp.eq.s32.totalorder %s25, 0
      %p151 = por %p149, %p150
      %p152 = scmp.ne.s32.totalorder %s141, %s144
      %p153 = scmp.eq.s32.totalorder %s30, 1
      %p154 = por %p152, %p153
      %p155 = scmp.ne.s32.totalorder %s144, %s145
      %p156 = scmp.eq.s32.totalorder %s30, 0
      %p157 = por %p155, %p156
      %p158 = scmp.ne.s32.totalorder %s144, %s145
      %p159 = scmp.eq.s32.totalorder %s31, 1
      %p160 = por %p158, %p159
      %p162 = scmp.ne.s32.totalorder %s145, %s161
      %p163 = scmp.eq.s32.totalorder %s31, 0
      %p164 = por %p162, %p163
      %s166 = sadd.s32 %s165, 1
      %p169 = scmp.eq.s32.totalorder %s25, 1
      %p170 = scmp.ne.s32.totalorder %s165, %s167
      %p171 = scmp.eq.s32.totalorder %s25, 0
      %p172 = por %p170, %p171
      %p173 = scmp.ne.s32.totalorder %s165, %s167
      %p174 = scmp.eq.s32.totalorder %s30, 1
      %p175 = por %p173, %p174
      %p176 = scmp.ne.s32.totalorder %s167, %s168
      %p177 = scmp.eq.s32.totalorder %s30, 0
      %p178 = por %p176, %p177
      %p179 = scmp.ne.s32.totalorder %s167, %s168
      %p180 = scmp.eq.s32.totalorder %s31, 1
      %p181 = por %p179, %p180
      %p183 = scmp.ne.s32.totalorder %s168, %s182
      %p184 = scmp.eq.s32.totalorder %s31, 0
      %p185 = por %p183, %p184
      %s187 = sadd.s32 %s186, 1
      %p190 = scmp.eq.s32.totalorder %s25, 1
      %p191 = scmp.ne.s32.totalorder %s186, %s188
      %p192 = scmp.eq.s32.totalorder %s25, 0
      %p193 = por %p191, %p192
      %p194 = scmp.ne.s32.totalorder %s186, %s188
      %p195 = scmp.eq.s32.totalorder %s30, 1
      %p196 = por %p194, %p195
      %p197 = scmp.ne.s32.totalorder %s188, %s189
      %p198 = scmp.eq.s32.totalorder %s30, 0
      %p199 = por %p197, %p198
      %p200 = scmp.ne.s32.totalorder %s188, %s189
      %p201 = scmp.eq.s32.totalorder %s31, 1
      %p202 = por %p200, %p201
      %p204 = scmp.ne.s32.totalorder %s189, %s203
      %p205 = scmp.eq.s32.totalorder %s31, 0
      %p206 = por %p204, %p205
      %s208 = sadd.s32 %s207, 1
      %p211 = scmp.eq.s32.totalorder %s25, 1
      %p212 = scmp.ne.s32.totalorder %s207, %s209
      %p213 = scmp.eq.s32.totalorder %s25, 0
      %p214 = por %p212, %p213
      %p215 = scmp.ne.s32.totalorder %s207, %s209
      %p216 = scmp.eq.s32.totalorder %s30, 1
      %p217 = por %p215, %p216
      %p218 = scmp.ne.s32.totalorder %s209, %s210
      %p219 = scmp.eq.s32.totalorder %s30, 0
      %p220 = por %p218, %p219
      %p221 = scmp.ne.s32.totalorder %s209, %s210
      %p222 = scmp.eq.s32.totalorder %s31, 1
      %p223 = por %p221, %p222
      %p225 = scmp.ne.s32.totalorder %s210, %s224
      %p226 = scmp.eq.s32.totalorder %s31, 0
      %p227 = por %p225, %p226
      %s229 = sadd.s32 %s228, 1
      %p232 = scmp.eq.s32.totalorder %s25, 1
      %p233 = scmp.ne.s32.totalorder %s228, %s230
      %p234 = scmp.eq.s32.totalorder %s25, 0
      %p235 = por %p233, %p234
      %p236 = scmp.ne.s32.totalorder %s228, %s230
      %p237 = scmp.eq.s32.totalorder %s30, 1
      %p238 = por %p236, %p237
      %p239 = scmp.ne.s32.totalorder %s230, %s231
      %p240 = scmp.eq.s32.totalorder %s30, 0
      %p241 = por %p239, %p240
      %p242 = scmp.ne.s32.totalorder %s230, %s231
      %p243 = scmp.eq.s32.totalorder %s31, 1
      %p244 = por %p242, %p243
      %p246 = scmp.ne.s32.totalorder %s231, %s245
      %p247 = scmp.eq.s32.totalorder %s31, 0
      %p248 = por %p246, %p247
      %s250 = sadd.s32 %s249, 1
      %p253 = scmp.eq.s32.totalorder %s25, 1
      %p254 = scmp.ne.s32.totalorder %s249, %s251
      %p255 = scmp.eq.s32.totalorder %s25, 0
      %p256 = por %p254, %p255
      %p257 = scmp.ne.s32.totalorder %s249, %s251
      %p258 = scmp.eq.s32.totalorder %s30, 1
      %p259 = por %p257, %p258
      %p260 = scmp.ne.s32.totalorder %s251, %s252
      %p261 = scmp.eq.s32.totalorder %s30, 0
      %p262 = por %p260, %p261
      %p263 = scmp.ne.s32.totalorder %s251, %s252
      %p264 = scmp.eq.s32.totalorder %s31, 1
      %p265 = por %p263, %p264
      %p267 = scmp.ne.s32.totalorder %s252, %s266
      %p268 = scmp.eq.s32.totalorder %s31, 0
      %p269 = por %p267, %p268
      %s271 = sadd.s32 %s270, 1
      %p274 = scmp.eq.s32.totalorder %s25, 1
      %p275 = scmp.ne.s32.totalorder %s270, %s272
      %p276 = scmp.eq.s32.totalorder %s25, 0
      %p277 = por %p275, %p276
      %p278 = scmp.ne.s32.totalorder %s270, %s272
      %p279 = scmp.eq.s32.totalorder %s30, 1
      %p280 = por %p278, %p279
      %p281 = scmp.ne.s32.totalorder %s272, %s273
      %p282 = scmp.eq.s32.totalorder %s30, 0
      %p283 = por %p281, %p282
      %p284 = scmp.ne.s32.totalorder %s272, %s273
      %p285 = scmp.eq.s32.totalorder %s31, 1
      %p286 = por %p284, %p285
      %p288 = scmp.ne.s32.totalorder %s273, %s287
      %p289 = scmp.eq.s32.totalorder %s31, 0
      %p290 = por %p288, %p289
      %s292 = sadd.s32 %s291, 1
      %p295 = scmp.eq.s32.totalorder %s25, 1
      %p296 = scmp.ne.s32.totalorder %s291, %s293
      %p297 = scmp.eq.s32.totalorder %s25, 0
      %p298 = por %p296, %p297
      %p299 = scmp.ne.s32.totalorder %s291, %s293
      %p300 = scmp.eq.s32.totalorder %s30, 1
      %p301 = por %p299, %p300
      %p302 = scmp.ne.s32.totalorder %s293, %s294
      %p303 = scmp.eq.s32.totalorder %s30, 0
      %p304 = por %p302, %p303
      %p305 = scmp.ne.s32.totalorder %s293, %s294
      %p306 = scmp.eq.s32.totalorder %s31, 1
      %p307 = por %p305, %p306
      %p309 = scmp.ne.s32.totalorder %s294, %s308
      %p310 = scmp.eq.s32.totalorder %s31, 0
      %p311 = por %p309, %p310
      %s313 = sadd.s32 %s312, 1
      %p316 = scmp.eq.s32.totalorder %s25, 1
      %p317 = scmp.ne.s32.totalorder %s312, %s314
      %p318 = scmp.eq.s32.totalorder %s25, 0
      %p319 = por %p317, %p318
      %p320 = scmp.ne.s32.totalorder %s312, %s314
      %p321 = scmp.eq.s32.totalorder %s30, 1
      %p322 = por %p320, %p321
      %p323 = scmp.ne.s32.totalorder %s314, %s315
      %p324 = scmp.eq.s32.totalorder %s30, 0
      %p325 = por %p323, %p324
      %p326 = scmp.ne.s32.totalorder %s314, %s315
      %p327 = scmp.eq.s32.totalorder %s31, 1
      %p328 = por %p326, %p327
      %p330 = scmp.ne.s32.totalorder %s315, %s329
      %p331 = scmp.eq.s32.totalorder %s31, 0
      %p332 = por %p330, %p331
      %s333 = sld [smem:[#allocation6 + %s33]]
      %s334 = sld [smem:[#allocation6 + %s40]]
      %s335 = ssub.s32 %s32, %s44
      %s336 = ssub.s32 %s333, %s334
      %s337 = sor.u32 %s335, %s336
      %p338 = scmp.eq.s32.totalorder %s337, 0
      %s340 = sadd.s32 %s339, 1
      %s341 = scalar_select %p338, %s339, %s340
      %p344 = pneg %p338
      %p345 = scmp.eq.s32.totalorder %s25, 1
      %p346 = por %p344, %p345
      %p347 = scmp.ne.s32.totalorder %s339, %s342
      %p348 = scmp.eq.s32.totalorder %s25, 0
      %p349 = por %p347, %p348
      %p350 = scmp.ne.s32.totalorder %s339, %s342
      %p351 = scmp.eq.s32.totalorder %s30, 1
      %p352 = por %p350, %p351
      %p353 = scmp.ne.s32.totalorder %s342, %s343
      %p354 = scmp.eq.s32.totalorder %s30, 0
      %p355 = por %p353, %p354
      %p356 = scmp.ne.s32.totalorder %s342, %s343
      %p357 = scmp.eq.s32.totalorder %s31, 1
      %p358 = por %p356, %p357
      %p360 = scmp.ne.s32.totalorder %s343, %s359
      %p361 = scmp.eq.s32.totalorder %s31, 0
      %p362 = por %p360, %p361
      %p363 = scmp.le.s32.totalorder 1, %s25
      %p364 = scmp.lt.s32.totalorder %s25, 3
      %p365 = pnand %p363, %p364
      %p366 = pneg %p365
      // Predicated region
      $region9: #{block_forward.3} parent=5 // pred_check
        _
      $region10: #{block_forward.3} parent=5 // pred_check_branch
        %368 = sbr.rel (%p365) target = $region12
      $region11: #{block_forward.3} parent=5 // pred_region
        %s369 = ssub.s32 %s25, 1
        // Predicated region
        $region13: #{block_forward.3} parent=11 // pred_check
          %p370 = pneg %p178
        $region14: #{block_forward.3} parent=11 // pred_check_branch
          %372 = sbr.rel (%p370) target = $region16
        $region15: #{block_forward.3} parent=11 // pred_region
          _
        $region16: #{block_forward.3} parent=11 // pred_fallthru
          _
        // Predicated region
        $region17: #{block_forward.3} parent=11 // pred_check
          %p373 = pneg %p199
        $region18: #{block_forward.3} parent=11 // pred_check_branch
          %375 = sbr.rel (%p373) target = $region20
        $region19: #{block_forward.3} parent=11 // pred_region
          _
        $region20: #{block_forward.3} parent=11 // pred_fallthru
          _
        // Predicated region
        $region21: #{block_forward.3} parent=11 // pred_check
          %p376 = pneg %p220
        $region22: #{block_forward.3} parent=11 // pred_check_branch
          %378 = sbr.rel (%p376) target = $region24
        $region23: #{block_forward.3} parent=11 // pred_region
          _
        $region24: #{block_forward.3} parent=11 // pred_fallthru
          _
        // Predicated region
        $region25: #{block_forward.3} parent=11 // pred_check
          %p379 = pneg %p241
        $region26: #{block_forward.3} parent=11 // pred_check_branch
          %381 = sbr.rel (%p379) target = $region28
        $region27: #{block_forward.3} parent=11 // pred_region
          _
        $region28: #{block_forward.3} parent=11 // pred_fallthru
          _
        // Predicated region
        $region29: #{block_forward.3} parent=11 // pred_check
          %p382 = pneg %p262
        $region30: #{block_forward.3} parent=11 // pred_check_branch
          %384 = sbr.rel (%p382) target = $region32
        $region31: #{block_forward.3} parent=11 // pred_region
          _
        $region32: #{block_forward.3} parent=11 // pred_fallthru
          _
        // Predicated region
        $region33: #{block_forward.3} parent=11 // pred_check
          %p385 = pneg %p283
        $region34: #{block_forward.3} parent=11 // pred_check_branch
          %387 = sbr.rel (%p385) target = $region36
        $region35: #{block_forward.3} parent=11 // pred_region
          _
        $region36: #{block_forward.3} parent=11 // pred_fallthru
          _
        // Predicated region
        $region37: #{block_forward.3} parent=11 // pred_check
          %p388 = pneg %p304
        $region38: #{block_forward.3} parent=11 // pred_check_branch
          %390 = sbr.rel (%p388) target = $region40
        $region39: #{block_forward.3} parent=11 // pred_region
          _
        $region40: #{block_forward.3} parent=11 // pred_fallthru
          _
        // Predicated region
        $region41: #{block_forward.3} parent=11 // pred_check
          %p391 = pneg %p325
        $region42: #{block_forward.3} parent=11 // pred_check_branch
          %393 = sbr.rel (%p391) target = $region44
        $region43: #{block_forward.3} parent=11 // pred_region
          _
        $region44: #{block_forward.3} parent=11 // pred_fallthru
          _
      $region12: #{block_forward.3} parent=5 // pred_fallthru
        _
      %p394 = scmp.lt.s32.totalorder %s25, 2
      // Predicated region
      $region45: #{block_forward.3} parent=5 // pred_check
        %p395 = pneg %p394
      $region46: #{block_forward.3} parent=5 // pred_check_branch
        %397 = sbr.rel (%p395) target = $region48
      $region47: #{block_forward.3} parent=5 // pred_region
        // Predicated region
        $region49: #{block_forward.3} parent=47 // pred_check
          %p398 = pneg %p61
        $region50: #{block_forward.3} parent=47 // pred_check_branch
          %400 = sbr.rel (%p398) target = $region52
        $region51: #{block_forward.3} parent=47 // pred_region
          %s401 = sld [smem:[#allocation6 + %s33]]
          %p402 = scmp.lt.s32.totalorder %s32, 1
          %s403 = scalar_select %p402, %s32, 1
          %p404 = scmp.lt.s32.totalorder %s401, 0
          %s405 = scalar_select %p404, %s401, 0
          %s406 = sadd.s32 %s405, %s403
          %s407 = smul.addr %s406, 8
          %s408 = scalar_lea.vmem %s2, %s407
          %s409 = sld [smem:[#allocation6 + %s33]]
        $region52: #{block_forward.3} parent=47 // pred_fallthru
          _
        // Predicated region
        $region53: #{block_forward.3} parent=47 // pred_check
          %p410 = pneg %p91
        $region54: #{block_forward.3} parent=47 // pred_check_branch
          %412 = sbr.rel (%p410) target = $region56
        $region55: #{block_forward.3} parent=47 // pred_region
          %s413 = sld [smem:[#allocation6 + %s33]]
          %p414 = scmp.lt.s32.totalorder %s32, 1
          %s415 = scalar_select %p414, %s32, 1
          %p416 = scmp.lt.s32.totalorder %s413, 0
          %s417 = scalar_select %p416, %s413, 0
          %s418 = smul.addr %s415, 4
          %s419 = sadd.s32 %s417, %s418
          %s420 = smul.addr %s419, 4
          %s421 = scalar_lea.vmem %s3, %s420
          %s422 = sld [smem:[#allocation6 + %s33]]
        $region56: #{block_forward.3} parent=47 // pred_fallthru
          _
        // Predicated region
        $region57: #{block_forward.3} parent=47 // pred_check
          %p423 = pneg %p121
        $region58: #{block_forward.3} parent=47 // pred_check_branch
          %425 = sbr.rel (%p423) target = $region60
        $region59: #{block_forward.3} parent=47 // pred_region
          %s426 = sld [smem:[#allocation7 + %s33]]
          %p427 = scmp.lt.s32.totalorder %s32, 1
          %s428 = scalar_select %p427, %s32, 1
          %p429 = scmp.lt.s32.totalorder %s426, 0
          %s430 = scalar_select %p429, %s426, 0
          %s431 = smul.addr %s428, 4
          %s432 = sadd.s32 %s430, %s431
          %s433 = smul.addr %s432, 4
          %s434 = scalar_lea.vmem %s4, %s433
          %s435 = sld [smem:[#allocation7 + %s33]]
        $region60: #{block_forward.3} parent=47 // pred_fallthru
          _
        // Predicated region
        $region61: #{block_forward.3} parent=47 // pred_check
          %p436 = pneg %p151
        $region62: #{block_forward.3} parent=47 // pred_check_branch
          %438 = sbr.rel (%p436) target = $region64
        $region63: #{block_forward.3} parent=47 // pred_region
          %s439 = sld [smem:[#allocation7 + %s33]]
          %p440 = scmp.lt.s32.totalorder %s32, 1
          %s441 = scalar_select %p440, %s32, 1
          %p442 = scmp.lt.s32.totalorder %s439, 0
          %s443 = scalar_select %p442, %s439, 0
          %s444 = smul.addr %s441, 4
          %s445 = sadd.s32 %s443, %s444
          %s446 = smul.addr %s445, 4
          %s447 = scalar_lea.vmem %s5, %s446
          %s448 = sld [smem:[#allocation7 + %s33]]
        $region64: #{block_forward.3} parent=47 // pred_fallthru
          _
      $region48: #{block_forward.3} parent=5 // pred_fallthru
        _
      %p449 = scmp.le.s32.totalorder 1, %s25
      %p450 = scmp.lt.s32.totalorder %s25, 3
      %p451 = pnand %p449, %p450
      %p452 = pneg %p451
      // Predicated region
      $region65: #{block_forward.3} parent=5 // pred_check
        _
      $region66: #{block_forward.3} parent=5 // pred_check_branch
        %454 = sbr.rel (%p451) target = $region68
      $region67: #{block_forward.3} parent=5 // pred_region
        %s455 = ssub.s32 %s25, 1
        %s456 = sld [smem:[#allocation6 + %s35]]
        %p457 = scmp.lt.s32.totalorder %s34, 1
        %s458 = scalar_select %p457, %s34, 1
        %p459 = scmp.lt.s32.totalorder %s456, 0
        %s460 = scalar_select %p459, %s456, 0
        %s461 = sadd.s32 %s460, %s458
        %s462 = smul.addr %s461, 8
        %s463 = scalar_lea.vmem %s2, %s462
        %p464 = pneg %p67
        %p465 = pneg %p64
        %s466 = sld [smem:[#allocation6 + %s35]]
        %p467 = scmp.lt.s32.totalorder %s34, 1
        %s468 = scalar_select %p467, %s34, 1
        %p469 = scmp.lt.s32.totalorder %s466, 0
        %s470 = scalar_select %p469, %s466, 0
        %s471 = smul.addr %s468, 4
        %s472 = sadd.s32 %s470, %s471
        %s473 = smul.addr %s472, 4
        %s474 = scalar_lea.vmem %s3, %s473
        %p475 = pneg %p97
        %p476 = pneg %p94
        %s477 = sld [smem:[#allocation7 + %s35]]
        %p478 = scmp.lt.s32.totalorder %s34, 1
        %s479 = scalar_select %p478, %s34, 1
        %p480 = scmp.lt.s32.totalorder %s477, 0
        %s481 = scalar_select %p480, %s477, 0
        %s482 = smul.addr %s479, 4
        %s483 = sadd.s32 %s481, %s482
        %s484 = smul.addr %s483, 4
        %s485 = scalar_lea.vmem %s4, %s484
        %p486 = pneg %p127
        %p487 = pneg %p124
        %s488 = sld [smem:[#allocation7 + %s35]]
        %p489 = scmp.lt.s32.totalorder %s34, 1
        %s490 = scalar_select %p489, %s34, 1
        %p491 = scmp.lt.s32.totalorder %s488, 0
        %s492 = scalar_select %p491, %s488, 0
        %s493 = smul.addr %s490, 4
        %s494 = sadd.s32 %s492, %s493
        %s495 = smul.addr %s494, 4
        %s496 = scalar_lea.vmem %s5, %s495
        %p497 = pneg %p157
        %p498 = pneg %p154
        %p499 = pneg %p178
        %p500 = pneg %p175
        %p501 = pneg %p199
        %p502 = pneg %p196
        %p503 = pneg %p220
        %p504 = pneg %p217
        %p505 = pneg %p241
        %p506 = pneg %p238
        %p507 = pneg %p262
        %p508 = pneg %p259
        %p509 = pneg %p283
        %p510 = pneg %p280
        %p511 = pneg %p304
        %p512 = pneg %p301
        %p513 = pneg %p325
        %p514 = pneg %p322
        %p515 = pneg %p355
        %p516 = pneg %p352
        %s517 = sand.u32 %s342, 1
        %s518 = scalar_lea.sflag [#allocation9], %s517
        %s519 = sand.u32 %s342, 1
        %s520 = smul.addr %s519, 8
        %s521 = scalar_lea.vmem [#allocation8], %s520
        %s522 = sld [smem:[#allocation6 + %s35]]
        %p523 = scmp.lt.s32.totalorder %s34, 1
        %s524 = scalar_select %p523, %s34, 1
        %p525 = scmp.lt.s32.totalorder %s522, 0
        %s526 = scalar_select %p525, %s522, 0
        %s527 = sadd.s32 %s526, %s524
        %s528 = smul.addr %s527, 8
        %s529 = scalar_lea.vmem %s2, %s528
        %s530 = sld [smem:[#allocation6 + %s35]]
        %s531 = sld [smem:[#allocation6 + %s35]]
        %p532 = scmp.lt.s32.totalorder %s34, 1
        %s533 = scalar_select %p532, %s34, 1
        %p534 = scmp.lt.s32.totalorder %s531, 0
        %s535 = scalar_select %p534, %s531, 0
        %s536 = smul.addr %s533, 4
        %s537 = sadd.s32 %s535, %s536
        %s538 = smul.addr %s537, 4
        %s539 = scalar_lea.vmem %s3, %s538
        %s540 = sld [smem:[#allocation6 + %s35]]
        %s541 = sld [smem:[#allocation7 + %s35]]
        %p542 = scmp.lt.s32.totalorder %s34, 1
        %s543 = scalar_select %p542, %s34, 1
        %p544 = scmp.lt.s32.totalorder %s541, 0
        %s545 = scalar_select %p544, %s541, 0
        %s546 = smul.addr %s543, 4
        %s547 = sadd.s32 %s545, %s546
        %s548 = smul.addr %s547, 4
        %s549 = scalar_lea.vmem %s4, %s548
        %s550 = sld [smem:[#allocation7 + %s35]]
        %s551 = sld [smem:[#allocation7 + %s35]]
        %p552 = scmp.lt.s32.totalorder %s34, 1
        %s553 = scalar_select %p552, %s34, 1
        %p554 = scmp.lt.s32.totalorder %s551, 0
        %s555 = scalar_select %p554, %s551, 0
        %s556 = smul.addr %s553, 4
        %s557 = sadd.s32 %s555, %s556
        %s558 = smul.addr %s557, 4
        %s559 = scalar_lea.vmem %s5, %s558
        %s560 = sld [smem:[#allocation7 + %s35]]
        %s561 = sld [smem:[#allocation6 + %s35]]
        %s563 = sld [smem:[#allocation6 + %s35]]
        %s564 = sld [smem:[#allocation7 + %s35]]
        %p565 = scmp.eq.s32.totalorder %s564, 0
        // Predicated region
        $region69: #{block_forward.3} parent=67 // pred_check
          %p566 = pneg %p565
        $region70: #{block_forward.3} parent=67 // pred_check_branch
          %568 = sbr.rel (%p566) target = $region72
        $region71: #{block_forward.3} parent=67 // pred_region
          %vm569 = vcmask 7168
          %570 = vst.msk [vmem:[#allocation2] sm:$0xff] %vm569, -1e+30
          %571 = vst.msk [vmem:[#allocation2 + $0x8] sm:$0xff] %vm569, -1e+30
          %572 = vst.msk [vmem:[#allocation2 + $0x10] sm:$0xff] %vm569, -1e+30
          %573 = vst.msk [vmem:[#allocation2 + $0x18] sm:$0xff] %vm569, -1e+30
          %574 = vst.msk [vmem:[#allocation3] sm:$0xff] %vm569, 0.0
          %575 = vst.msk [vmem:[#allocation3 + $0x8] sm:$0xff] %vm569, 0.0
          %576 = vst.msk [vmem:[#allocation3 + $0x10] sm:$0xff] %vm569, 0.0
          %577 = vst.msk [vmem:[#allocation3 + $0x18] sm:$0xff] %vm569, 0.0
          %vm578 = vcmask 64512
          %579 = vst.msk [vmem:[#allocation4] sm:$0xff] %vm578, 0.0
          %580 = vst.msk [vmem:[#allocation4 + $0x8] sm:$0xff] %vm578, 0.0
          %581 = vst.msk [vmem:[#allocation4 + $0x10] sm:$0xff] %vm578, 0.0
          %582 = vst.msk [vmem:[#allocation4 + $0x18] sm:$0xff] %vm578, 0.0
        $region72: #{block_forward.3} parent=67 // pred_fallthru
          _
        %v583 = vld [vmem:[%s539] sm:$0xf]
        %v584 = vld [vmem:[%s539 + $0x4] sm:$0xf]
        %v585 = vld [vmem:[%s539 + $0x8] sm:$0xf]
        %v586 = vld [vmem:[%s539 + $0xc] sm:$0xf]
        %v587 = vld [vmem:[%s549] sm:$0xf]
        %v588 = vld [vmem:[%s549 + $0x4] sm:$0xf]
        %v589 = vld [vmem:[%s549 + $0x8] sm:$0xf]
        %v590 = vld [vmem:[%s549 + $0xc] sm:$0xf]
        %v591 = vld [vmem:[%s559] sm:$0xf]
        %v592 = vld [vmem:[%s559 + $0x4] sm:$0xf]
        %v593 = vld [vmem:[%s559 + $0x8] sm:$0xf]
        %v594 = vld [vmem:[%s559 + $0xc] sm:$0xf]
        %p595 = scmp.lt.s32.totalorder %s564, %s563
        // Predicated region
        $region73: #{block_forward.3} parent=67 // pred_check
          %p596 = pneg %p595
        $region74: #{block_forward.3} parent=67 // pred_check_branch
          %598 = sbr.rel (%p596) target = $region76
        $region75: #{block_forward.3} parent=67 // pred_region
          %vm599 = vcmask 64512
          %v601 = vsel %vm599, %v583, 0
          %v604 = vsel %vm599, %v587, 0
          %606 = vmatprep.subr.bf16.mxu0 0
          %607 = vmatpush1.bf16.xpose.msra.mxu0 %v604
          %608 = vmatprep.subr.bf16.mxu0 0
          %609 = vmatpush1.bf16.xpose.msra.mxu0 0
          %610 = vmatprep.subr.bf16.mxu0 0
          %611 = vmatpush1.bf16.xpose.msra.mxu0 0
          %612 = vmatprep.subr.bf16.mxu0 0
          %613 = vmatpush1.bf16.xpose.msra.mxu0 0
          %614 = vmatprep.subr.bf16.mxu0 0
          %615 = vmatpush1.bf16.xpose.msra.mxu0 0
          %616 = vmatprep.subr.bf16.mxu0 0
          %617 = vmatpush1.bf16.xpose.msra.mxu0 0
          %618 = vmatprep.subr.bf16.mxu0 0
          %619 = vmatpush1.bf16.xpose.msra.mxu0 0
          %620 = vmatprep.subr.bf16.mxu0 0
          %621 = vmatpush1.bf16.xpose.msra.mxu0 0
          %622 = vmatprep.subr.bf16.mxu0 0
          %623 = vmatpush1.bf16.xpose.msra.mxu0 0
          %624 = vmatprep.subr.bf16.mxu0 0
          %625 = vmatpush1.bf16.xpose.msra.mxu0 0
          %626 = vmatprep.subr.bf16.mxu0 0
          %627 = vmatpush1.bf16.xpose.msra.mxu0 0
          %628 = vmatprep.subr.bf16.mxu0 0
          %629 = vmatpush1.bf16.xpose.msra.mxu0 0
          %630 = vmatprep.subr.bf16.mxu0 0
          %631 = vmatpush1.bf16.xpose.msra.mxu0 0
          %632 = vmatprep.subr.bf16.mxu0 0
          %633 = vmatpush1.bf16.xpose.msra.mxu0 0
          %634 = vmatprep.subr.bf16.mxu0 0
          %635 = vmatpush1.bf16.xpose.msra.mxu0 0
          %636 = vmatprep.subr.bf16.mxu0 0
          %637 = vmatpush1.bf16.xpose.msra.mxu0 0
          %638 = vmatprep.mubr.bf16.mxu0 0
          %639 = vmatmul.mubr.bf16.gmra.mrb[0].mxu0 %v601
          %v640 = vpop.f32.mrb[0].mxu0
          %v641 = vadd.f32 0.0, %v640
          %v642 = vpop.f32.mrb[0].mxu0
          %v643 = vpop.f32.mrb[0].mxu0
          %v644 = vpop.f32.mrb[0].mxu0
          %645 = vdwg.mxu0
          %v647 = vsel %vm599, %v584, 0
          %v650 = vsel %vm599, %v588, 0
          %652 = vmatprep.subr.bf16.mxu0 0
          %653 = vmatpush1.bf16.xpose.msra.mxu0 %v650
          %654 = vmatprep.subr.bf16.mxu0 0
          %655 = vmatpush1.bf16.xpose.msra.mxu0 0
          %656 = vmatprep.subr.bf16.mxu0 0
          %657 = vmatpush1.bf16.xpose.msra.mxu0 0
          %658 = vmatprep.subr.bf16.mxu0 0
          %659 = vmatpush1.bf16.xpose.msra.mxu0 0
          %660 = vmatprep.subr.bf16.mxu0 0
          %661 = vmatpush1.bf16.xpose.msra.mxu0 0
          %662 = vmatprep.subr.bf16.mxu0 0
          %663 = vmatpush1.bf16.xpose.msra.mxu0 0
          %664 = vmatprep.subr.bf16.mxu0 0
          %665 = vmatpush1.bf16.xpose.msra.mxu0 0
          %666 = vmatprep.subr.bf16.mxu0 0
          %667 = vmatpush1.bf16.xpose.msra.mxu0 0
          %668 = vmatprep.subr.bf16.mxu0 0
          %669 = vmatpush1.bf16.xpose.msra.mxu0 0
          %670 = vmatprep.subr.bf16.mxu0 0
          %671 = vmatpush1.bf16.xpose.msra.mxu0 0
          %672 = vmatprep.subr.bf16.mxu0 0
          %673 = vmatpush1.bf16.xpose.msra.mxu0 0
          %674 = vmatprep.subr.bf16.mxu0 0
          %675 = vmatpush1.bf16.xpose.msra.mxu0 0
          %676 = vmatprep.subr.bf16.mxu0 0
          %677 = vmatpush1.bf16.xpose.msra.mxu0 0
          %678 = vmatprep.subr.bf16.mxu0 0
          %679 = vmatpush1.bf16.xpose.msra.mxu0 0
          %680 = vmatprep.subr.bf16.mxu0 0
          %681 = vmatpush1.bf16.xpose.msra.mxu0 0
          %682 = vmatprep.subr.bf16.mxu0 0
          %683 = vmatpush1.bf16.xpose.msra.mxu0 0
          %684 = vmatprep.mubr.bf16.mxu0 0
          %685 = vmatmul.mubr.bf16.gmra.mrb[0].mxu0 %v647
          %v686 = vpop.f32.mrb[0].mxu0
          %v687 = vadd.f32 0.0, %v686
          %v688 = vpop.f32.mrb[0].mxu0
          %v689 = vpop.f32.mrb[0].mxu0
          %v690 = vpop.f32.mrb[0].mxu0
          %691 = vdwg.mxu0
          %v693 = vsel %vm599, %v585, 0
          %v696 = vsel %vm599, %v589, 0
          %698 = vmatprep.subr.bf16.mxu0 0
          %699 = vmatpush1.bf16.xpose.msra.mxu0 %v696
          %700 = vmatprep.subr.bf16.mxu0 0
          %701 = vmatpush1.bf16.xpose.msra.mxu0 0
          %702 = vmatprep.subr.bf16.mxu0 0
          %703 = vmatpush1.bf16.xpose.msra.mxu0 0
          %704 = vmatprep.subr.bf16.mxu0 0
          %705 = vmatpush1.bf16.xpose.msra.mxu0 0
          %706 = vmatprep.subr.bf16.mxu0 0
          %707 = vmatpush1.bf16.xpose.msra.mxu0 0
          %708 = vmatprep.subr.bf16.mxu0 0
          %709 = vmatpush1.bf16.xpose.msra.mxu0 0
          %710 = vmatprep.subr.bf16.mxu0 0
          %711 = vmatpush1.bf16.xpose.msra.mxu0 0
          %712 = vmatprep.subr.bf16.mxu0 0
          %713 = vmatpush1.bf16.xpose.msra.mxu0 0
          %714 = vmatprep.subr.bf16.mxu0 0
          %715 = vmatpush1.bf16.xpose.msra.mxu0 0
          %716 = vmatprep.subr.bf16.mxu0 0
          %717 = vmatpush1.bf16.xpose.msra.mxu0 0
          %718 = vmatprep.subr.bf16.mxu0 0
          %719 = vmatpush1.bf16.xpose.msra.mxu0 0
          %720 = vmatprep.subr.bf16.mxu0 0
          %721 = vmatpush1.bf16.xpose.msra.mxu0 0
          %722 = vmatprep.subr.bf16.mxu0 0
          %723 = vmatpush1.bf16.xpose.msra.mxu0 0
          %724 = vmatprep.subr.bf16.mxu0 0
          %725 = vmatpush1.bf16.xpose.msra.mxu0 0
          %726 = vmatprep.subr.bf16.mxu0 0
          %727 = vmatpush1.bf16.xpose.msra.mxu0 0
          %728 = vmatprep.subr.bf16.mxu0 0
          %729 = vmatpush1.bf16.xpose.msra.mxu0 0
          %730 = vmatprep.mubr.bf16.mxu0 0
          %731 = vmatmul.mubr.bf16.gmra.mrb[0].mxu0 %v693
          %v732 = vpop.f32.mrb[0].mxu0
          %v733 = vadd.f32 0.0, %v732
          %v734 = vpop.f32.mrb[0].mxu0
          %v735 = vpop.f32.mrb[0].mxu0
          %v736 = vpop.f32.mrb[0].mxu0
          %737 = vdwg.mxu0
          %v739 = vsel %vm599, %v586, 0
          %v742 = vsel %vm599, %v590, 0
          %744 = vmatprep.subr.bf16.mxu0 0
          %745 = vmatpush1.bf16.xpose.msra.mxu0 %v742
          %746 = vmatprep.subr.bf16.mxu0 0
          %747 = vmatpush1.bf16.xpose.msra.mxu0 0
          %748 = vmatprep.subr.bf16.mxu0 0
          %749 = vmatpush1.bf16.xpose.msra.mxu0 0
          %750 = vmatprep.subr.bf16.mxu0 0
          %751 = vmatpush1.bf16.xpose.msra.mxu0 0
          %752 = vmatprep.subr.bf16.mxu0 0
          %753 = vmatpush1.bf16.xpose.msra.mxu0 0
          %754 = vmatprep.subr.bf16.mxu0 0
          %755 = vmatpush1.bf16.xpose.msra.mxu0 0
          %756 = vmatprep.subr.bf16.mxu0 0
          %757 = vmatpush1.bf16.xpose.msra.mxu0 0
          %758 = vmatprep.subr.bf16.mxu0 0
          %759 = vmatpush1.bf16.xpose.msra.mxu0 0
          %760 = vmatprep.subr.bf16.mxu0 0
          %761 = vmatpush1.bf16.xpose.msra.mxu0 0
          %762 = vmatprep.subr.bf16.mxu0 0
          %763 = vmatpush1.bf16.xpose.msra.mxu0 0
          %764 = vmatprep.subr.bf16.mxu0 0
          %765 = vmatpush1.bf16.xpose.msra.mxu0 0
          %766 = vmatprep.subr.bf16.mxu0 0
          %767 = vmatpush1.bf16.xpose.msra.mxu0 0
          %768 = vmatprep.subr.bf16.mxu0 0
          %769 = vmatpush1.bf16.xpose.msra.mxu0 0
          %770 = vmatprep.subr.bf16.mxu0 0
          %771 = vmatpush1.bf16.xpose.msra.mxu0 0
          %772 = vmatprep.subr.bf16.mxu0 0
          %773 = vmatpush1.bf16.xpose.msra.mxu0 0
          %774 = vmatprep.subr.bf16.mxu0 0
          %775 = vmatpush1.bf16.xpose.msra.mxu0 0
          %776 = vmatprep.mubr.bf16.mxu0 0
          %777 = vmatmul.mubr.bf16.gmra.mrb[0].mxu0 %v739
          %v778 = vpop.f32.mrb[0].mxu0
          %v779 = vadd.f32 0.0, %v778
          %v780 = vpop.f32.mrb[0].mxu0
          %v781 = vpop.f32.mrb[0].mxu0
          %v782 = vpop.f32.mrb[0].mxu0
          %783 = vdwg.mxu0
          %v784 = vld [vmem:[#allocation2] sm:$0xff]
          %v785 = vld [vmem:[#allocation2 + $0x8] sm:$0xff]
          %v786 = vld [vmem:[#allocation2 + $0x10] sm:$0xff]
          %v787 = vld [vmem:[#allocation2 + $0x18] sm:$0xff]
          %v788 = vsel %vm599, %v641, -inf
          %789 = vmax.xlane.f32.xlu0 %v788
          %v790 = vpop.xlane.xlu0 %789
          %v791 = vsel %vm599, %v687, -inf
          %792 = vmax.xlane.f32.xlu0 %v791
          %v793 = vpop.xlane.xlu0 %792
          %v794 = vsel %vm599, %v733, -inf
          %795 = vmax.xlane.f32.xlu0 %v794
          %v796 = vpop.xlane.xlu0 %795
          %v797 = vsel %vm599, %v779, -inf
          %798 = vmax.xlane.f32.xlu0 %v797
          %v799 = vpop.xlane.xlu0 %798
          %v800 = vmax.f32 %v784, %v790
          %v801 = vmax.f32 %v785, %v793
          %v802 = vmax.f32 %v786, %v796
          %v803 = vmax.f32 %v787, %v799
          %v804 = vsub.f32 %v784, %v800
          %v805 = vsub.f32 %v785, %v801
          %v806 = vsub.f32 %v786, %v802
          %v807 = vsub.f32 %v787, %v803
          %v808 = vmul.f32 %v804, 1.442695
          %v809 = vpow.pop %v808
          %v810 = vmul.f32 %v805, 1.442695
          %v811 = vpow.pop %v810
          %v812 = vmul.f32 %v806, 1.442695
          %v813 = vpow.pop %v812
          %v814 = vmul.f32 %v807, 1.442695
          %v815 = vpow.pop %v814
          %817 = vset.pattern.permute.xlu0 0
          %818 = vperm.xlu0 %817, %v800
          %v819 = vpop.permute.xlu0 %818
          %822 = vset.pattern.permute.xlu0 0
          %823 = vperm.xlu0 %822, %v801
          %v824 = vpop.permute.xlu0 %823
          %827 = vset.pattern.permute.xlu0 0
          %828 = vperm.xlu0 %827, %v802
          %v829 = vpop.permute.xlu0 %828
          %832 = vset.pattern.permute.xlu0 0
          %833 = vperm.xlu0 %832, %v803
          %v834 = vpop.permute.xlu0 %833
          %v836 = vsub.f32 %v641, %v819
          %v837 = vsub.f32 %v687, %v824
          %v838 = vsub.f32 %v733, %v829
          %v839 = vsub.f32 %v779, %v834
          %v840 = vmul.f32 %v836, 1.442695
          %v841 = vpow.pop %v840
          %v842 = vmul.f32 %v837, 1.442695
          %v843 = vpow.pop %v842
          %v844 = vmul.f32 %v838, 1.442695
          %v845 = vpow.pop %v844
          %v846 = vmul.f32 %v839, 1.442695
          %v847 = vpow.pop %v846
          %v848 = vld [vmem:[#allocation3] sm:$0xff]
          %v849 = vld [vmem:[#allocation3 + $0x8] sm:$0xff]
          %v850 = vld [vmem:[#allocation3 + $0x10] sm:$0xff]
          %v851 = vld [vmem:[#allocation3 + $0x18] sm:$0xff]
          %v852 = vmul.f32 %v809, %v848
          %v853 = vmul.f32 %v811, %v849
          %v854 = vmul.f32 %v813, %v850
          %v855 = vmul.f32 %v815, %v851
          %v856 = vsel %vm599, %v841, 0.0
          %857 = vadd.xlane.f32.xlu0 %v856
          %v858 = vpop.xlane.xlu0 %857
          %v859 = vsel %vm599, %v843, 0.0
          %860 = vadd.xlane.f32.xlu0 %v859
          %v861 = vpop.xlane.xlu0 %860
          %v862 = vsel %vm599, %v845, 0.0
          %863 = vadd.xlane.f32.xlu0 %v862
          %v864 = vpop.xlane.xlu0 %863
          %v865 = vsel %vm599, %v847, 0.0
          %866 = vadd.xlane.f32.xlu0 %v865
          %v867 = vpop.xlane.xlu0 %866
          %v868 = vadd.f32 %v852, %v858
          %v869 = vadd.f32 %v853, %v861
          %v870 = vadd.f32 %v854, %v864
          %v871 = vadd.f32 %v855, %v867
          %vm872 = vcmask 7168
          %873 = vst.msk [vmem:[#allocation3] sm:$0xff] %vm872, %v868
          %874 = vst.msk [vmem:[#allocation3 + $0x8] sm:$0xff] %vm872, %v869
          %875 = vst.msk [vmem:[#allocation3 + $0x10] sm:$0xff] %vm872, %v870
          %876 = vst.msk [vmem:[#allocation3 + $0x18] sm:$0xff] %vm872, %v871
          %v877 = vld [vmem:[#allocation4] sm:$0xff]
          %v878 = vld [vmem:[#allocation4 + $0x8] sm:$0xff]
          %v879 = vld [vmem:[#allocation4 + $0x10] sm:$0xff]
          %v880 = vld [vmem:[#allocation4 + $0x18] sm:$0xff]
          %882 = vset.pattern.permute.xlu0 0
          %883 = vperm.xlu0 %882, %v809
          %v884 = vpop.permute.xlu0 %883
          %887 = vset.pattern.permute.xlu0 0
          %888 = vperm.xlu0 %887, %v811
          %v889 = vpop.permute.xlu0 %888
          %892 = vset.pattern.permute.xlu0 0
          %893 = vperm.xlu0 %892, %v813
          %v894 = vpop.permute.xlu0 %893
          %897 = vset.pattern.permute.xlu0 0
          %898 = vperm.xlu0 %897, %v815
          %v899 = vpop.permute.xlu0 %898
          %v901 = vmul.f32 %v884, %v877
          %v902 = vmul.f32 %v889, %v878
          %v903 = vmul.f32 %v894, %v879
          %v904 = vmul.f32 %v899, %v880
          %v905 = vpack.c.bf16 %v841, %v841
          %v906 = vpack.c.bf16 %v843, %v843
          %v907 = vpack.c.bf16 %v845, %v845
          %v908 = vpack.c.bf16 %v847, %v847
          %v910 = vsel %vm599, %v905, 0
          %vm912 = vcmask 1043456
          %v914 = vsel %vm912, %v591, 0
          %916 = vmatprep.subr.bf16.mxu0 0
          %917 = vmatpush1.bf16.msra.mxu0 %v914
          %918 = vmatprep.subr.bf16.mxu0 0
          %919 = vmatpush1.bf16.msra.mxu0 0
          %920 = vmatprep.subr.bf16.mxu0 0
          %921 = vmatpush1.bf16.msra.mxu0 0
          %922 = vmatprep.subr.bf16.mxu0 0
          %923 = vmatpush1.bf16.msra.mxu0 0
          %924 = vmatprep.subr.bf16.mxu0 0
          %925 = vmatpush1.bf16.msra.mxu0 0
          %926 = vmatprep.subr.bf16.mxu0 0
          %927 = vmatpush1.bf16.msra.mxu0 0
          %928 = vmatprep.subr.bf16.mxu0 0
          %929 = vmatpush1.bf16.msra.mxu0 0
          %930 = vmatprep.subr.bf16.mxu0 0
          %931 = vmatpush1.bf16.msra.mxu0 0
          %932 = vmatprep.subr.bf16.mxu0 0
          %933 = vmatpush1.bf16.msra.mxu0 0
          %934 = vmatprep.subr.bf16.mxu0 0
          %935 = vmatpush1.bf16.msra.mxu0 0
          %936 = vmatprep.subr.bf16.mxu0 0
          %937 = vmatpush1.bf16.msra.mxu0 0
          %938 = vmatprep.subr.bf16.mxu0 0
          %939 = vmatpush1.bf16.msra.mxu0 0
          %940 = vmatprep.subr.bf16.mxu0 0
          %941 = vmatpush1.bf16.msra.mxu0 0
          %942 = vmatprep.subr.bf16.mxu0 0
          %943 = vmatpush1.bf16.msra.mxu0 0
          %944 = vmatprep.subr.bf16.mxu0 0
          %945 = vmatpush1.bf16.msra.mxu0 0
          %946 = vmatprep.subr.bf16.mxu0 0
          %947 = vmatpush1.bf16.msra.mxu0 0
          %948 = vmatprep.mubr.bf16.mxu0 0
          %949 = vmatmul.mubr.bf16.gmra.mrb[0].mxu0 %v910
          %v950 = vpop.f32.mrb[0].mxu0
          %v951 = vadd.f32 0.0, %v950
          %v952 = vpop.f32.mrb[0].mxu0
          %v953 = vpop.f32.mrb[0].mxu0
          %v954 = vpop.f32.mrb[0].mxu0
          %955 = vdwg.mxu0
          %v957 = vsel %vm599, %v906, 0
          %v960 = vsel %vm912, %v592, 0
          %962 = vmatprep.subr.bf16.mxu0 0
          %963 = vmatpush1.bf16.msra.mxu0 %v960
          %964 = vmatprep.subr.bf16.mxu0 0
          %965 = vmatpush1.bf16.msra.mxu0 0
          %966 = vmatprep.subr.bf16.mxu0 0
          %967 = vmatpush1.bf16.msra.mxu0 0
          %968 = vmatprep.subr.bf16.mxu0 0
          %969 = vmatpush1.bf16.msra.mxu0 0
          %970 = vmatprep.subr.bf16.mxu0 0
          %971 = vmatpush1.bf16.msra.mxu0 0
          %972 = vmatprep.subr.bf16.mxu0 0
          %973 = vmatpush1.bf16.msra.mxu0 0
          %974 = vmatprep.subr.bf16.mxu0 0
          %975 = vmatpush1.bf16.msra.mxu0 0
          %976 = vmatprep.subr.bf16.mxu0 0
          %977 = vmatpush1.bf16.msra.mxu0 0
          %978 = vmatprep.subr.bf16.mxu0 0
          %979 = vmatpush1.bf16.msra.mxu0 0
          %980 = vmatprep.subr.bf16.mxu0 0
          %981 = vmatpush1.bf16.msra.mxu0 0
          %982 = vmatprep.subr.bf16.mxu0 0
          %983 = vmatpush1.bf16.msra.mxu0 0
          %984 = vmatprep.subr.bf16.mxu0 0
          %985 = vmatpush1.bf16.msra.mxu0 0
          %986 = vmatprep.subr.bf16.mxu0 0
          %987 = vmatpush1.bf16.msra.mxu0 0
          %988 = vmatprep.subr.bf16.mxu0 0
          %989 = vmatpush1.bf16.msra.mxu0 0
          %990 = vmatprep.subr.bf16.mxu0 0
          %991 = vmatpush1.bf16.msra.mxu0 0
          %992 = vmatprep.subr.bf16.mxu0 0
          %993 = vmatpush1.bf16.msra.mxu0 0
          %994 = vmatprep.mubr.bf16.mxu0 0
          %995 = vmatmul.mubr.bf16.gmra.mrb[0].mxu0 %v957
          %v996 = vpop.f32.mrb[0].mxu0
          %v997 = vadd.f32 0.0, %v996
          %v998 = vpop.f32.mrb[0].mxu0
          %v999 = vpop.f32.mrb[0].mxu0
          %v1000 = vpop.f32.mrb[0].mxu0
          %1001 = vdwg.mxu0
          %v1003 = vsel %vm599, %v907, 0
          %v1006 = vsel %vm912, %v593, 0
          %1008 = vmatprep.subr.bf16.mxu0 0
          %1009 = vmatpush1.bf16.msra.mxu0 %v1006
          %1010 = vmatprep.subr.bf16.mxu0 0
          %1011 = vmatpush1.bf16.msra.mxu0 0
          %1012 = vmatprep.subr.bf16.mxu0 0
          %1013 = vmatpush1.bf16.msra.mxu0 0
          %1014 = vmatprep.subr.bf16.mxu0 0
          %1015 = vmatpush1.bf16.msra.mxu0 0
          %1016 = vmatprep.subr.bf16.mxu0 0
          %1017 = vmatpush1.bf16.msra.mxu0 0
          %1018 = vmatprep.subr.bf16.mxu0 0
          %1019 = vmatpush1.bf16.msra.mxu0 0
          %1020 = vmatprep.subr.bf16.mxu0 0
          %1021 = vmatpush1.bf16.msra.mxu0 0
          %1022 = vmatprep.subr.bf16.mxu0 0
          %1023 = vmatpush1.bf16.msra.mxu0 0
          %1024 = vmatprep.subr.bf16.mxu0 0
          %1025 = vmatpush1.bf16.msra.mxu0 0
          %1026 = vmatprep.subr.bf16.mxu0 0
          %1027 = vmatpush1.bf16.msra.mxu0 0
          %1028 = vmatprep.subr.bf16.mxu0 0
          %1029 = vmatpush1.bf16.msra.mxu0 0
          %1030 = vmatprep.subr.bf16.mxu0 0
          %1031 = vmatpush1.bf16.msra.mxu0 0
          %1032 = vmatprep.subr.bf16.mxu0 0
          %1033 = vmatpush1.bf16.msra.mxu0 0
          %1034 = vmatprep.subr.bf16.mxu0 0
          %1035 = vmatpush1.bf16.msra.mxu0 0
          %1036 = vmatprep.subr.bf16.mxu0 0
          %1037 = vmatpush1.bf16.msra.mxu0 0
          %1038 = vmatprep.subr.bf16.mxu0 0
          %1039 = vmatpush1.bf16.msra.mxu0 0
          %1040 = vmatprep.mubr.bf16.mxu0 0
          %1041 = vmatmul.mubr.bf16.gmra.mrb[0].mxu0 %v1003
          %v1042 = vpop.f32.mrb[0].mxu0
          %v1043 = vadd.f32 0.0, %v1042
          %v1044 = vpop.f32.mrb[0].mxu0
          %v1045 = vpop.f32.mrb[0].mxu0
          %v1046 = vpop.f32.mrb[0].mxu0
          %1047 = vdwg.mxu0
          %v1049 = vsel %vm599, %v908, 0
          %v1052 = vsel %vm912, %v594, 0
          %1054 = vmatprep.subr.bf16.mxu0 0
          %1055 = vmatpush1.bf16.msra.mxu0 %v1052
          %1056 = vmatprep.subr.bf16.mxu0 0
          %1057 = vmatpush1.bf16.msra.mxu0 0
          %1058 = vmatprep.subr.bf16.mxu0 0
          %1059 = vmatpush1.bf16.msra.mxu0 0
          %1060 = vmatprep.subr.bf16.mxu0 0
          %1061 = vmatpush1.bf16.msra.mxu0 0
          %1062 = vmatprep.subr.bf16.mxu0 0
          %1063 = vmatpush1.bf16.msra.mxu0 0
          %1064 = vmatprep.subr.bf16.mxu0 0
          %1065 = vmatpush1.bf16.msra.mxu0 0
          %1066 = vmatprep.subr.bf16.mxu0 0
          %1067 = vmatpush1.bf16.msra.mxu0 0
          %1068 = vmatprep.subr.bf16.mxu0 0
          %1069 = vmatpush1.bf16.msra.mxu0 0
          %1070 = vmatprep.subr.bf16.mxu0 0
          %1071 = vmatpush1.bf16.msra.mxu0 0
          %1072 = vmatprep.subr.bf16.mxu0 0
          %1073 = vmatpush1.bf16.msra.mxu0 0
          %1074 = vmatprep.subr.bf16.mxu0 0
          %1075 = vmatpush1.bf16.msra.mxu0 0
          %1076 = vmatprep.subr.bf16.mxu0 0
          %1077 = vmatpush1.bf16.msra.mxu0 0
          %1078 = vmatprep.subr.bf16.mxu0 0
          %1079 = vmatpush1.bf16.msra.mxu0 0
          %1080 = vmatprep.subr.bf16.mxu0 0
          %1081 = vmatpush1.bf16.msra.mxu0 0
          %1082 = vmatprep.subr.bf16.mxu0 0
          %1083 = vmatpush1.bf16.msra.mxu0 0
          %1084 = vmatprep.subr.bf16.mxu0 0
          %1085 = vmatpush1.bf16.msra.mxu0 0
          %1086 = vmatprep.mubr.bf16.mxu0 0
          %1087 = vmatmul.mubr.bf16.gmra.mrb[0].mxu0 %v1049
          %v1088 = vpop.f32.mrb[0].mxu0
          %v1089 = vadd.f32 0.0, %v1088
          %v1090 = vpop.f32.mrb[0].mxu0
          %v1091 = vpop.f32.mrb[0].mxu0
          %v1092 = vpop.f32.mrb[0].mxu0
          %1093 = vdwg.mxu0
          %v1094 = vadd.f32 %v901, %v951
          %v1095 = vadd.f32 %v902, %v997
          %v1096 = vadd.f32 %v903, %v1043
          %v1097 = vadd.f32 %v904, %v1089
          %1098 = vst.msk [vmem:[#allocation4] sm:$0xff] %vm599, %v1094
          %1099 = vst.msk [vmem:[#allocation4 + $0x8] sm:$0xff] %vm599, %v1095
          %1100 = vst.msk [vmem:[#allocation4 + $0x10] sm:$0xff] %vm599, %v1096
          %1101 = vst.msk [vmem:[#allocation4 + $0x18] sm:$0xff] %vm599, %v1097
          %1102 = vst.msk [vmem:[#allocation2] sm:$0xff] %vm872, %v800
          %1103 = vst.msk [vmem:[#allocation2 + $0x8] sm:$0xff] %vm872, %v801
          %1104 = vst.msk [vmem:[#allocation2 + $0x10] sm:$0xff] %vm872, %v802
          %1105 = vst.msk [vmem:[#allocation2 + $0x18] sm:$0xff] %vm872, %v803
        $region76: #{block_forward.3} parent=67 // pred_fallthru
          _
        %p1106 = scmp.eq.s32.totalorder %s564, %s563
        // Predicated region
        $region77: #{block_forward.3} parent=67 // pred_check
          %p1107 = pneg %p1106
        $region78: #{block_forward.3} parent=67 // pred_check_branch
          %1109 = sbr.rel (%p1107) target = $region80
        $region79: #{block_forward.3} parent=67 // pred_region
          %vm1110 = vcmask 64512
          %v1112 = vsel %vm1110, %v583, 0
          %v1115 = vsel %vm1110, %v587, 0
          %1117 = vmatprep.subr.bf16.mxu0 0
          %1118 = vmatpush1.bf16.xpose.msra.mxu0 %v1115
          %1119 = vmatprep.subr.bf16.mxu0 0
          %1120 = vmatpush1.bf16.xpose.msra.mxu0 0
          %1121 = vmatprep.subr.bf16.mxu0 0
          %1122 = vmatpush1.bf16.xpose.msra.mxu0 0
          %1123 = vmatprep.subr.bf16.mxu0 0
          %1124 = vmatpush1.bf16.xpose.msra.mxu0 0
          %1125 = vmatprep.subr.bf16.mxu0 0
          %1126 = vmatpush1.bf16.xpose.msra.mxu0 0
          %1127 = vmatprep.subr.bf16.mxu0 0
          %1128 = vmatpush1.bf16.xpose.msra.mxu0 0
          %1129 = vmatprep.subr.bf16.mxu0 0
          %1130 = vmatpush1.bf16.xpose.msra.mxu0 0
          %1131 = vmatprep.subr.bf16.mxu0 0
          %1132 = vmatpush1.bf16.xpose.msra.mxu0 0
          %1133 = vmatprep.subr.bf16.mxu0 0
          %1134 = vmatpush1.bf16.xpose.msra.mxu0 0
          %1135 = vmatprep.subr.bf16.mxu0 0
          %1136 = vmatpush1.bf16.xpose.msra.mxu0 0
          %1137 = vmatprep.subr.bf16.mxu0 0
          %1138 = vmatpush1.bf16.xpose.msra.mxu0 0
          %1139 = vmatprep.subr.bf16.mxu0 0
          %1140 = vmatpush1.bf16.xpose.msra.mxu0 0
          %1141 = vmatprep.subr.bf16.mxu0 0
          %1142 = vmatpush1.bf16.xpose.msra.mxu0 0
          %1143 = vmatprep.subr.bf16.mxu0 0
          %1144 = vmatpush1.bf16.xpose.msra.mxu0 0
          %1145 = vmatprep.subr.bf16.mxu0 0
          %1146 = vmatpush1.bf16.xpose.msra.mxu0 0
          %1147 = vmatprep.subr.bf16.mxu0 0
          %1148 = vmatpush1.bf16.xpose.msra.mxu0 0
          %1149 = vmatprep.mubr.bf16.mxu0 0
          %1150 = vmatmul.mubr.bf16.gmra.mrb[0].mxu0 %v1112
          %v1151 = vpop.f32.mrb[0].mxu0
          %v1152 = vadd.f32 0.0, %v1151
          %v1153 = vpop.f32.mrb[0].mxu0
          %v1154 = vpop.f32.mrb[0].mxu0
          %v1155 = vpop.f32.mrb[0].mxu0
          %1156 = vdwg.mxu0
          %v1158 = vsel %vm1110, %v584, 0
          %v1161 = vsel %vm1110, %v588, 0
          %1163 = vmatprep.subr.bf16.mxu0 0
          %1164 = vmatpush1.bf16.xpose.msra.mxu0 %v1161
          %1165 = vmatprep.subr.bf16.mxu0 0
          %1166 = vmatpush1.bf16.xpose.msra.mxu0 0
          %1167 = vmatprep.subr.bf16.mxu0 0
          %1168 = vmatpush1.bf16.xpose.msra.mxu0 0
          %1169 = vmatprep.subr.bf16.mxu0 0
          %1170 = vmatpush1.bf16.xpose.msra.mxu0 0
          %1171 = vmatprep.subr.bf16.mxu0 0
          %1172 = vmatpush1.bf16.xpose.msra.mxu0 0
          %1173 = vmatprep.subr.bf16.mxu0 0
          %1174 = vmatpush1.bf16.xpose.msra.mxu0 0
          %1175 = vmatprep.subr.bf16.mxu0 0
          %1176 = vmatpush1.bf16.xpose.msra.mxu0 0
          %1177 = vmatprep.subr.bf16.mxu0 0
          %1178 = vmatpush1.bf16.xpose.msra.mxu0 0
          %1179 = vmatprep.subr.bf16.mxu0 0
          %1180 = vmatpush1.bf16.xpose.msra.mxu0 0
          %1181 = vmatprep.subr.bf16.mxu0 0
          %1182 = vmatpush1.bf16.xpose.msra.mxu0 0
          %1183 = vmatprep.subr.bf16.mxu0 0
          %1184 = vmatpush1.bf16.xpose.msra.mxu0 0
          %1185 = vmatprep.subr.bf16.mxu0 0
          %1186 = vmatpush1.bf16.xpose.msra.mxu0 0
          %1187 = vmatprep.subr.bf16.mxu0 0
          %1188 = vmatpush1.bf16.xpose.msra.mxu0 0
          %1189 = vmatprep.subr.bf16.mxu0 0
          %1190 = vmatpush1.bf16.xpose.msra.mxu0 0
          %1191 = vmatprep.subr.bf16.mxu0 0
          %1192 = vmatpush1.bf16.xpose.msra.mxu0 0
          %1193 = vmatprep.subr.bf16.mxu0 0
          %1194 = vmatpush1.bf16.xpose.msra.mxu0 0
          %1195 = vmatprep.mubr.bf16.mxu0 0
          %1196 = vmatmul.mubr.bf16.gmra.mrb[0].mxu0 %v1158
          %v1197 = vpop.f32.mrb[0].mxu0
          %v1198 = vadd.f32 0.0, %v1197
          %v1199 = vpop.f32.mrb[0].mxu0
          %v1200 = vpop.f32.mrb[0].mxu0
          %v1201 = vpop.f32.mrb[0].mxu0
          %1202 = vdwg.mxu0
          %v1204 = vsel %vm1110, %v585, 0
          %v1207 = vsel %vm1110, %v589, 0
          %1209 = vmatprep.subr.bf16.mxu0 0
          %1210 = vmatpush1.bf16.xpose.msra.mxu0 %v1207
          %1211 = vmatprep.subr.bf16.mxu0 0
          %1212 = vmatpush1.bf16.xpose.msra.mxu0 0
          %1213 = vmatprep.subr.bf16.mxu0 0
          %1214 = vmatpush1.bf16.xpose.msra.mxu0 0
          %1215 = vmatprep.subr.bf16.mxu0 0
          %1216 = vmatpush1.bf16.xpose.msra.mxu0 0
          %1217 = vmatprep.subr.bf16.mxu0 0
          %1218 = vmatpush1.bf16.xpose.msra.mxu0 0
          %1219 = vmatprep.subr.bf16.mxu0 0
          %1220 = vmatpush1.bf16.xpose.msra.mxu0 0
          %1221 = vmatprep.subr.bf16.mxu0 0
          %1222 = vmatpush1.bf16.xpose.msra.mxu0 0
          %1223 = vmatprep.subr.bf16.mxu0 0
          %1224 = vmatpush1.bf16.xpose.msra.mxu0 0
          %1225 = vmatprep.subr.bf16.mxu0 0
          %1226 = vmatpush1.bf16.xpose.msra.mxu0 0
          %1227 = vmatprep.subr.bf16.mxu0 0
          %1228 = vmatpush1.bf16.xpose.msra.mxu0 0
          %1229 = vmatprep.subr.bf16.mxu0 0
          %1230 = vmatpush1.bf16.xpose.msra.mxu0 0
          %1231 = vmatprep.subr.bf16.mxu0 0
          %1232 = vmatpush1.bf16.xpose.msra.mxu0 0
          %1233 = vmatprep.subr.bf16.mxu0 0
          %1234 = vmatpush1.bf16.xpose.msra.mxu0 0
          %1235 = vmatprep.subr.bf16.mxu0 0
          %1236 = vmatpush1.bf16.xpose.msra.mxu0 0
          %1237 = vmatprep.subr.bf16.mxu0 0
          %1238 = vmatpush1.bf16.xpose.msra.mxu0 0
          %1239 = vmatprep.subr.bf16.mxu0 0
          %1240 = vmatpush1.bf16.xpose.msra.mxu0 0
          %1241 = vmatprep.mubr.bf16.mxu0 0
          %1242 = vmatmul.mubr.bf16.gmra.mrb[0].mxu0 %v1204
          %v1243 = vpop.f32.mrb[0].mxu0
          %v1244 = vadd.f32 0.0, %v1243
          %v1245 = vpop.f32.mrb[0].mxu0
          %v1246 = vpop.f32.mrb[0].mxu0
          %v1247 = vpop.f32.mrb[0].mxu0
          %1248 = vdwg.mxu0
          %v1250 = vsel %vm1110, %v586, 0
          %v1253 = vsel %vm1110, %v590, 0
          %1255 = vmatprep.subr.bf16.mxu0 0
          %1256 = vmatpush1.bf16.xpose.msra.mxu0 %v1253
          %1257 = vmatprep.subr.bf16.mxu0 0
          %1258 = vmatpush1.bf16.xpose.msra.mxu0 0
          %1259 = vmatprep.subr.bf16.mxu0 0
          %1260 = vmatpush1.bf16.xpose.msra.mxu0 0
          %1261 = vmatprep.subr.bf16.mxu0 0
          %1262 = vmatpush1.bf16.xpose.msra.mxu0 0
          %1263 = vmatprep.subr.bf16.mxu0 0
          %1264 = vmatpush1.bf16.xpose.msra.mxu0 0
          %1265 = vmatprep.subr.bf16.mxu0 0
          %1266 = vmatpush1.bf16.xpose.msra.mxu0 0
          %1267 = vmatprep.subr.bf16.mxu0 0
          %1268 = vmatpush1.bf16.xpose.msra.mxu0 0
          %1269 = vmatprep.subr.bf16.mxu0 0
          %1270 = vmatpush1.bf16.xpose.msra.mxu0 0
          %1271 = vmatprep.subr.bf16.mxu0 0
          %1272 = vmatpush1.bf16.xpose.msra.mxu0 0
          %1273 = vmatprep.subr.bf16.mxu0 0
          %1274 = vmatpush1.bf16.xpose.msra.mxu0 0
          %1275 = vmatprep.subr.bf16.mxu0 0
          %1276 = vmatpush1.bf16.xpose.msra.mxu0 0
          %1277 = vmatprep.subr.bf16.mxu0 0
          %1278 = vmatpush1.bf16.xpose.msra.mxu0 0
          %1279 = vmatprep.subr.bf16.mxu0 0
          %1280 = vmatpush1.bf16.xpose.msra.mxu0 0
          %1281 = vmatprep.subr.bf16.mxu0 0
          %1282 = vmatpush1.bf16.xpose.msra.mxu0 0
          %1283 = vmatprep.subr.bf16.mxu0 0
          %1284 = vmatpush1.bf16.xpose.msra.mxu0 0
          %1285 = vmatprep.subr.bf16.mxu0 0
          %1286 = vmatpush1.bf16.xpose.msra.mxu0 0
          %1287 = vmatprep.mubr.bf16.mxu0 0
          %1288 = vmatmul.mubr.bf16.gmra.mrb[0].mxu0 %v1250
          %v1289 = vpop.f32.mrb[0].mxu0
          %v1290 = vadd.f32 0.0, %v1289
          %v1291 = vpop.f32.mrb[0].mxu0
          %v1292 = vpop.f32.mrb[0].mxu0
          %v1293 = vpop.f32.mrb[0].mxu0
          %1294 = vdwg.mxu0
          %v1295 = vlaneseq
          %v1296 = vshrl.u32 %v1295, 7
          %v1297 = vlaneseq
          %v1298 = vand.u32 %v1297, 127
          %vm1299 = vcmp.ge.s32.totalorder %v1296, %v1298
          %v1300 = vsel %vm1299, 1, 0
          %vm1301 = vcmp.eq.s32.totalorder %v1300, 1
          %v1302 = vsel %vm1301, %v1152, -1e+30
          %v1303 = vsel %vm1301, %v1198, -1e+30
          %v1304 = vsel %vm1301, %v1244, -1e+30
          %v1305 = vsel %vm1301, %v1290, -1e+30
          %v1306 = vld [vmem:[#allocation2] sm:$0xff]
          %v1307 = vld [vmem:[#allocation2 + $0x8] sm:$0xff]
          %v1308 = vld [vmem:[#allocation2 + $0x10] sm:$0xff]
          %v1309 = vld [vmem:[#allocation2 + $0x18] sm:$0xff]
          %v1310 = vsel %vm1110, %v1302, -inf
          %1311 = vmax.xlane.f32.xlu0 %v1310
          %v1312 = vpop.xlane.xlu0 %1311
          %v1313 = vsel %vm1110, %v1303, -inf
          %1314 = vmax.xlane.f32.xlu0 %v1313
          %v1315 = vpop.xlane.xlu0 %1314
          %v1316 = vsel %vm1110, %v1304, -inf
          %1317 = vmax.xlane.f32.xlu0 %v1316
          %v1318 = vpop.xlane.xlu0 %1317
          %v1319 = vsel %vm1110, %v1305, -inf
          %1320 = vmax.xlane.f32.xlu0 %v1319
          %v1321 = vpop.xlane.xlu0 %1320
          %v1322 = vmax.f32 %v1306, %v1312
          %v1323 = vmax.f32 %v1307, %v1315
          %v1324 = vmax.f32 %v1308, %v1318
          %v1325 = vmax.f32 %v1309, %v1321
          %v1326 = vsub.f32 %v1306, %v1322
          %v1327 = vsub.f32 %v1307, %v1323
          %v1328 = vsub.f32 %v1308, %v1324
          %v1329 = vsub.f32 %v1309, %v1325
          %v1330 = vmul.f32 %v1326, 1.442695
          %v1331 = vpow.pop %v1330
          %v1332 = vmul.f32 %v1327, 1.442695
          %v1333 = vpow.pop %v1332
          %v1334 = vmul.f32 %v1328, 1.442695
          %v1335 = vpow.pop %v1334
          %v1336 = vmul.f32 %v1329, 1.442695
          %v1337 = vpow.pop %v1336
          %1339 = vset.pattern.permute.xlu0 0
          %1340 = vperm.xlu0 %1339, %v1322
          %v1341 = vpop.permute.xlu0 %1340
          %1344 = vset.pattern.permute.xlu0 0
          %1345 = vperm.xlu0 %1344, %v1323
          %v1346 = vpop.permute.xlu0 %1345
          %1349 = vset.pattern.permute.xlu0 0
          %1350 = vperm.xlu0 %1349, %v1324
          %v1351 = vpop.permute.xlu0 %1350
          %1354 = vset.pattern.permute.xlu0 0
          %1355 = vperm.xlu0 %1354, %v1325
          %v1356 = vpop.permute.xlu0 %1355
          %v1358 = vsub.f32 %v1302, %v1341
          %v1359 = vsub.f32 %v1303, %v1346
          %v1360 = vsub.f32 %v1304, %v1351
          %v1361 = vsub.f32 %v1305, %v1356
          %v1362 = vmul.f32 %v1358, 1.442695
          %v1363 = vpow.pop %v1362
          %v1364 = vmul.f32 %v1359, 1.442695
          %v1365 = vpow.pop %v1364
          %v1366 = vmul.f32 %v1360, 1.442695
          %v1367 = vpow.pop %v1366
          %v1368 = vmul.f32 %v1361, 1.442695
          %v1369 = vpow.pop %v1368
          %v1370 = vld [vmem:[#allocation3] sm:$0xff]
          %v1371 = vld [vmem:[#allocation3 + $0x8] sm:$0xff]
          %v1372 = vld [vmem:[#allocation3 + $0x10] sm:$0xff]
          %v1373 = vld [vmem:[#allocation3 + $0x18] sm:$0xff]
          %v1374 = vmul.f32 %v1331, %v1370
          %v1375 = vmul.f32 %v1333, %v1371
          %v1376 = vmul.f32 %v1335, %v1372
          %v1377 = vmul.f32 %v1337, %v1373
          %v1378 = vsel %vm1110, %v1363, 0.0
          %1379 = vadd.xlane.f32.xlu0 %v1378
          %v1380 = vpop.xlane.xlu0 %1379
          %v1381 = vsel %vm1110, %v1365, 0.0
          %1382 = vadd.xlane.f32.xlu0 %v1381
          %v1383 = vpop.xlane.xlu0 %1382
          %v1384 = vsel %vm1110, %v1367, 0.0
          %1385 = vadd.xlane.f32.xlu0 %v1384
          %v1386 = vpop.xlane.xlu0 %1385
          %v1387 = vsel %vm1110, %v1369, 0.0
          %1388 = vadd.xlane.f32.xlu0 %v1387
          %v1389 = vpop.xlane.xlu0 %1388
          %v1390 = vadd.f32 %v1374, %v1380
          %v1391 = vadd.f32 %v1375, %v1383
          %v1392 = vadd.f32 %v1376, %v1386
          %v1393 = vadd.f32 %v1377, %v1389
          %vm1394 = vcmask 7168
          %1395 = vst.msk [vmem:[#allocation3] sm:$0xff] %vm1394, %v1390
          %1396 = vst.msk [vmem:[#allocation3 + $0x8] sm:$0xff] %vm1394, %v1391
          %1397 = vst.msk [vmem:[#allocation3 + $0x10] sm:$0xff] %vm1394, %v1392
          %1398 = vst.msk [vmem:[#allocation3 + $0x18] sm:$0xff] %vm1394, %v1393
          %v1399 = vld [vmem:[#allocation4] sm:$0xff]
          %v1400 = vld [vmem:[#allocation4 + $0x8] sm:$0xff]
          %v1401 = vld [vmem:[#allocation4 + $0x10] sm:$0xff]
          %v1402 = vld [vmem:[#allocation4 + $0x18] sm:$0xff]
          %1404 = vset.pattern.permute.xlu0 0
          %1405 = vperm.xlu0 %1404, %v1331
          %v1406 = vpop.permute.xlu0 %1405
          %1409 = vset.pattern.permute.xlu0 0
          %1410 = vperm.xlu0 %1409, %v1333
          %v1411 = vpop.permute.xlu0 %1410
          %1414 = vset.pattern.permute.xlu0 0
          %1415 = vperm.xlu0 %1414, %v1335
          %v1416 = vpop.permute.xlu0 %1415
          %1419 = vset.pattern.permute.xlu0 0
          %1420 = vperm.xlu0 %1419, %v1337
          %v1421 = vpop.permute.xlu0 %1420
          %v1423 = vmul.f32 %v1406, %v1399
          %v1424 = vmul.f32 %v1411, %v1400
          %v1425 = vmul.f32 %v1416, %v1401
          %v1426 = vmul.f32 %v1421, %v1402
          %v1427 = vpack.c.bf16 %v1363, %v1363
          %v1428 = vpack.c.bf16 %v1365, %v1365
          %v1429 = vpack.c.bf16 %v1367, %v1367
          %v1430 = vpack.c.bf16 %v1369, %v1369
          %v1432 = vsel %vm1110, %v1427, 0
          %vm1434 = vcmask 1043456
          %v1436 = vsel %vm1434, %v591, 0
          %1438 = vmatprep.subr.bf16.mxu0 0
          %1439 = vmatpush1.bf16.msra.mxu0 %v1436
          %1440 = vmatprep.subr.bf16.mxu0 0
          %1441 = vmatpush1.bf16.msra.mxu0 0
          %1442 = vmatprep.subr.bf16.mxu0 0
          %1443 = vmatpush1.bf16.msra.mxu0 0
          %1444 = vmatprep.subr.bf16.mxu0 0
          %1445 = vmatpush1.bf16.msra.mxu0 0
          %1446 = vmatprep.subr.bf16.mxu0 0
          %1447 = vmatpush1.bf16.msra.mxu0 0
          %1448 = vmatprep.subr.bf16.mxu0 0
          %1449 = vmatpush1.bf16.msra.mxu0 0
          %1450 = vmatprep.subr.bf16.mxu0 0
          %1451 = vmatpush1.bf16.msra.mxu0 0
          %1452 = vmatprep.subr.bf16.mxu0 0
          %1453 = vmatpush1.bf16.msra.mxu0 0
          %1454 = vmatprep.subr.bf16.mxu0 0
          %1455 = vmatpush1.bf16.msra.mxu0 0
          %1456 = vmatprep.subr.bf16.mxu0 0
          %1457 = vmatpush1.bf16.msra.mxu0 0
          %1458 = vmatprep.subr.bf16.mxu0 0
          %1459 = vmatpush1.bf16.msra.mxu0 0
          %1460 = vmatprep.subr.bf16.mxu0 0
          %1461 = vmatpush1.bf16.msra.mxu0 0
          %1462 = vmatprep.subr.bf16.mxu0 0
          %1463 = vmatpush1.bf16.msra.mxu0 0
          %1464 = vmatprep.subr.bf16.mxu0 0
          %1465 = vmatpush1.bf16.msra.mxu0 0
          %1466 = vmatprep.subr.bf16.mxu0 0
          %1467 = vmatpush1.bf16.msra.mxu0 0
          %1468 = vmatprep.subr.bf16.mxu0 0
          %1469 = vmatpush1.bf16.msra.mxu0 0
          %1470 = vmatprep.mubr.bf16.mxu0 0
          %1471 = vmatmul.mubr.bf16.gmra.mrb[0].mxu0 %v1432
          %v1472 = vpop.f32.mrb[0].mxu0
          %v1473 = vadd.f32 0.0, %v1472
          %v1474 = vpop.f32.mrb[0].mxu0
          %v1475 = vpop.f32.mrb[0].mxu0
          %v1476 = vpop.f32.mrb[0].mxu0
          %1477 = vdwg.mxu0
          %v1479 = vsel %vm1110, %v1428, 0
          %v1482 = vsel %vm1434, %v592, 0
          %1484 = vmatprep.subr.bf16.mxu0 0
          %1485 = vmatpush1.bf16.msra.mxu0 %v1482
          %1486 = vmatprep.subr.bf16.mxu0 0
          %1487 = vmatpush1.bf16.msra.mxu0 0
          %1488 = vmatprep.subr.bf16.mxu0 0
          %1489 = vmatpush1.bf16.msra.mxu0 0
          %1490 = vmatprep.subr.bf16.mxu0 0
          %1491 = vmatpush1.bf16.msra.mxu0 0
          %1492 = vmatprep.subr.bf16.mxu0 0
          %1493 = vmatpush1.bf16.msra.mxu0 0
          %1494 = vmatprep.subr.bf16.mxu0 0
          %1495 = vmatpush1.bf16.msra.mxu0 0
          %1496 = vmatprep.subr.bf16.mxu0 0
          %1497 = vmatpush1.bf16.msra.mxu0 0
          %1498 = vmatprep.subr.bf16.mxu0 0
          %1499 = vmatpush1.bf16.msra.mxu0 0
          %1500 = vmatprep.subr.bf16.mxu0 0
          %1501 = vmatpush1.bf16.msra.mxu0 0
          %1502 = vmatprep.subr.bf16.mxu0 0
          %1503 = vmatpush1.bf16.msra.mxu0 0
          %1504 = vmatprep.subr.bf16.mxu0 0
          %1505 = vmatpush1.bf16.msra.mxu0 0
          %1506 = vmatprep.subr.bf16.mxu0 0
          %1507 = vmatpush1.bf16.msra.mxu0 0
          %1508 = vmatprep.subr.bf16.mxu0 0
          %1509 = vmatpush1.bf16.msra.mxu0 0
          %1510 = vmatprep.subr.bf16.mxu0 0
          %1511 = vmatpush1.bf16.msra.mxu0 0
          %1512 = vmatprep.subr.bf16.mxu0 0
          %1513 = vmatpush1.bf16.msra.mxu0 0
          %1514 = vmatprep.subr.bf16.mxu0 0
          %1515 = vmatpush1.bf16.msra.mxu0 0
          %1516 = vmatprep.mubr.bf16.mxu0 0
          %1517 = vmatmul.mubr.bf16.gmra.mrb[0].mxu0 %v1479
          %v1518 = vpop.f32.mrb[0].mxu0
          %v1519 = vadd.f32 0.0, %v1518
          %v1520 = vpop.f32.mrb[0].mxu0
          %v1521 = vpop.f32.mrb[0].mxu0
          %v1522 = vpop.f32.mrb[0].mxu0
          %1523 = vdwg.mxu0
          %v1525 = vsel %vm1110, %v1429, 0
          %v1528 = vsel %vm1434, %v593, 0
          %1530 = vmatprep.subr.bf16.mxu0 0
          %1531 = vmatpush1.bf16.msra.mxu0 %v1528
          %1532 = vmatprep.subr.bf16.mxu0 0
          %1533 = vmatpush1.bf16.msra.mxu0 0
          %1534 = vmatprep.subr.bf16.mxu0 0
          %1535 = vmatpush1.bf16.msra.mxu0 0
          %1536 = vmatprep.subr.bf16.mxu0 0
          %1537 = vmatpush1.bf16.msra.mxu0 0
          %1538 = vmatprep.subr.bf16.mxu0 0
          %1539 = vmatpush1.bf16.msra.mxu0 0
          %1540 = vmatprep.subr.bf16.mxu0 0
          %1541 = vmatpush1.bf16.msra.mxu0 0
          %1542 = vmatprep.subr.bf16.mxu0 0
          %1543 = vmatpush1.bf16.msra.mxu0 0
          %1544 = vmatprep.subr.bf16.mxu0 0
          %1545 = vmatpush1.bf16.msra.mxu0 0
          %1546 = vmatprep.subr.bf16.mxu0 0
          %1547 = vmatpush1.bf16.msra.mxu0 0
          %1548 = vmatprep.subr.bf16.mxu0 0
          %1549 = vmatpush1.bf16.msra.mxu0 0
          %1550 = vmatprep.subr.bf16.mxu0 0
          %1551 = vmatpush1.bf16.msra.mxu0 0
          %1552 = vmatprep.subr.bf16.mxu0 0
          %1553 = vmatpush1.bf16.msra.mxu0 0
          %1554 = vmatprep.subr.bf16.mxu0 0
          %1555 = vmatpush1.bf16.msra.mxu0 0
          %1556 = vmatprep.subr.bf16.mxu0 0
          %1557 = vmatpush1.bf16.msra.mxu0 0
          %1558 = vmatprep.subr.bf16.mxu0 0
          %1559 = vmatpush1.bf16.msra.mxu0 0
          %1560 = vmatprep.subr.bf16.mxu0 0
          %1561 = vmatpush1.bf16.msra.mxu0 0
          %1562 = vmatprep.mubr.bf16.mxu0 0
          %1563 = vmatmul.mubr.bf16.gmra.mrb[0].mxu0 %v1525
          %v1564 = vpop.f32.mrb[0].mxu0
          %v1565 = vadd.f32 0.0, %v1564
          %v1566 = vpop.f32.mrb[0].mxu0
          %v1567 = vpop.f32.mrb[0].mxu0
          %v1568 = vpop.f32.mrb[0].mxu0
          %1569 = vdwg.mxu0
          %v1571 = vsel %vm1110, %v1430, 0
          %v1574 = vsel %vm1434, %v594, 0
          %1576 = vmatprep.subr.bf16.mxu0 0
          %1577 = vmatpush1.bf16.msra.mxu0 %v1574
          %1578 = vmatprep.subr.bf16.mxu0 0
          %1579 = vmatpush1.bf16.msra.mxu0 0
          %1580 = vmatprep.subr.bf16.mxu0 0
          %1581 = vmatpush1.bf16.msra.mxu0 0
          %1582 = vmatprep.subr.bf16.mxu0 0
          %1583 = vmatpush1.bf16.msra.mxu0 0
          %1584 = vmatprep.subr.bf16.mxu0 0
          %1585 = vmatpush1.bf16.msra.mxu0 0
          %1586 = vmatprep.subr.bf16.mxu0 0
          %1587 = vmatpush1.bf16.msra.mxu0 0
          %1588 = vmatprep.subr.bf16.mxu0 0
          %1589 = vmatpush1.bf16.msra.mxu0 0
          %1590 = vmatprep.subr.bf16.mxu0 0
          %1591 = vmatpush1.bf16.msra.mxu0 0
          %1592 = vmatprep.subr.bf16.mxu0 0
          %1593 = vmatpush1.bf16.msra.mxu0 0
          %1594 = vmatprep.subr.bf16.mxu0 0
          %1595 = vmatpush1.bf16.msra.mxu0 0
          %1596 = vmatprep.subr.bf16.mxu0 0
          %1597 = vmatpush1.bf16.msra.mxu0 0
          %1598 = vmatprep.subr.bf16.mxu0 0
          %1599 = vmatpush1.bf16.msra.mxu0 0
          %1600 = vmatprep.subr.bf16.mxu0 0
          %1601 = vmatpush1.bf16.msra.mxu0 0
          %1602 = vmatprep.subr.bf16.mxu0 0
          %1603 = vmatpush1.bf16.msra.mxu0 0
          %1604 = vmatprep.subr.bf16.mxu0 0
          %1605 = vmatpush1.bf16.msra.mxu0 0
          %1606 = vmatprep.subr.bf16.mxu0 0
          %1607 = vmatpush1.bf16.msra.mxu0 0
          %1608 = vmatprep.mubr.bf16.mxu0 0
          %1609 = vmatmul.mubr.bf16.gmra.mrb[0].mxu0 %v1571
          %v1610 = vpop.f32.mrb[0].mxu0
          %v1611 = vadd.f32 0.0, %v1610
          %v1612 = vpop.f32.mrb[0].mxu0
          %v1613 = vpop.f32.mrb[0].mxu0
          %v1614 = vpop.f32.mrb[0].mxu0
          %1615 = vdwg.mxu0
          %v1616 = vadd.f32 %v1423, %v1473
          %v1617 = vadd.f32 %v1424, %v1519
          %v1618 = vadd.f32 %v1425, %v1565
          %v1619 = vadd.f32 %v1426, %v1611
          %1620 = vst.msk [vmem:[#allocation4] sm:$0xff] %vm1110, %v1616
          %1621 = vst.msk [vmem:[#allocation4 + $0x8] sm:$0xff] %vm1110, %v1617
          %1622 = vst.msk [vmem:[#allocation4 + $0x10] sm:$0xff] %vm1110, %v1618
          %1623 = vst.msk [vmem:[#allocation4 + $0x18] sm:$0xff] %vm1110, %v1619
          %1624 = vst.msk [vmem:[#allocation2] sm:$0xff] %vm1394, %v1322
          %1625 = vst.msk [vmem:[#allocation2 + $0x8] sm:$0xff] %vm1394, %v1323
          %1626 = vst.msk [vmem:[#allocation2 + $0x10] sm:$0xff] %vm1394, %v1324
          %1627 = vst.msk [vmem:[#allocation2 + $0x18] sm:$0xff] %vm1394, %v1325
          %v1628 = vld [vmem:[#allocation3] sm:$0xff]
          %v1629 = vld [vmem:[#allocation3 + $0x8] sm:$0xff]
          %v1630 = vld [vmem:[#allocation3 + $0x10] sm:$0xff]
          %v1631 = vld [vmem:[#allocation3 + $0x18] sm:$0xff]
          %v1632 = vrcp.pop %v1628
          %v1633 = vrcp.pop %v1629
          %v1634 = vrcp.pop %v1630
          %v1635 = vrcp.pop %v1631
          %v1636 = vld [vmem:[#allocation4] sm:$0xff]
          %v1637 = vld [vmem:[#allocation4 + $0x8] sm:$0xff]
          %v1638 = vld [vmem:[#allocation4 + $0x10] sm:$0xff]
          %v1639 = vld [vmem:[#allocation4 + $0x18] sm:$0xff]
          %1641 = vset.pattern.permute.xlu0 0
          %1642 = vperm.xlu0 %1641, %v1632
          %v1643 = vpop.permute.xlu0 %1642
          %1646 = vset.pattern.permute.xlu0 0
          %1647 = vperm.xlu0 %1646, %v1633
          %v1648 = vpop.permute.xlu0 %1647
          %1651 = vset.pattern.permute.xlu0 0
          %1652 = vperm.xlu0 %1651, %v1634
          %v1653 = vpop.permute.xlu0 %1652
          %1656 = vset.pattern.permute.xlu0 0
          %1657 = vperm.xlu0 %1656, %v1635
          %v1658 = vpop.permute.xlu0 %1657
          %v1660 = vmul.f32 %v1636, %v1643
          %v1661 = vmul.f32 %v1637, %v1648
          %v1662 = vmul.f32 %v1638, %v1653
          %v1663 = vmul.f32 %v1639, %v1658
          %v1664 = vcombine.low %v1660, %v1662
          %v1665 = vcombine.high %v1660, %v1662
          %v1667 = vunpack.c.l.s4 1983009808
          %v1668 = vunpack.c.0.s8 %v1667
          %v1669 = vlaneseq
          %v1670 = vshrl.u32 %v1669, 7
          %v1671 = vsub.s32 %v1668, %v1670
          %v1672 = vrot.slane %v1664, %v1671
          %v1674 = vunpack.c.l.s4 1983009808
          %v1675 = vunpack.c.0.s8 %v1674
          %v1676 = vlaneseq
          %v1677 = vshrl.u32 %v1676, 7
          %v1678 = vsub.s32 %v1675, %v1677
          %v1679 = vrot.slane %v1665, %v1678
          %v1680 = vcombine.low %v1661, %v1663
          %v1681 = vcombine.high %v1661, %v1663
          %v1683 = vunpack.c.l.s4 1983009808
          %v1684 = vunpack.c.0.s8 %v1683
          %v1685 = vlaneseq
          %v1686 = vshrl.u32 %v1685, 7
          %v1687 = vsub.s32 %v1684, %v1686
          %v1688 = vrot.slane %v1680, %v1687
          %v1690 = vunpack.c.l.s4 1983009808
          %v1691 = vunpack.c.0.s8 %v1690
          %v1692 = vlaneseq
          %v1693 = vshrl.u32 %v1692, 7
          %v1694 = vsub.s32 %v1691, %v1693
          %v1695 = vrot.slane %v1681, %v1694
          %v1696 = vcombine.low %v1672, %v1688
          %v1697 = vcombine.high %v1672, %v1688
          %v1699 = vunpack.c.l.s4 1934713408
          %v1700 = vunpack.c.0.s8 %v1699
          %v1701 = vlaneseq
          %v1702 = vshrl.u32 %v1701, 7
          %v1703 = vsub.s32 %v1700, %v1702
          %v1704 = vrot.slane %v1696, %v1703
          %v1706 = vunpack.c.l.s4 1934713408
          %v1707 = vunpack.c.0.s8 %v1706
          %v1708 = vlaneseq
          %v1709 = vshrl.u32 %v1708, 7
          %v1710 = vsub.s32 %v1707, %v1709
          %v1711 = vrot.slane %v1697, %v1710
          %v1712 = vcombine.low %v1679, %v1695
          %v1713 = vcombine.high %v1679, %v1695
          %v1715 = vunpack.c.l.s4 1934713408
          %v1716 = vunpack.c.0.s8 %v1715
          %v1717 = vlaneseq
          %v1718 = vshrl.u32 %v1717, 7
          %v1719 = vsub.s32 %v1716, %v1718
          %v1720 = vrot.slane %v1712, %v1719
          %v1722 = vunpack.c.l.s4 1934713408
          %v1723 = vunpack.c.0.s8 %v1722
          %v1724 = vlaneseq
          %v1725 = vshrl.u32 %v1724, 7
          %v1726 = vsub.s32 %v1723, %v1725
          %v1727 = vrot.slane %v1713, %v1726
          %v1728 = vcombine.high %v1704, 0.0
          %v1729 = vcombine.high %v1711, 0.0
          %v1730 = vcombine.high %v1720, 0.0
          %v1731 = vcombine.high %v1727, 0.0
          %v1732 = vcombine.low %v1704, %v1711
          %v1734 = vunpack.c.l.s4 1983009808
          %v1735 = vunpack.c.0.s8 %v1734
          %v1736 = vlaneseq
          %v1737 = vshrl.u32 %v1736, 7
          %v1738 = vsub.s32 %v1735, %v1737
          %v1739 = vrot.slane %v1732, %v1738
          %v1740 = vcombine.low %v1728, %v1729
          %v1742 = vunpack.c.l.s4 1983009808
          %v1743 = vunpack.c.0.s8 %v1742
          %v1744 = vlaneseq
          %v1745 = vshrl.u32 %v1744, 7
          %v1746 = vsub.s32 %v1743, %v1745
          %v1747 = vrot.slane %v1740, %v1746
          %v1748 = vcombine.low %v1720, %v1727
          %v1750 = vunpack.c.l.s4 1983009808
          %v1751 = vunpack.c.0.s8 %v1750
          %v1752 = vlaneseq
          %v1753 = vshrl.u32 %v1752, 7
          %v1754 = vsub.s32 %v1751, %v1753
          %v1755 = vrot.slane %v1748, %v1754
          %v1756 = vcombine.low %v1730, %v1731
          %v1758 = vunpack.c.l.s4 1983009808
          %v1759 = vunpack.c.0.s8 %v1758
          %v1760 = vlaneseq
          %v1761 = vshrl.u32 %v1760, 7
          %v1762 = vsub.s32 %v1759, %v1761
          %v1763 = vrot.slane %v1756, %v1762
          %v1764 = vcombine.low %v1739, %v1747
          %v1765 = vcombine.high %v1739, %v1747
          %v1767 = vunpack.c.l.s4 1934713408
          %v1768 = vunpack.c.0.s8 %v1767
          %v1769 = vlaneseq
          %v1770 = vshrl.u32 %v1769, 7
          %v1771 = vsub.s32 %v1768, %v1770
          %v1772 = vrot.slane %v1764, %v1771
          %v1774 = vunpack.c.l.s4 1934713408
          %v1775 = vunpack.c.0.s8 %v1774
          %v1776 = vlaneseq
          %v1777 = vshrl.u32 %v1776, 7
          %v1778 = vsub.s32 %v1775, %v1777
          %v1779 = vrot.slane %v1765, %v1778
          %v1780 = vcombine.low %v1755, %v1763
          %v1781 = vcombine.high %v1755, %v1763
          %v1783 = vunpack.c.l.s4 1934713408
          %v1784 = vunpack.c.0.s8 %v1783
          %v1785 = vlaneseq
          %v1786 = vshrl.u32 %v1785, 7
          %v1787 = vsub.s32 %v1784, %v1786
          %v1788 = vrot.slane %v1780, %v1787
          %v1790 = vunpack.c.l.s4 1934713408
          %v1791 = vunpack.c.0.s8 %v1790
          %v1792 = vlaneseq
          %v1793 = vshrl.u32 %v1792, 7
          %v1794 = vsub.s32 %v1791, %v1793
          %v1795 = vrot.slane %v1781, %v1794
          %v1796 = vcombine.low %v1772, %v1788
          %v1797 = vcombine.high %v1772, %v1788
          %v1798 = vcombine.low %v1779, %v1795
          %v1799 = vcombine.high %v1779, %v1795
          %1801 = vrot.lane.b32.xlu0 %v1797, 8
          %v1802 = vpop.permute.xlu0 %1801
          %1805 = vrot.lane.b32.xlu0 %v1798, 16
          %v1806 = vpop.permute.xlu0 %1805
          %1809 = vrot.lane.b32.xlu0 %v1799, 24
          %v1810 = vpop.permute.xlu0 %1809
          %v1812 = vsel %vm1110, %v1796, %v1802
          %vm1813 = vcmask 130048
          %v1814 = vsel %vm1813, %v1812, %v1806
          %vm1815 = vcmask 195584
          %v1816 = vsel %vm1815, %v1814, %v1810
          %v1817 = vpack.c.bf16 %v1816, %v1816
          %v1818 = vld [vmem:[%s6] sm:$0xf]
          %v1819 = vld [vmem:[%s6 + $0x4] sm:$0xf]
          %v1820 = vld [vmem:[%s6 + $0x8] sm:$0xf]
          %v1821 = vld [vmem:[%s6 + $0xc] sm:$0xf]
          %v1822 = vld [vmem:[%s7] sm:$0x1]
          %v1824 = vlaneseq
          %v1825 = vshrl.u32 %v1824, 7
          %v1826 = vsub.s32 0, %v1825
          %v1827 = vrot.slane %v1822, %v1826
          %v1833 = vunpack.c.l.b16 %v1818
          %v1834 = vunpack.c.l.b16 %v1819
          %v1835 = vunpack.c.l.b16 %v1820
          %v1836 = vunpack.c.l.b16 %v1821
          %v1837 = vpack.c.b16 %v1834, %v1833
          %v1838 = vpack.c.b16 %v1836, %v1835
          %vm1841 = vcmask 261120
          %v1843 = vsel %vm1841, %v1817, 0
          %1845 = vmatprep.subr.bf16.mxu0 0
          %1846 = vmatpush1.bf16.msra.mxu0 %v1837
          %1847 = vmatprep.subr.bf16.mxu0 0
          %1848 = vmatpush1.bf16.msra.mxu0 %v1838
          %1849 = vmatprep.subr.bf16.mxu0 0
          %1850 = vmatpush1.bf16.msra.mxu0 0
          %1851 = vmatprep.subr.bf16.mxu0 0
          %1852 = vmatpush1.bf16.msra.mxu0 0
          %1853 = vmatprep.subr.bf16.mxu0 0
          %1854 = vmatpush1.bf16.msra.mxu0 0
          %1855 = vmatprep.subr.bf16.mxu0 0
          %1856 = vmatpush1.bf16.msra.mxu0 0
          %1857 = vmatprep.subr.bf16.mxu0 0
          %1858 = vmatpush1.bf16.msra.mxu0 0
          %1859 = vmatprep.subr.bf16.mxu0 0
          %1860 = vmatpush1.bf16.msra.mxu0 0
          %1861 = vmatprep.subr.bf16.mxu0 0
          %1862 = vmatpush1.bf16.msra.mxu0 0
          %1863 = vmatprep.subr.bf16.mxu0 0
          %1864 = vmatpush1.bf16.msra.mxu0 0
          %1865 = vmatprep.subr.bf16.mxu0 0
          %1866 = vmatpush1.bf16.msra.mxu0 0
          %1867 = vmatprep.subr.bf16.mxu0 0
          %1868 = vmatpush1.bf16.msra.mxu0 0
          %1869 = vmatprep.subr.bf16.mxu0 0
          %1870 = vmatpush1.bf16.msra.mxu0 0
          %1871 = vmatprep.subr.bf16.mxu0 0
          %1872 = vmatpush1.bf16.msra.mxu0 0
          %1873 = vmatprep.subr.bf16.mxu0 0
          %1874 = vmatpush1.bf16.msra.mxu0 0
          %1875 = vmatprep.subr.bf16.mxu0 0
          %1876 = vmatpush1.bf16.msra.mxu0 0
          %1877 = vmatprep.mubr.bf16.mxu0 0
          %1878 = vmatmul.mubr.bf16.gmra.mrb[0].mxu0 %v1843
          %v1879 = vpop.f32.mrb[0].mxu0
          %v1880 = vadd.f32 %v1827, %v1879
          %v1881 = vpop.f32.mrb[0].mxu0
          %v1882 = vpop.f32.mrb[0].mxu0
          %v1883 = vpop.f32.mrb[0].mxu0
          %1884 = vdwg.mxu0
          %v1885 = vld [vmem:[%s529] sm:$0xff]
          %v1886 = vadd.f32 %v1885, %v1880
          %v1887 = vld [vmem:[%s8] sm:$0x1]
          %v1888 = vld [vmem:[%s9] sm:$0x1]
          %v1889 = vsel %vm1841, %v1886, 0.0
          %1890 = vadd.xlane.f32.xlu0 %v1889
          %v1891 = vpop.xlane.xlu0 %1890
          %v1892 = vrcp.pop 32.0
          %v1893 = vmul.f32 %v1891, %v1892
          %v1894 = vsub.f32 %v1886, %v1893
          %v1895 = vmul.f32 %v1894, %v1894
          %v1896 = vsel %vm1841, %v1895, 0.0
          %1897 = vadd.xlane.f32.xlu0 %v1896
          %v1898 = vpop.xlane.xlu0 %1897
          %v1899 = vmul.f32 %v1898, %v1892
          %v1900 = vadd.f32 %v1899, 1e-05
          %v1901 = vrsqrt.pop %v1900
          %v1902 = vmul.f32 %v1894, %v1901
          %v1904 = vlaneseq
          %v1905 = vshrl.u32 %v1904, 7
          %v1906 = vsub.s32 0, %v1905
          %v1907 = vrot.slane %v1887, %v1906
          %v1909 = vmul.f32 %v1902, %v1907
          %v1911 = vlaneseq
          %v1912 = vshrl.u32 %v1911, 7
          %v1913 = vsub.s32 0, %v1912
          %v1914 = vrot.slane %v1888, %v1913
          %v1916 = vadd.f32 %v1909, %v1914
          %v1917 = vpack.c.bf16 %v1916, %v1916
          %v1918 = vld [vmem:[%s10] sm:$0xf]
          %v1919 = vld [vmem:[%s10 + $0x4] sm:$0xf]
          %v1920 = vld [vmem:[%s10 + $0x8] sm:$0xf]
          %v1921 = vld [vmem:[%s10 + $0xc] sm:$0xf]
          %v1922 = vld [vmem:[%s11] sm:$0x1]
          %v1924 = vlaneseq
          %v1925 = vshrl.u32 %v1924, 7
          %v1926 = vsub.s32 0, %v1925
          %v1927 = vrot.slane %v1922, %v1926
          %v1933 = vunpack.c.l.b16 %v1918
          %v1934 = vunpack.c.l.b16 %v1919
          %v1935 = vunpack.c.l.b16 %v1920
          %v1936 = vunpack.c.l.b16 %v1921
          %v1937 = vpack.c.b16 %v1934, %v1933
          %v1938 = vpack.c.b16 %v1936, %v1935
          %v1942 = vsel %vm1841, %v1917, 0
          %1944 = vmatprep.subr.bf16.mxu0 0
          %1945 = vmatpush1.bf16.msra.mxu0 %v1937
          %1946 = vmatprep.subr.bf16.mxu0 0
          %1947 = vmatpush1.bf16.msra.mxu0 %v1938
          %1948 = vmatprep.subr.bf16.mxu0 0
          %1949 = vmatpush1.bf16.msra.mxu0 0
          %1950 = vmatprep.subr.bf16.mxu0 0
          %1951 = vmatpush1.bf16.msra.mxu0 0
          %1952 = vmatprep.subr.bf16.mxu0 0
          %1953 = vmatpush1.bf16.msra.mxu0 0
          %1954 = vmatprep.subr.bf16.mxu0 0
          %1955 = vmatpush1.bf16.msra.mxu0 0
          %1956 = vmatprep.subr.bf16.mxu0 0
          %1957 = vmatpush1.bf16.msra.mxu0 0
          %1958 = vmatprep.subr.bf16.mxu0 0
          %1959 = vmatpush1.bf16.msra.mxu0 0
          %1960 = vmatprep.subr.bf16.mxu0 0
          %1961 = vmatpush1.bf16.msra.mxu0 0
          %1962 = vmatprep.subr.bf16.mxu0 0
          %1963 = vmatpush1.bf16.msra.mxu0 0
          %1964 = vmatprep.subr.bf16.mxu0 0
          %1965 = vmatpush1.bf16.msra.mxu0 0
          %1966 = vmatprep.subr.bf16.mxu0 0
          %1967 = vmatpush1.bf16.msra.mxu0 0
          %1968 = vmatprep.subr.bf16.mxu0 0
          %1969 = vmatpush1.bf16.msra.mxu0 0
          %1970 = vmatprep.subr.bf16.mxu0 0
          %1971 = vmatpush1.bf16.msra.mxu0 0
          %1972 = vmatprep.subr.bf16.mxu0 0
          %1973 = vmatpush1.bf16.msra.mxu0 0
          %1974 = vmatprep.subr.bf16.mxu0 0
          %1975 = vmatpush1.bf16.msra.mxu0 0
          %1976 = vmatprep.mubr.bf16.mxu0 0
          %1977 = vmatmul.mubr.bf16.gmra.mrb[0].mxu0 %v1942
          %v1978 = vpop.f32.mrb[0].mxu0
          %v1979 = vadd.f32 %v1927, %v1978
          %v1980 = vpop.f32.mrb[0].mxu0
          %v1981 = vpop.f32.mrb[0].mxu0
          %v1982 = vpop.f32.mrb[0].mxu0
          %1983 = vdwg.mxu0
          %v1984 = vmul.f32 %v1979, %v1979
          %v1985 = vmul.f32 %v1979, %v1984
          %v1986 = vmul.f32 %v1985, 0.044715
          %v1987 = vadd.f32 %v1979, %v1986
          %v1988 = vmul.f32 %v1987, 0.7978846
          %v1989 = vtanh.pop %v1988
          %v1990 = vadd.f32 %v1989, 1.0
          %v1991 = vmul.f32 %v1990, 0.5
          %v1992 = vmul.f32 %v1979, %v1991
          %v1993 = vpack.c.bf16 %v1992, %v1992
          %v1994 = vld [vmem:[%s12] sm:$0xf]
          %v1995 = vld [vmem:[%s12 + $0x4] sm:$0xf]
          %v1996 = vld [vmem:[%s12 + $0x8] sm:$0xf]
          %v1997 = vld [vmem:[%s12 + $0xc] sm:$0xf]
          %v1998 = vld [vmem:[%s12 + $0x10] sm:$0xf]
          %v1999 = vld [vmem:[%s12 + $0x14] sm:$0xf]
          %v2000 = vld [vmem:[%s12 + $0x18] sm:$0xf]
          %v2001 = vld [vmem:[%s12 + $0x1c] sm:$0xf]
          %v2002 = vld [vmem:[%s12 + $0x20] sm:$0xf]
          %v2003 = vld [vmem:[%s12 + $0x24] sm:$0xf]
          %v2004 = vld [vmem:[%s12 + $0x28] sm:$0xf]
          %v2005 = vld [vmem:[%s12 + $0x2c] sm:$0xf]
          %v2006 = vld [vmem:[%s12 + $0x30] sm:$0xf]
          %v2007 = vld [vmem:[%s12 + $0x34] sm:$0xf]
          %v2008 = vld [vmem:[%s12 + $0x38] sm:$0xf]
          %v2009 = vld [vmem:[%s12 + $0x3c] sm:$0xf]
          %v2010 = vld [vmem:[%s13] sm:$0x1]
          %v2012 = vlaneseq
          %v2013 = vshrl.u32 %v2012, 7
          %v2014 = vsub.s32 0, %v2013
          %v2015 = vrot.slane %v2010, %v2014
          %v2033 = vunpack.c.l.b16 %v1994
          %v2034 = vunpack.c.l.b16 %v1995
          %v2035 = vunpack.c.l.b16 %v1996
          %v2036 = vunpack.c.l.b16 %v1997
          %v2037 = vunpack.c.l.b16 %v1998
          %v2038 = vunpack.c.l.b16 %v1999
          %v2039 = vunpack.c.l.b16 %v2000
          %v2040 = vunpack.c.l.b16 %v2001
          %v2041 = vunpack.c.l.b16 %v2002
          %v2042 = vunpack.c.l.b16 %v2003
          %v2043 = vunpack.c.l.b16 %v2004
          %v2044 = vunpack.c.l.b16 %v2005
          %v2045 = vunpack.c.l.b16 %v2006
          %v2046 = vunpack.c.l.b16 %v2007
          %v2047 = vunpack.c.l.b16 %v2008
          %v2048 = vunpack.c.l.b16 %v2009
          %v2049 = vpack.c.b16 %v2034, %v2033
          %v2050 = vpack.c.b16 %v2036, %v2035
          %v2051 = vpack.c.b16 %v2038, %v2037
          %v2052 = vpack.c.b16 %v2040, %v2039
          %v2053 = vpack.c.b16 %v2042, %v2041
          %v2054 = vpack.c.b16 %v2044, %v2043
          %v2055 = vpack.c.b16 %v2046, %v2045
          %v2056 = vpack.c.b16 %v2048, %v2047
          %2065 = vmatprep.subr.bf16.mxu0 0
          %2066 = vmatpush1.bf16.msra.mxu0 %v2049
          %2067 = vmatprep.subr.bf16.mxu0 0
          %2068 = vmatpush1.bf16.msra.mxu0 %v2050
          %2069 = vmatprep.subr.bf16.mxu0 0
          %2070 = vmatpush1.bf16.msra.mxu0 %v2051
          %2071 = vmatprep.subr.bf16.mxu0 0
          %2072 = vmatpush1.bf16.msra.mxu0 %v2052
          %2073 = vmatprep.subr.bf16.mxu0 0
          %2074 = vmatpush1.bf16.msra.mxu0 %v2053
          %2075 = vmatprep.subr.bf16.mxu0 0
          %2076 = vmatpush1.bf16.msra.mxu0 %v2054
          %2077 = vmatprep.subr.bf16.mxu0 0
          %2078 = vmatpush1.bf16.msra.mxu0 %v2055
          %2079 = vmatprep.subr.bf16.mxu0 0
          %2080 = vmatpush1.bf16.msra.mxu0 %v2056
          %2081 = vmatprep.subr.bf16.mxu0 0
          %2082 = vmatpush1.bf16.msra.mxu0 0
          %2083 = vmatprep.subr.bf16.mxu0 0
          %2084 = vmatpush1.bf16.msra.mxu0 0
          %2085 = vmatprep.subr.bf16.mxu0 0
          %2086 = vmatpush1.bf16.msra.mxu0 0
          %2087 = vmatprep.subr.bf16.mxu0 0
          %2088 = vmatpush1.bf16.msra.mxu0 0
          %2089 = vmatprep.subr.bf16.mxu0 0
          %2090 = vmatpush1.bf16.msra.mxu0 0
          %2091 = vmatprep.subr.bf16.mxu0 0
          %2092 = vmatpush1.bf16.msra.mxu0 0
          %2093 = vmatprep.subr.bf16.mxu0 0
          %2094 = vmatpush1.bf16.msra.mxu0 0
          %2095 = vmatprep.subr.bf16.mxu0 0
          %2096 = vmatpush1.bf16.msra.mxu0 0
          %2097 = vmatprep.mubr.bf16.mxu0 0
          %2098 = vmatmul.mubr.bf16.gmra.mrb[0].mxu0 %v1993
          %v2099 = vpop.f32.mrb[0].mxu0
          %v2100 = vadd.f32 %v2015, %v2099
          %v2101 = vpop.f32.mrb[0].mxu0
          %v2102 = vpop.f32.mrb[0].mxu0
          %v2103 = vpop.f32.mrb[0].mxu0
          %2104 = vdwg.mxu0
          %v2105 = vadd.f32 %v1886, %v2100
          %2106 = vst.msk [vmem:[%s521] sm:$0xff] %vm1841, %v2105
        $region80: #{block_forward.3} parent=67 // pred_fallthru
          _
        %s2107 = sand.u32 %s342, 1
        %s2108 = scalar_lea.sflag [#allocation9], %s2107
        %s2109 = sand.u32 %s342, 1
        %s2110 = smul.addr %s2109, 8
        %s2111 = scalar_lea.vmem [#allocation8], %s2110
        // Predicated region
        $region81: #{block_forward.3} parent=67 // pred_check
          %p2112 = pneg %p352
        $region82: #{block_forward.3} parent=67 // pred_check_branch
          %2114 = sbr.rel (%p2112) target = $region84
        $region83: #{block_forward.3} parent=67 // pred_region
          %s2115 = sld [smem:[#allocation6 + %s35]]
          %s2117 = ssub.s32 128, 128
          %2118 = vsyncadd %s2108, %s2117
          %s2119 = sadd.s32 %s2115, %s34
          %s2120 = smul.addr %s2119, 128
          %s2121 = scalar_lea.hbm %s14, %s2120
          %s2123 = sshll.u32 %s2111, 4
          %s2124 = int_to_ptr.vmem [resolvable:$true] %s2123
          %2126 = dma.vmem_to_hbm [thread:$0]  %s2124, 128, %s2121, %s2108
        $region84: #{block_forward.3} parent=67 // pred_fallthru
          _
      $region68: #{block_forward.3} parent=5 // pred_fallthru
        _
      %p2127 = scmp.le.s32.totalorder 2, %s25
      // Predicated region
      $region85: #{block_forward.3} parent=5 // pred_check
        %p2128 = pneg %p2127
      $region86: #{block_forward.3} parent=5 // pred_check_branch
        %2130 = sbr.rel (%p2128) target = $region88
      $region87: #{block_forward.3} parent=5 // pred_region
        %s2131 = ssub.s32 %s25, 2
        // Predicated region
        $region89: #{block_forward.3} parent=87 // pred_check
          %p2132 = pneg %p358
        $region90: #{block_forward.3} parent=87 // pred_check_branch
          %2134 = sbr.rel (%p2132) target = $region92
        $region91: #{block_forward.3} parent=87 // pred_region
          %s2135 = sand.u32 %s343, 1
          %s2136 = scalar_lea.sflag [#allocation9], %s2135
          %s2137 = sand.u32 %s343, 1
          %s2138 = smul.addr %s2137, 8
          %s2139 = scalar_lea.vmem [#allocation8], %s2138
          %2140 = dma.done %s2136, 128
        $region92: #{block_forward.3} parent=87 // pred_fallthru
          _
      $region88: #{block_forward.3} parent=5 // pred_fallthru
        _
    $region6: #{block_forward.3} parent=1 // loop_footer
      %s29 = sadd.s32 1, %s25
    $region7: #{block_forward.3} parent=1 // loop_footer_branch
      %24 = sbr.rel target = $region3
    $region8: #{block_forward.3} parent=1 // loop_exit
      _
    %2141 = vsyncpa [#allocation9], 1
    %s2142 = scalar_lea.sflag [#allocation9], 1
    %2143 = vsyncpa %s2142, 1

</llo_original>
